<compile_context>
chip_gen: v5e
topology: v5e:2x2
jax: 0.10.0
libtpu: 0.0.40
codegen_flags: <defaults>
</compile_context>

<pallas_src>
import functools

import jax
import jax.numpy as jnp
from jax.experimental import pallas as pl
from jax.experimental.pallas import tpu as pltpu


def _round_up(a, b):
    return (a + b - 1) // b * b


def _ggnn_layer_kernel(hcol_ref, hrow_ref, a_ref, wf_ref, whh_ref, bih_ref, bhh_ref,
                       o_ref, acc_ref, *, hpad, apply_relu):
    """One GatedGraphConv propagation step at one (row tile i, A-column tile k) grid point.

    grid = (i: output row tile ["parallel"], k: A-column / reduction tile ["arbitrary"])

    hcol_ref : [TK, Hp]  f32      column tile of the layer-input hidden state (A @ h input)
    hrow_ref : [TM, Hp]  f32      row tile of the layer-input hidden state (GRU carry)
    a_ref    : [TM, TK]  bf16/i8  dense adjacency tile A[dst, src]
    wf_ref   : [Hp, 3Hp] f32      fused  W[l] @ Wih^T   (gates on 128-lane blocks)
    whh_ref  : [Hp, 3Hp] f32      Whh^T                 (gates on 128-lane blocks)
    bih_ref, bhh_ref : [1, 3Hp] f32
    o_ref    : [TM, Hp]  f32      new hidden state row tile (ReLU'd on the last layer)
    acc_ref  : [TM, Hp]  f32      VMEM accumulator for ax = A @ h
    """
    k = pl.program_id(1)
    nk = pl.num_programs(1)

    @pl.when(k == 0)
    def _zero_acc():
        acc_ref[...] = jnp.zeros_like(acc_ref)

    # Native bf16 MXU matmul, f32 accumulation.  Only the small h column tile is rounded
    # to bf16 (rel. err ~2^-9); the large A tile stays in its storage dtype (an int8
    # tile is widened to bf16 on the VPU but still costs half the HBM bytes of bf16).
    a_tile = a_ref[...]
    if a_tile.dtype != jnp.bfloat16:
        a_tile = a_tile.astype(jnp.bfloat16)
    h_col = hcol_ref[...].astype(jnp.bfloat16)
    acc_ref[...] += jnp.dot(a_tile, h_col, preferred_element_type=jnp.float32)

    @pl.when(k == nk - 1)
    def _finalize():
        h_row = hrow_ref[...]                      # [TM, Hp] f32 (GRU carry kept in f32)
        ax = acc_ref[...]
        # gi = (A @ h) @ (W[l] @ Wih^T) + bih   (message + input projection fused)
        gi = jnp.dot(ax, wf_ref[...], preferred_element_type=jnp.float32) + bih_ref[...]
        gh = jnp.dot(h_row, whh_ref[...], preferred_element_type=jnp.float32) + bhh_ref[...]
        # torch GRUCell gate order (r, z, n); gate slices fall on 128-lane boundaries.
        r = jax.nn.sigmoid(gi[:, 0 * hpad:1 * hpad] + gh[:, 0 * hpad:1 * hpad])
        z = jax.nn.sigmoid(gi[:, 1 * hpad:2 * hpad] + gh[:, 1 * hpad:2 * hpad])
        n = jnp.tanh(gi[:, 2 * hpad:3 * hpad] + r * gh[:, 2 * hpad:3 * hpad])
        h_new = (1.0 - z) * n + z * h_row
        if apply_relu:                             # activation only after the LAST layer
            h_new = jnp.maximum(h_new, 0.0)
        o_ref[...] = h_new


def gated_graph_layer(x, edge_index, params, *, out_feat, num_layers=1,
                      tm=512, tk=1024, adj_dtype=jnp.bfloat16):
    """Forward pass of GatedGraphLayer (GatedGraphConv + ReLU), one pallas_call per layer.

    x          : [N, in_feat] node features (in_feat <= out_feat, zero-padded as in PyG)
    edge_index : [2, E] int32 (src -> dst); aggr='add', edge_weight=None
    tm, tk     : A row / column tile sizes (power-of-two multiples of 128), capped to the
                 padded graph.  Defaults are sized to amortize per-grid-step overhead;
                 on v7x (3.2 TB/s HBM, 64 MiB VMEM) tk=2048 is a reasonable bump.
    adj_dtype  : jnp.bfloat16 (default) or jnp.int8 adjacency storage; both exact for
                 small integer edge multiplicities.
    """
    N, in_feat = x.shape
    H = out_feat
    L = num_layers
    assert in_feat <= H, "in_feat must be <= out_feat (PyG GatedGraphConv contract)"

    # ---- lane/sublane friendly padded sizes -------------------------------------
    Hp = _round_up(H, 128)                       # feature dim -> full 128-lane vregs
    np128 = _round_up(N, 128)
    TM = min(tm, np128)
    TK = min(tk, np128)
    Np = _round_up(N, max(TM, TK))
    assert Np % TM == 0 and Np % TK == 0, "tm/tk must be power-of-two multiples of 128"

    # ---- padded node features -----------------------------------------------------
    xp = jnp.zeros((Np, Hp), jnp.float32).at[:N, :in_feat].set(x.astype(jnp.float32))

    # ---- dense adjacency A[dst, src], built directly in the compact storage dtype ---
    src, dst = edge_index[0], edge_index[1]
    adj = jnp.zeros((Np, Np), adj_dtype).at[dst, src].add(jnp.ones(src.shape, adj_dtype))

    # ---- algebraic fusion of the per-layer weight into the GRU input projection -----
    hi_prec = jax.lax.Precision.HIGHEST
    W = params["weight"].astype(jnp.float32)               # [L, H, H]
    wih_t = params["weight_ih"].astype(jnp.float32).T      # [H, 3H]
    whh_t = params["weight_hh"].astype(jnp.float32).T      # [H, 3H]
    wf = jnp.einsum("lij,jk->lik", W, wih_t, precision=hi_prec)   # [L, H, 3H]

    # Re-lay the 3 GRU gates on 128-lane (Hp) blocks so in-kernel gate slices fall on
    # vreg boundaries; padded weight rows/cols are zero.
    wf_p = jnp.zeros((L, Hp, 3 * Hp), jnp.float32)
    whh_p = jnp.zeros((Hp, 3 * Hp), jnp.float32)
    bih_p = jnp.zeros((1, 3 * Hp), jnp.float32)
    bhh_p = jnp.zeros((1, 3 * Hp), jnp.float32)
    bih = params["bias_ih"].astype(jnp.float32)
    bhh = params["bias_hh"].astype(jnp.float32)
    for g in range(3):
        wf_p = wf_p.at[:, :H, g * Hp:g * Hp + H].set(wf[:, :, g * H:(g + 1) * H])
        whh_p = whh_p.at[:H, g * Hp:g * Hp + H].set(whh_t[:, g * H:(g + 1) * H])
        bih_p = bih_p.at[0, g * Hp:g * Hp + H].set(bih[g * H:(g + 1) * H])
        bhh_p = bhh_p.at[0, g * Hp:g * Hp + H].set(bhh[g * H:(g + 1) * H])

    ni, nk = Np // TM, Np // TK

    # ---- explicit scoped-VMEM budget (headroom, below v7x's 64 MiB physical VMEM) ---
    asize = jnp.dtype(adj_dtype).itemsize
    vmem_need = (2 * TM * TK * asize                 # A tile double buffer
                 + 2 * (TK + 2 * TM) * Hp * 4        # h_col / h_row / out double buffers
                 + 4 * Hp * 3 * Hp * 4               # fused-W / Whh double buffers
                 + TM * Hp * 4                       # accumulator
                 + (64 << 10))                       # biases + slack
    vmem_limit = int(min(max(2 * vmem_need, 16 << 20), 60 << 20))

    in_specs = [
        pl.BlockSpec((TK, Hp), lambda i, k: (k, 0)),        # h column tile (A @ h input)
        pl.BlockSpec((TM, Hp), lambda i, k: (i, 0)),        # h row tile (GRU carry)
        pl.BlockSpec((TM, TK), lambda i, k: (i, k)),        # adjacency tile (bf16/int8)
        pl.BlockSpec((Hp, 3 * Hp), lambda i, k: (0, 0)),    # fused W[l] @ Wih^T
        pl.BlockSpec((Hp, 3 * Hp), lambda i, k: (0, 0)),    # Whh^T
        pl.BlockSpec((1, 3 * Hp), lambda i, k: (0, 0)),     # bias_ih
        pl.BlockSpec((1, 3 * Hp), lambda i, k: (0, 0)),     # bias_hh
    ]
    out_spec = pl.BlockSpec((TM, Hp), lambda i, k: (i, 0))

    # One pallas_call per layer; h is carried between layers in HBM, so the row-tile
    # axis stays "parallel" on every layer (both v7x TensorCores usable even for L > 1).
    h = xp
    for l in range(L):
        kernel = functools.partial(_ggnn_layer_kernel, hpad=Hp,
                                   apply_relu=(l == L - 1))
        h = pl.pallas_call(
            kernel,
            out_shape=jax.ShapeDtypeStruct((Np, Hp), jnp.float32),
            grid_spec=pltpu.PrefetchScalarGridSpec(
                num_scalar_prefetch=0,
                grid=(ni, nk),
                in_specs=in_specs,
                out_specs=out_spec,
                scratch_shapes=[pltpu.VMEM((TM, Hp), jnp.float32)],
            ),
            compiler_params=pltpu.CompilerParams(
                dimension_semantics=("parallel", "arbitrary"),
                vmem_limit_bytes=vmem_limit,
            ),
        )(h, h, adj, wf_p[l], whh_p, bih_p, bhh_p)

    return h[:N, :H]


def _reference(x, edge_index, params, *, out_feat, num_layers=1):
    """Pure-JAX replica of the module forward (GatedGraphConv then ReLU), unfused f32."""
    N, in_feat = x.shape
    H = out_feat
    prec = jax.lax.Precision.HIGHEST
    h = jnp.pad(x.astype(jnp.float32), ((0, 0), (0, H - in_feat)))
    src, dst = edge_index[0], edge_index[1]
    for l in range(num_layers):
        m = jnp.dot(h, params["weight"][l], precision=prec)
        agg = jnp.zeros((N, H), jnp.float32).at[dst].add(m[src])
        gi = jnp.dot(agg, params["weight_ih"].T, precision=prec) + params["bias_ih"]
        gh = jnp.dot(h, params["weight_hh"].T, precision=prec) + params["bias_hh"]
        r = jax.nn.sigmoid(gi[:, :H] + gh[:, :H])
        z = jax.nn.sigmoid(gi[:, H:2 * H] + gh[:, H:2 * H])
        n = jnp.tanh(gi[:, 2 * H:] + r * gh[:, 2 * H:])
        h = (1.0 - z) * n + z * h
    return jnp.maximum(h, 0.0)     # activation applied once, after all layers


def init_params(key, out_feat, num_layers=1):
    """Deterministic synthetic parameter init (matches PyTorch shapes)."""
    H = out_feat
    k1, k2, k3, k4, k5 = jax.random.split(key, 5)
    s = 1.0 / jnp.sqrt(H)
    return {
        # GatedGraphConv.weight: [num_layers, H, H]
        "weight": jax.random.uniform(k1, (num_layers, H, H), jnp.float32, -s, s),
        # GRUCell params
        "weight_ih": jax.random.uniform(k2, (3 * H, H), jnp.float32, -s, s),
        "weight_hh": jax.random.uniform(k3, (3 * H, H), jnp.float32, -s, s),
        "bias_ih": jax.random.uniform(k4, (3 * H,), jnp.float32, -s, s),
        "bias_hh": jax.random.uniform(k5, (3 * H,), jnp.float32, -s, s),
    }


if __name__ == "__main__":
    key = jax.random.PRNGKey(0)
    k_x, k_e, k_p = jax.random.split(key, 3)

    N = 200          # graph nodes (padded to 256 inside the kernel)
    IN_FEAT = 20     # input feature dim (< out_feat -> zero padded, as in PyG)
    OUT_FEAT = 32    # hidden / output dim (padded to 128 lanes inside the kernel)
    E = 600          # directed edges

    x = jax.random.normal(k_x, (N, IN_FEAT), jnp.float32)
    edge_index = jax.random.randint(k_e, (2, E), 0, N, jnp.int32)

    # (num_layers, tm, tk, adj dtype):
    #  - single layer, big default tiles (capped to the 256-node padded graph)
    #  - 3 layers, 2x2 row/column tile grid exercising the k-axis accumulator + HBM carry
    #  - 2 layers, int8 adjacency storage with mixed tile sizes
    configs = [
        (1, 512, 1024, jnp.bfloat16),
        (3, 128, 128, jnp.bfloat16),
        (2, 128, 256, jnp.int8),
    ]
    for num_layers, tm, tk, adt in configs:
        params = init_params(k_p, OUT_FEAT, num_layers)
        out = gated_graph_layer(x, edge_index, params,
                                out_feat=OUT_FEAT, num_layers=num_layers,
                                tm=tm, tk=tk, adj_dtype=adt)
        out = jax.block_until_ready(out)
        ref = _reference(x, edge_index, params,
                         out_feat=OUT_FEAT, num_layers=num_layers)
        assert out.shape == (N, OUT_FEAT)
        # A @ h runs on the MXU in bf16 (h rounded to bf16, f32 accumulation) while the
        # reference is full f32 / HIGHEST; 2e-2 covers the multi-layer compounding.
        assert jnp.allclose(out, ref, atol=2e-2, rtol=2e-2), "mismatch vs reference"

    print("KERNEL_OK")
</pallas_src>

<mosaic_0001>
module attributes {stable_mosaic.version = 11 : i64} {
  func.func @_ggnn_layer_kernel(%arg0: i32, %arg1: i32, %arg2: memref<256x128xf32, #tpu.memory_space<vmem>>, %arg3: memref<256x128xf32, #tpu.memory_space<vmem>>, %arg4: memref<256x256xbf16, #tpu.memory_space<vmem>>, %arg5: memref<128x384xf32, #tpu.memory_space<vmem>>, %arg6: memref<128x384xf32, #tpu.memory_space<vmem>>, %arg7: memref<1x384xf32, #tpu.memory_space<vmem>>, %arg8: memref<1x384xf32, #tpu.memory_space<vmem>>, %arg9: memref<256x128xf32, #tpu.memory_space<vmem>>, %arg10: memref<256x128xf32, #tpu.memory_space<vmem>>) attributes {dimension_semantics = [#tpu.dimension_semantics<parallel>, #tpu.dimension_semantics<arbitrary>], iteration_bounds = array<i64: 1, 1>, scalar_prefetch = 0 : i64, scratch_operands = 1 : i64, tpu.core_type = #tpu.core_type<tc>, window_params = [{transform_indices = @transform_0, window_bounds = array<i64: 256, 128>}, {transform_indices = @transform_1, window_bounds = array<i64: 256, 128>}, {transform_indices = @transform_2, window_bounds = array<i64: 256, 256>}, {pipeline_mode = #tpu.pipeline_mode<synchronous>, transform_indices = @transform_3, window_bounds = array<i64: 128, 384>}, {pipeline_mode = #tpu.pipeline_mode<synchronous>, transform_indices = @transform_4, window_bounds = array<i64: 128, 384>}, {pipeline_mode = #tpu.pipeline_mode<synchronous>, transform_indices = @transform_5, window_bounds = array<i64: 1, 384>}, {pipeline_mode = #tpu.pipeline_mode<synchronous>, transform_indices = @transform_6, window_bounds = array<i64: 1, 384>}, {transform_indices = @transform_7, window_bounds = array<i64: 256, 128>}]} {
    %c0_i32 = arith.constant 0 : i32
    %0 = arith.cmpi eq, %arg1, %c0_i32 : i32
    %1 = arith.extui %0 : i1 to i32
    %c0_i32_0 = arith.constant 0 : i32
    %2 = arith.cmpi ne, %1, %c0_i32_0 : i32
    scf.if %2 {
      %cst_10 = arith.constant 0.000000e+00 : f32
      %13 = vector.broadcast %cst_10 : f32 to vector<256x128xf32>
      %c0_11 = arith.constant 0 : index
      %c0_12 = arith.constant 0 : index
      %14 = vector.load %arg10[%c0_11, %c0_12] : memref<256x128xf32, #tpu.memory_space<vmem>>, vector<256x128xf32>
      tpu.vector_store %arg10[%c0_11, %c0_12], %13 {strides = array<i32>} : memref<256x128xf32, #tpu.memory_space<vmem>>, vector<256x128xf32>,
    } else {
    }
    %c0 = arith.constant 0 : index
    %c0_1 = arith.constant 0 : index
    %3 = vector.load %arg4[%c0, %c0_1] : memref<256x256xbf16, #tpu.memory_space<vmem>>, vector<256x256xbf16>
    %c0_2 = arith.constant 0 : index
    %c0_3 = arith.constant 0 : index
    %4 = vector.load %arg2[%c0_2, %c0_3] : memref<256x128xf32, #tpu.memory_space<vmem>>, vector<256x128xf32>
    %5 = arith.truncf %4 : vector<256x128xf32> to vector<256x128xbf16>
    %c0_4 = arith.constant 0 : index
    %c0_5 = arith.constant 0 : index
    %6 = vector.load %arg10[%c0_4, %c0_5] : memref<256x128xf32, #tpu.memory_space<vmem>>, vector<256x128xf32>
    %cst = arith.constant dense<0.000000e+00> : vector<256x128xf32>
    %7 = tpu.matmul %3, %5, %cst {dimension_numbers = #tpu.dot_dimension_numbers<[1], [0], [0], [1], [0, 0, 1, 1], [], []>} : vector<256x256xbf16>, vector<256x128xbf16>, vector<256x128xf32> -> vector<256x128xf32>
    %8 = arith.addf %6, %7 : vector<256x128xf32>
    %c0_6 = arith.constant 0 : index
    %c0_7 = arith.constant 0 : index
    %9 = vector.load %arg10[%c0_6, %c0_7] : memref<256x128xf32, #tpu.memory_space<vmem>>, vector<256x128xf32>
    tpu.vector_store %arg10[%c0_6, %c0_7], %8 {strides = array<i32>} : memref<256x128xf32, #tpu.memory_space<vmem>>, vector<256x128xf32>,
    %c0_i32_8 = arith.constant 0 : i32
    %10 = arith.cmpi eq, %arg1, %c0_i32_8 : i32
    %11 = arith.extui %10 : i1 to i32
    %c0_i32_9 = arith.constant 0 : i32
    %12 = arith.cmpi ne, %11, %c0_i32_9 : i32
    scf.if %12 {
      %c0_10 = arith.constant 0 : index
      %c0_11 = arith.constant 0 : index
      %13 = vector.load %arg3[%c0_10, %c0_11] : memref<256x128xf32, #tpu.memory_space<vmem>>, vector<256x128xf32>
      %c0_12 = arith.constant 0 : index
      %c0_13 = arith.constant 0 : index
      %14 = vector.load %arg10[%c0_12, %c0_13] : memref<256x128xf32, #tpu.memory_space<vmem>>, vector<256x128xf32>
      %c0_14 = arith.constant 0 : index
      %c0_15 = arith.constant 0 : index
      %15 = vector.load %arg5[%c0_14, %c0_15] : memref<128x384xf32, #tpu.memory_space<vmem>>, vector<128x384xf32>
      %cst_16 = arith.constant dense<0.000000e+00> : vector<256x384xf32>
      %16 = tpu.matmul %14, %15, %cst_16 {dimension_numbers = #tpu.dot_dimension_numbers<[1], [0], [0], [1], [0, 0, 1, 1], [], []>} : vector<256x128xf32>, vector<128x384xf32>, vector<256x384xf32> -> vector<256x384xf32>
      %c0_17 = arith.constant 0 : index
      %c0_18 = arith.constant 0 : index
      %17 = vector.load %arg7[%c0_17, %c0_18] : memref<1x384xf32, #tpu.memory_space<vmem>>, vector<1x384xf32>
      %18 = vector.broadcast %17 : vector<1x384xf32> to vector<256x384xf32>
      %19 = arith.addf %16, %18 : vector<256x384xf32>
      %c0_19 = arith.constant 0 : index
      %c0_20 = arith.constant 0 : index
      %20 = vector.load %arg6[%c0_19, %c0_20] : memref<128x384xf32, #tpu.memory_space<vmem>>, vector<128x384xf32>
      %cst_21 = arith.constant dense<0.000000e+00> : vector<256x384xf32>
      %21 = tpu.matmul %13, %20, %cst_21 {dimension_numbers = #tpu.dot_dimension_numbers<[1], [0], [0], [1], [0, 0, 1, 1], [], []>} : vector<256x128xf32>, vector<128x384xf32>, vector<256x384xf32> -> vector<256x384xf32>
      %c0_22 = arith.constant 0 : index
      %c0_23 = arith.constant 0 : index
      %22 = vector.load %arg8[%c0_22, %c0_23] : memref<1x384xf32, #tpu.memory_space<vmem>>, vector<1x384xf32>
      %23 = vector.broadcast %22 : vector<1x384xf32> to vector<256x384xf32>
      %24 = arith.addf %21, %23 : vector<256x384xf32>
      %25 = vector.extract_strided_slice %19 {offsets = [0, 0], sizes = [256, 128], strides = [1, 1]} : vector<256x384xf32> to vector<256x128xf32>
      %26 = vector.extract_strided_slice %24 {offsets = [0, 0], sizes = [256, 128], strides = [1, 1]} : vector<256x384xf32> to vector<256x128xf32>
      %27 = arith.addf %25, %26 : vector<256x128xf32>
      %28 = arith.negf %27 : vector<256x128xf32>
      %29 = math.exp %28 : vector<256x128xf32>
      %cst_24 = arith.constant 1.000000e+00 : f32
      %30 = vector.broadcast %cst_24 : f32 to vector<256x128xf32>
      %31 = arith.addf %30, %29 : vector<256x128xf32>
      %32 = arith.divf %30, %31 : vector<256x128xf32>
      %33 = vector.extract_strided_slice %19 {offsets = [0, 128], sizes = [256, 128], strides = [1, 1]} : vector<256x384xf32> to vector<256x128xf32>
      %34 = vector.extract_strided_slice %24 {offsets = [0, 128], sizes = [256, 128], strides = [1, 1]} : vector<256x384xf32> to vector<256x128xf32>
      %35 = arith.addf %33, %34 : vector<256x128xf32>
      %36 = arith.negf %35 : vector<256x128xf32>
      %37 = math.exp %36 : vector<256x128xf32>
      %cst_25 = arith.constant 1.000000e+00 : f32
      %38 = vector.broadcast %cst_25 : f32 to vector<256x128xf32>
      %39 = arith.addf %38, %37 : vector<256x128xf32>
      %40 = arith.divf %38, %39 : vector<256x128xf32>
      %41 = vector.extract_strided_slice %19 {offsets = [0, 256], sizes = [256, 128], strides = [1, 1]} : vector<256x384xf32> to vector<256x128xf32>
      %42 = vector.extract_strided_slice %24 {offsets = [0, 256], sizes = [256, 128], strides = [1, 1]} : vector<256x384xf32> to vector<256x128xf32>
      %43 = arith.mulf %32, %42 : vector<256x128xf32>
      %44 = arith.addf %41, %43 : vector<256x128xf32>
      %45 = math.tanh %44 : vector<256x128xf32>
      %cst_26 = arith.constant 1.000000e+00 : f32
      %46 = vector.broadcast %cst_26 : f32 to vector<256x128xf32>
      %47 = arith.subf %46, %40 : vector<256x128xf32>
      %48 = arith.mulf %47, %45 : vector<256x128xf32>
      %49 = arith.mulf %40, %13 : vector<256x128xf32>
      %50 = arith.addf %48, %49 : vector<256x128xf32>
      %cst_27 = arith.constant 0.000000e+00 : f32
      %51 = vector.broadcast %cst_27 : f32 to vector<256x128xf32>
      %52 = arith.maximumf %50, %51 : vector<256x128xf32>
      %c0_28 = arith.constant 0 : index
      %c0_29 = arith.constant 0 : index
      %53 = vector.load %arg9[%c0_28, %c0_29] : memref<256x128xf32, #tpu.memory_space<vmem>>, vector<256x128xf32>
      tpu.vector_store %arg9[%c0_28, %c0_29], %52 {strides = array<i32>} : memref<256x128xf32, #tpu.memory_space<vmem>>, vector<256x128xf32>,
    } else {
    }
    return
  }
  func.func @transform_0(%arg0: i32, %arg1: i32) -> (i32, i32) {
    %c0_i32 = arith.constant 0 : i32
    %c0_i32_0 = arith.constant 0 : i32
    return %arg1, %c0_i32 : i32, i32
  }
  func.func @transform_1(%arg0: i32, %arg1: i32) -> (i32, i32) {
    %c0_i32 = arith.constant 0 : i32
    %c0_i32_0 = arith.constant 0 : i32
    return %arg0, %c0_i32 : i32, i32
  }
  func.func @transform_2(%arg0: i32, %arg1: i32) -> (i32, i32) {
    %c0_i32 = arith.constant 0 : i32
    return %arg0, %arg1 : i32, i32
  }
  func.func @transform_3(%arg0: i32, %arg1: i32) -> (i32, i32) {
    %c0_i32 = arith.constant 0 : i32
    %c0_i32_0 = arith.constant 0 : i32
    %c0_i32_1 = arith.constant 0 : i32
    return %c0_i32, %c0_i32_0 : i32, i32
  }
  func.func @transform_4(%arg0: i32, %arg1: i32) -> (i32, i32) {
    %c0_i32 = arith.constant 0 : i32
    %c0_i32_0 = arith.constant 0 : i32
    %c0_i32_1 = arith.constant 0 : i32
    return %c0_i32, %c0_i32_0 : i32, i32
  }
  func.func @transform_5(%arg0: i32, %arg1: i32) -> (i32, i32) {
    %c0_i32 = arith.constant 0 : i32
    %c0_i32_0 = arith.constant 0 : i32
    %c0_i32_1 = arith.constant 0 : i32
    return %c0_i32, %c0_i32_0 : i32, i32
  }
  func.func @transform_6(%arg0: i32, %arg1: i32) -> (i32, i32) {
    %c0_i32 = arith.constant 0 : i32
    %c0_i32_0 = arith.constant 0 : i32
    %c0_i32_1 = arith.constant 0 : i32
    return %c0_i32, %c0_i32_0 : i32, i32
  }
  func.func @transform_7(%arg0: i32, %arg1: i32) -> (i32, i32) {
    %c0_i32 = arith.constant 0 : i32
    %c0_i32_0 = arith.constant 0 : i32
    return %arg0, %c0_i32 : i32, i32
  }
}

</mosaic_0001>

<llo_original>
// kernel: tpu_custom_call.1
$region0: #{tpu_custom_call.1}
  #allocation0 [shape = 'u32[]', space=smem, size = 0x4, offset = 0x4, fixed_abs, tag = 'smem constant byte address 0x4 - core index']
  #allocation1 [shape = 'u32[72,128]{1,0:T(1,128)}', space=vmem, size = 0x9000, scoped, tag = 'internal scratch']
  #allocation2 [shape = 'f32[256,128]{1,0:T(8,128)}', space=vmem, size = 0x20000, scoped, tag = 'scratch operand']
  %s0 = inlined_call_operand.hbm [shape: f32[256,128], index: 0, kind: input, shape index: {}]
  %s1 = inlined_call_operand.hbm [shape: f32[256,128], index: 1, kind: input, shape index: {}]
  %s2 = inlined_call_operand.hbm [shape: bf16[256,256], index: 2, kind: input, shape index: {}]
  %s3 = inlined_call_operand.hbm [shape: f32[128,384], index: 3, kind: input, shape index: {}]
  %s4 = inlined_call_operand.hbm [shape: f32[128,384], index: 4, kind: input, shape index: {}]
  %s5 = inlined_call_operand.vmem [shape: f32[1,384], index: 5, kind: input, shape index: {}]
  %s6 = inlined_call_operand.hbm [shape: f32[1,384], index: 6, kind: input, shape index: {}]
  %s7 = inlined_call_operand.hbm [shape: f32[256,128], index: 7, kind: output, shape index: {}]
  %s8 = sld [smem:[#allocation0]]
  $region70: #{tpu_custom_call.1} parent=0
    _
  %s10 = ssub.s32 1, %s8
  %s11 = scalar_select 0, %s10, %s8
  $region1: #{tpu_custom_call.1} parent=0
    #allocation3 [shape = 'u8[131072]{0}', space=vmem, size = 0x20000, scoped, tag = 'input window, operand 0, single buffered']
    #allocation4 [shape = 's32[1]{0}', space=sflag, size = 0x4, scoped, tag = 'scoped memory for tpu_custom_call.1']
    #allocation5 [shape = 's32[1]{0}', space=sflag, size = 0x4, scoped, tag = 'scoped memory for tpu_custom_call.1']
    #allocation6 [shape = 'u8[131072]{0}', space=vmem, size = 0x20000, scoped, tag = 'input window, operand 1, single buffered']
    #allocation7 [shape = 's32[1]{0}', space=sflag, size = 0x4, scoped, tag = 'scoped memory for tpu_custom_call.1']
    #allocation8 [shape = 'u8[131072]{0}', space=vmem, size = 0x20000, scoped, tag = 'input window, operand 2, single buffered']
    #allocation9 [shape = 'u8[196608]{0}', space=vmem, size = 0x30000, scoped, tag = 'input window, operand 3, single buffered']
    #allocation10 [shape = 's32[1]{0}', space=sflag, size = 0x4, scoped, tag = 'scoped memory for tpu_custom_call.1']
    #allocation11 [shape = 'u8[196608]{0}', space=vmem, size = 0x30000, scoped, tag = 'input window, operand 4, single buffered']
    #allocation12 [shape = 'u8[1536]{0}', space=vmem, size = 0x800, scoped, tag = 'input window, operand 6, single buffered']
    #allocation13 [shape = 's32[1]{0}', space=sflag, size = 0x4, scoped, tag = 'scoped memory for tpu_custom_call.1']
    #allocation14 [shape = 'u8[131072]{0}', space=vmem, size = 0x20000, scoped, tag = 'output window, operand 0, single buffered']
    %12 = vsyncpa [#allocation4], 0
    %13 = vsyncpa [#allocation7], 0
    %14 = vsyncpa [#allocation10], 0
    %15 = vsyncpa [#allocation13], 0
    %16 = vsyncpa [#allocation5], 0
    // Predicated region
    $region2: #{tpu_custom_call.1} parent=1 // pred_check
      _
    $region3: #{tpu_custom_call.1} parent=1 // pred_check_branch
      %18 = sbr.rel (0) target = $region5
    $region4: #{tpu_custom_call.1} parent=1 // pred_region
      %20 = vsyncadd [#allocation4], 0
      %s21 = sshll.u32 %s0, 4
      %s22 = int_to_ptr.hbm [resolvable:$true] %s21
      %s23 = sshll.u32 [#allocation3], 4
      %s24 = int_to_ptr.vmem [resolvable:$true] %s23
      %29 = dma.hbm_to_vmem [thread:$0]  %s22, 4096, %s24, [#allocation4], 128, 128, 8
    $region5: #{tpu_custom_call.1} parent=1 // pred_fallthru
      _
    // Predicated region
    $region6: #{tpu_custom_call.1} parent=1 // pred_check
      _
    $region7: #{tpu_custom_call.1} parent=1 // pred_check_branch
      %31 = sbr.rel (0) target = $region9
    $region8: #{tpu_custom_call.1} parent=1 // pred_region
      %33 = vsyncadd [#allocation7], 0
      %s34 = sshll.u32 %s1, 4
      %s35 = int_to_ptr.hbm [resolvable:$true] %s34
      %s36 = sshll.u32 [#allocation6], 4
      %s37 = int_to_ptr.vmem [resolvable:$true] %s36
      %42 = dma.hbm_to_vmem [thread:$0]  %s35, 4096, %s37, [#allocation7], 128, 128, 8
    $region9: #{tpu_custom_call.1} parent=1 // pred_fallthru
      _
    // Predicated region
    $region10: #{tpu_custom_call.1} parent=1 // pred_check
      _
    $region11: #{tpu_custom_call.1} parent=1 // pred_check_branch
      %44 = sbr.rel (0) target = $region13
    $region12: #{tpu_custom_call.1} parent=1 // pred_region
      %46 = vsyncadd [#allocation7], 0
      %s47 = sshll.u32 %s2, 4
      %s48 = int_to_ptr.hbm [resolvable:$true] %s47
      %s49 = sshll.u32 [#allocation8], 4
      %s50 = int_to_ptr.vmem [resolvable:$true] %s49
      %55 = dma.hbm_to_vmem [thread:$0]  %s48, 4096, %s50, [#allocation7], 128, 128, 8
    $region13: #{tpu_custom_call.1} parent=1 // pred_fallthru
      _
    // Predicated region
    $region14: #{tpu_custom_call.1} parent=1 // pred_check
      _
    $region15: #{tpu_custom_call.1} parent=1 // pred_check_branch
      %57 = sbr.rel (0) target = $region17
    $region16: #{tpu_custom_call.1} parent=1 // pred_region
      %59 = vsyncadd [#allocation10], 0
      %s60 = sshll.u32 %s3, 4
      %s61 = int_to_ptr.hbm [resolvable:$true] %s60
      %s62 = sshll.u32 [#allocation9], 4
      %s63 = int_to_ptr.vmem [resolvable:$true] %s62
      %68 = dma.hbm_to_vmem [thread:$0]  %s61, 6144, %s63, [#allocation10], 384, 384, 24
    $region17: #{tpu_custom_call.1} parent=1 // pred_fallthru
      _
    // Predicated region
    $region18: #{tpu_custom_call.1} parent=1 // pred_check
      _
    $region19: #{tpu_custom_call.1} parent=1 // pred_check_branch
      %70 = sbr.rel (0) target = $region21
    $region20: #{tpu_custom_call.1} parent=1 // pred_region
      %72 = vsyncadd [#allocation10], 0
      %s73 = sshll.u32 %s4, 4
      %s74 = int_to_ptr.hbm [resolvable:$true] %s73
      %s75 = sshll.u32 [#allocation11], 4
      %s76 = int_to_ptr.vmem [resolvable:$true] %s75
      %81 = dma.hbm_to_vmem [thread:$0]  %s74, 6144, %s76, [#allocation10], 384, 384, 24
    $region21: #{tpu_custom_call.1} parent=1 // pred_fallthru
      _
    // Predicated region
    $region22: #{tpu_custom_call.1} parent=1 // pred_check
      _
    $region23: #{tpu_custom_call.1} parent=1 // pred_check_branch
      %83 = sbr.rel (0) target = $region25
    $region24: #{tpu_custom_call.1} parent=1 // pred_region
      _
    $region25: #{tpu_custom_call.1} parent=1 // pred_fallthru
      _
    // Predicated region
    $region26: #{tpu_custom_call.1} parent=1 // pred_check
      _
    $region27: #{tpu_custom_call.1} parent=1 // pred_check_branch
      %85 = sbr.rel (0) target = $region29
    $region28: #{tpu_custom_call.1} parent=1 // pred_region
      %87 = vsyncadd [#allocation13], 0
      %s89 = sshll.u32 %s6, 4
      %s90 = int_to_ptr.hbm [resolvable:$true] %s89
      %s91 = sshll.u32 [#allocation12], 4
      %s92 = int_to_ptr.vmem [resolvable:$true] %s91
      %94 = dma.hbm_to_vmem [thread:$0]  %s90, 48, %s92, [#allocation13]
    $region29: #{tpu_custom_call.1} parent=1 // pred_fallthru
      _
    // Predicated region
    $region30: #{tpu_custom_call.1} parent=1 // pred_check
      _
    $region31: #{tpu_custom_call.1} parent=1 // pred_check_branch
      %96 = sbr.rel (0) target = $region33
    $region32: #{tpu_custom_call.1} parent=1 // pred_region
      %98 = dma.done [#allocation4], 4096
    $region33: #{tpu_custom_call.1} parent=1 // pred_fallthru
      _
    // Predicated region
    $region34: #{tpu_custom_call.1} parent=1 // pred_check
      _
    $region35: #{tpu_custom_call.1} parent=1 // pred_check_branch
      %100 = sbr.rel (0) target = $region37
    $region36: #{tpu_custom_call.1} parent=1 // pred_region
      %102 = dma.done [#allocation7], 4096
    $region37: #{tpu_custom_call.1} parent=1 // pred_fallthru
      _
    // Predicated region
    $region38: #{tpu_custom_call.1} parent=1 // pred_check
      _
    $region39: #{tpu_custom_call.1} parent=1 // pred_check_branch
      %104 = sbr.rel (0) target = $region41
    $region40: #{tpu_custom_call.1} parent=1 // pred_region
      %106 = dma.done [#allocation7], 4096
    $region41: #{tpu_custom_call.1} parent=1 // pred_fallthru
      _
    // Predicated region
    $region42: #{tpu_custom_call.1} parent=1 // pred_check
      _
    $region43: #{tpu_custom_call.1} parent=1 // pred_check_branch
      %108 = sbr.rel (0) target = $region45
    $region44: #{tpu_custom_call.1} parent=1 // pred_region
      %110 = dma.done [#allocation10], 6144
    $region45: #{tpu_custom_call.1} parent=1 // pred_fallthru
      _
    // Predicated region
    $region46: #{tpu_custom_call.1} parent=1 // pred_check
      _
    $region47: #{tpu_custom_call.1} parent=1 // pred_check_branch
      %112 = sbr.rel (0) target = $region49
    $region48: #{tpu_custom_call.1} parent=1 // pred_region
      %114 = dma.done [#allocation10], 6144
    $region49: #{tpu_custom_call.1} parent=1 // pred_fallthru
      _
    // Predicated region
    $region50: #{tpu_custom_call.1} parent=1 // pred_check
      _
    $region51: #{tpu_custom_call.1} parent=1 // pred_check_branch
      %116 = sbr.rel (0) target = $region53
    $region52: #{tpu_custom_call.1} parent=1 // pred_region
      %118 = dma.done [#allocation13], 48
    $region53: #{tpu_custom_call.1} parent=1 // pred_fallthru
      _
    %p119 = scmp.eq.s32.totalorder 0, 0
    // Predicated region
    $region54: #{tpu_custom_call.1} parent=1 // pred_check
      %p120 = pneg %p119
    $region55: #{tpu_custom_call.1} parent=1 // pred_check_branch
      %122 = sbr.rel (%p120) target = $region57
    $region56: #{tpu_custom_call.1} parent=1 // pred_region
      %123 = vst [vmem:[#allocation2] sm:$0xff] 0.0
      %124 = vst [vmem:[#allocation2 + $0x8] sm:$0xff] 0.0
      %125 = vst [vmem:[#allocation2 + $0x10] sm:$0xff] 0.0
      %126 = vst [vmem:[#allocation2 + $0x18] sm:$0xff] 0.0
      %127 = vst [vmem:[#allocation2 + $0x20] sm:$0xff] 0.0
      %128 = vst [vmem:[#allocation2 + $0x28] sm:$0xff] 0.0
      %129 = vst [vmem:[#allocation2 + $0x30] sm:$0xff] 0.0
      %130 = vst [vmem:[#allocation2 + $0x38] sm:$0xff] 0.0
      %131 = vst [vmem:[#allocation2 + $0x40] sm:$0xff] 0.0
      %132 = vst [vmem:[#allocation2 + $0x48] sm:$0xff] 0.0
      %133 = vst [vmem:[#allocation2 + $0x50] sm:$0xff] 0.0
      %134 = vst [vmem:[#allocation2 + $0x58] sm:$0xff] 0.0
      %135 = vst [vmem:[#allocation2 + $0x60] sm:$0xff] 0.0
      %136 = vst [vmem:[#allocation2 + $0x68] sm:$0xff] 0.0
      %137 = vst [vmem:[#allocation2 + $0x70] sm:$0xff] 0.0
      %138 = vst [vmem:[#allocation2 + $0x78] sm:$0xff] 0.0
      %139 = vst [vmem:[#allocation2 + $0x80] sm:$0xff] 0.0
      %140 = vst [vmem:[#allocation2 + $0x88] sm:$0xff] 0.0
      %141 = vst [vmem:[#allocation2 + $0x90] sm:$0xff] 0.0
      %142 = vst [vmem:[#allocation2 + $0x98] sm:$0xff] 0.0
      %143 = vst [vmem:[#allocation2 + $0xa0] sm:$0xff] 0.0
      %144 = vst [vmem:[#allocation2 + $0xa8] sm:$0xff] 0.0
      %145 = vst [vmem:[#allocation2 + $0xb0] sm:$0xff] 0.0
      %146 = vst [vmem:[#allocation2 + $0xb8] sm:$0xff] 0.0
      %147 = vst [vmem:[#allocation2 + $0xc0] sm:$0xff] 0.0
      %148 = vst [vmem:[#allocation2 + $0xc8] sm:$0xff] 0.0
      %149 = vst [vmem:[#allocation2 + $0xd0] sm:$0xff] 0.0
      %150 = vst [vmem:[#allocation2 + $0xd8] sm:$0xff] 0.0
      %151 = vst [vmem:[#allocation2 + $0xe0] sm:$0xff] 0.0
      %152 = vst [vmem:[#allocation2 + $0xe8] sm:$0xff] 0.0
      %153 = vst [vmem:[#allocation2 + $0xf0] sm:$0xff] 0.0
      %154 = vst [vmem:[#allocation2 + $0xf8] sm:$0xff] 0.0
    $region57: #{tpu_custom_call.1} parent=1 // pred_fallthru
      _
    %v155 = vld [vmem:[#allocation8] sm:$0xff]
    %v156 = vld [vmem:[#allocation8 + $0x8] sm:$0xff]
    %v157 = vld [vmem:[#allocation8 + $0x10] sm:$0xff]
    %v158 = vld [vmem:[#allocation8 + $0x18] sm:$0xff]
    %v159 = vld [vmem:[#allocation8 + $0x20] sm:$0xff]
    %v160 = vld [vmem:[#allocation8 + $0x28] sm:$0xff]
    %v161 = vld [vmem:[#allocation8 + $0x30] sm:$0xff]
    %v162 = vld [vmem:[#allocation8 + $0x38] sm:$0xff]
    %v163 = vld [vmem:[#allocation8 + $0x40] sm:$0xff]
    %v164 = vld [vmem:[#allocation8 + $0x48] sm:$0xff]
    %v165 = vld [vmem:[#allocation8 + $0x50] sm:$0xff]
    %v166 = vld [vmem:[#allocation8 + $0x58] sm:$0xff]
    %v167 = vld [vmem:[#allocation8 + $0x60] sm:$0xff]
    %v168 = vld [vmem:[#allocation8 + $0x68] sm:$0xff]
    %v169 = vld [vmem:[#allocation8 + $0x70] sm:$0xff]
    %v170 = vld [vmem:[#allocation8 + $0x78] sm:$0xff]
    %v171 = vld [vmem:[#allocation8 + $0x80] sm:$0xff]
    %v172 = vld [vmem:[#allocation8 + $0x88] sm:$0xff]
    %v173 = vld [vmem:[#allocation8 + $0x90] sm:$0xff]
    %v174 = vld [vmem:[#allocation8 + $0x98] sm:$0xff]
    %v175 = vld [vmem:[#allocation8 + $0xa0] sm:$0xff]
    %v176 = vld [vmem:[#allocation8 + $0xa8] sm:$0xff]
    %v177 = vld [vmem:[#allocation8 + $0xb0] sm:$0xff]
    %v178 = vld [vmem:[#allocation8 + $0xb8] sm:$0xff]
    %v179 = vld [vmem:[#allocation8 + $0xc0] sm:$0xff]
    %v180 = vld [vmem:[#allocation8 + $0xc8] sm:$0xff]
    %v181 = vld [vmem:[#allocation8 + $0xd0] sm:$0xff]
    %v182 = vld [vmem:[#allocation8 + $0xd8] sm:$0xff]
    %v183 = vld [vmem:[#allocation8 + $0xe0] sm:$0xff]
    %v184 = vld [vmem:[#allocation8 + $0xe8] sm:$0xff]
    %v185 = vld [vmem:[#allocation8 + $0xf0] sm:$0xff]
    %v186 = vld [vmem:[#allocation8 + $0xf8] sm:$0xff]
    %v187 = vld [vmem:[#allocation3] sm:$0xff]
    %v188 = vld [vmem:[#allocation3 + $0x8] sm:$0xff]
    %v189 = vld [vmem:[#allocation3 + $0x10] sm:$0xff]
    %v190 = vld [vmem:[#allocation3 + $0x18] sm:$0xff]
    %v191 = vld [vmem:[#allocation3 + $0x20] sm:$0xff]
    %v192 = vld [vmem:[#allocation3 + $0x28] sm:$0xff]
    %v193 = vld [vmem:[#allocation3 + $0x30] sm:$0xff]
    %v194 = vld [vmem:[#allocation3 + $0x38] sm:$0xff]
    %v195 = vld [vmem:[#allocation3 + $0x40] sm:$0xff]
    %v196 = vld [vmem:[#allocation3 + $0x48] sm:$0xff]
    %v197 = vld [vmem:[#allocation3 + $0x50] sm:$0xff]
    %v198 = vld [vmem:[#allocation3 + $0x58] sm:$0xff]
    %v199 = vld [vmem:[#allocation3 + $0x60] sm:$0xff]
    %v200 = vld [vmem:[#allocation3 + $0x68] sm:$0xff]
    %v201 = vld [vmem:[#allocation3 + $0x70] sm:$0xff]
    %v202 = vld [vmem:[#allocation3 + $0x78] sm:$0xff]
    %v203 = vld [vmem:[#allocation3 + $0x80] sm:$0xff]
    %v204 = vld [vmem:[#allocation3 + $0x88] sm:$0xff]
    %v205 = vld [vmem:[#allocation3 + $0x90] sm:$0xff]
    %v206 = vld [vmem:[#allocation3 + $0x98] sm:$0xff]
    %v207 = vld [vmem:[#allocation3 + $0xa0] sm:$0xff]
    %v208 = vld [vmem:[#allocation3 + $0xa8] sm:$0xff]
    %v209 = vld [vmem:[#allocation3 + $0xb0] sm:$0xff]
    %v210 = vld [vmem:[#allocation3 + $0xb8] sm:$0xff]
    %v211 = vld [vmem:[#allocation3 + $0xc0] sm:$0xff]
    %v212 = vld [vmem:[#allocation3 + $0xc8] sm:$0xff]
    %v213 = vld [vmem:[#allocation3 + $0xd0] sm:$0xff]
    %v214 = vld [vmem:[#allocation3 + $0xd8] sm:$0xff]
    %v215 = vld [vmem:[#allocation3 + $0xe0] sm:$0xff]
    %v216 = vld [vmem:[#allocation3 + $0xe8] sm:$0xff]
    %v217 = vld [vmem:[#allocation3 + $0xf0] sm:$0xff]
    %v218 = vld [vmem:[#allocation3 + $0xf8] sm:$0xff]
    %v219 = vpack.c.bf16 %v188, %v187
    %v220 = vpack.c.bf16 %v190, %v189
    %v221 = vpack.c.bf16 %v192, %v191
    %v222 = vpack.c.bf16 %v194, %v193
    %v223 = vpack.c.bf16 %v196, %v195
    %v224 = vpack.c.bf16 %v198, %v197
    %v225 = vpack.c.bf16 %v200, %v199
    %v226 = vpack.c.bf16 %v202, %v201
    %v227 = vpack.c.bf16 %v204, %v203
    %v228 = vpack.c.bf16 %v206, %v205
    %v229 = vpack.c.bf16 %v208, %v207
    %v230 = vpack.c.bf16 %v210, %v209
    %v231 = vpack.c.bf16 %v212, %v211
    %v232 = vpack.c.bf16 %v214, %v213
    %v233 = vpack.c.bf16 %v216, %v215
    %v234 = vpack.c.bf16 %v218, %v217
    %v235 = vld [vmem:[#allocation2] sm:$0xff]
    %v236 = vld [vmem:[#allocation2 + $0x8] sm:$0xff]
    %v237 = vld [vmem:[#allocation2 + $0x10] sm:$0xff]
    %v238 = vld [vmem:[#allocation2 + $0x18] sm:$0xff]
    %v239 = vld [vmem:[#allocation2 + $0x20] sm:$0xff]
    %v240 = vld [vmem:[#allocation2 + $0x28] sm:$0xff]
    %v241 = vld [vmem:[#allocation2 + $0x30] sm:$0xff]
    %v242 = vld [vmem:[#allocation2 + $0x38] sm:$0xff]
    %v243 = vld [vmem:[#allocation2 + $0x40] sm:$0xff]
    %v244 = vld [vmem:[#allocation2 + $0x48] sm:$0xff]
    %v245 = vld [vmem:[#allocation2 + $0x50] sm:$0xff]
    %v246 = vld [vmem:[#allocation2 + $0x58] sm:$0xff]
    %v247 = vld [vmem:[#allocation2 + $0x60] sm:$0xff]
    %v248 = vld [vmem:[#allocation2 + $0x68] sm:$0xff]
    %v249 = vld [vmem:[#allocation2 + $0x70] sm:$0xff]
    %v250 = vld [vmem:[#allocation2 + $0x78] sm:$0xff]
    %v251 = vld [vmem:[#allocation2 + $0x80] sm:$0xff]
    %v252 = vld [vmem:[#allocation2 + $0x88] sm:$0xff]
    %v253 = vld [vmem:[#allocation2 + $0x90] sm:$0xff]
    %v254 = vld [vmem:[#allocation2 + $0x98] sm:$0xff]
    %v255 = vld [vmem:[#allocation2 + $0xa0] sm:$0xff]
    %v256 = vld [vmem:[#allocation2 + $0xa8] sm:$0xff]
    %v257 = vld [vmem:[#allocation2 + $0xb0] sm:$0xff]
    %v258 = vld [vmem:[#allocation2 + $0xb8] sm:$0xff]
    %v259 = vld [vmem:[#allocation2 + $0xc0] sm:$0xff]
    %v260 = vld [vmem:[#allocation2 + $0xc8] sm:$0xff]
    %v261 = vld [vmem:[#allocation2 + $0xd0] sm:$0xff]
    %v262 = vld [vmem:[#allocation2 + $0xd8] sm:$0xff]
    %v263 = vld [vmem:[#allocation2 + $0xe0] sm:$0xff]
    %v264 = vld [vmem:[#allocation2 + $0xe8] sm:$0xff]
    %v265 = vld [vmem:[#allocation2 + $0xf0] sm:$0xff]
    %v266 = vld [vmem:[#allocation2 + $0xf8] sm:$0xff]
    %v299 = vunpack.c.l.b16 %v155
    %v300 = vunpack.c.h.b16 %v155
    %v301 = vunpack.c.l.b16 %v156
    %v302 = vunpack.c.h.b16 %v156
    %v303 = vunpack.c.l.b16 %v157
    %v304 = vunpack.c.h.b16 %v157
    %v305 = vunpack.c.l.b16 %v158
    %v306 = vunpack.c.h.b16 %v158
    %v307 = vunpack.c.l.b16 %v159
    %v308 = vunpack.c.h.b16 %v159
    %v309 = vunpack.c.l.b16 %v160
    %v310 = vunpack.c.h.b16 %v160
    %v311 = vunpack.c.l.b16 %v161
    %v312 = vunpack.c.h.b16 %v161
    %v313 = vunpack.c.l.b16 %v162
    %v314 = vunpack.c.h.b16 %v162
    %v315 = vunpack.c.l.b16 %v163
    %v316 = vunpack.c.h.b16 %v163
    %v317 = vunpack.c.l.b16 %v164
    %v318 = vunpack.c.h.b16 %v164
    %v319 = vunpack.c.l.b16 %v165
    %v320 = vunpack.c.h.b16 %v165
    %v321 = vunpack.c.l.b16 %v166
    %v322 = vunpack.c.h.b16 %v166
    %v323 = vunpack.c.l.b16 %v167
    %v324 = vunpack.c.h.b16 %v167
    %v325 = vunpack.c.l.b16 %v168
    %v326 = vunpack.c.h.b16 %v168
    %v327 = vunpack.c.l.b16 %v169
    %v328 = vunpack.c.h.b16 %v169
    %v329 = vunpack.c.l.b16 %v170
    %v330 = vunpack.c.h.b16 %v170
    %v331 = vunpack.c.l.b16 %v171
    %v332 = vunpack.c.h.b16 %v171
    %v333 = vunpack.c.l.b16 %v172
    %v334 = vunpack.c.h.b16 %v172
    %v335 = vunpack.c.l.b16 %v173
    %v336 = vunpack.c.h.b16 %v173
    %v337 = vunpack.c.l.b16 %v174
    %v338 = vunpack.c.h.b16 %v174
    %v339 = vunpack.c.l.b16 %v175
    %v340 = vunpack.c.h.b16 %v175
    %v341 = vunpack.c.l.b16 %v176
    %v342 = vunpack.c.h.b16 %v176
    %v343 = vunpack.c.l.b16 %v177
    %v344 = vunpack.c.h.b16 %v177
    %v345 = vunpack.c.l.b16 %v178
    %v346 = vunpack.c.h.b16 %v178
    %v347 = vunpack.c.l.b16 %v179
    %v348 = vunpack.c.h.b16 %v179
    %v349 = vunpack.c.l.b16 %v180
    %v350 = vunpack.c.h.b16 %v180
    %v351 = vunpack.c.l.b16 %v181
    %v352 = vunpack.c.h.b16 %v181
    %v353 = vunpack.c.l.b16 %v182
    %v354 = vunpack.c.h.b16 %v182
    %v355 = vunpack.c.l.b16 %v183
    %v356 = vunpack.c.h.b16 %v183
    %v357 = vunpack.c.l.b16 %v184
    %v358 = vunpack.c.h.b16 %v184
    %v359 = vunpack.c.l.b16 %v185
    %v360 = vunpack.c.h.b16 %v185
    %v361 = vunpack.c.l.b16 %v186
    %v362 = vunpack.c.h.b16 %v186
    %v363 = vpack.c.b16 %v301, %v299
    %v364 = vpack.c.b16 %v302, %v300
    %v365 = vpack.c.b16 %v305, %v303
    %v366 = vpack.c.b16 %v306, %v304
    %v367 = vpack.c.b16 %v309, %v307
    %v368 = vpack.c.b16 %v310, %v308
    %v369 = vpack.c.b16 %v313, %v311
    %v370 = vpack.c.b16 %v314, %v312
    %v371 = vpack.c.b16 %v317, %v315
    %v372 = vpack.c.b16 %v318, %v316
    %v373 = vpack.c.b16 %v321, %v319
    %v374 = vpack.c.b16 %v322, %v320
    %v375 = vpack.c.b16 %v325, %v323
    %v376 = vpack.c.b16 %v326, %v324
    %v377 = vpack.c.b16 %v329, %v327
    %v378 = vpack.c.b16 %v330, %v328
    %v379 = vpack.c.b16 %v333, %v331
    %v380 = vpack.c.b16 %v334, %v332
    %v381 = vpack.c.b16 %v337, %v335
    %v382 = vpack.c.b16 %v338, %v336
    %v383 = vpack.c.b16 %v341, %v339
    %v384 = vpack.c.b16 %v342, %v340
    %v385 = vpack.c.b16 %v345, %v343
    %v386 = vpack.c.b16 %v346, %v344
    %v387 = vpack.c.b16 %v349, %v347
    %v388 = vpack.c.b16 %v350, %v348
    %v389 = vpack.c.b16 %v353, %v351
    %v390 = vpack.c.b16 %v354, %v352
    %v391 = vpack.c.b16 %v357, %v355
    %v392 = vpack.c.b16 %v358, %v356
    %v393 = vpack.c.b16 %v361, %v359
    %v394 = vpack.c.b16 %v362, %v360
    %427 = vmatpush.bf16.msra.mxu0 %v226
    %428 = vmatpush.bf16.msra.mxu0 %v225
    %429 = vmatpush.bf16.msra.mxu0 %v224
    %430 = vmatpush.bf16.msra.mxu0 %v223
    %431 = vmatpush.bf16.msra.mxu0 %v222
    %432 = vmatpush.bf16.msra.mxu0 %v221
    %433 = vmatpush.bf16.msra.mxu0 %v220
    %434 = vmatpush.bf16.msra.mxu0 %v219
    %435 = vmatmul.bf16.gmra.mxu0 %v363
    %v436 = vpop.f32.mrf.mxu0
    %v437 = vadd.f32 0.0, %v436
    %v438 = vpop.f32.mrf.mxu0
    %v439 = vadd.f32 0.0, %v438
    %440 = vmatmul.bf16.gmra.mxu0 %v365
    %v441 = vpop.f32.mrf.mxu0
    %v442 = vadd.f32 0.0, %v441
    %v443 = vpop.f32.mrf.mxu0
    %v444 = vadd.f32 0.0, %v443
    %445 = vmatmul.bf16.gmra.mxu0 %v367
    %v446 = vpop.f32.mrf.mxu0
    %v447 = vadd.f32 0.0, %v446
    %v448 = vpop.f32.mrf.mxu0
    %v449 = vadd.f32 0.0, %v448
    %450 = vmatmul.bf16.gmra.mxu0 %v369
    %v451 = vpop.f32.mrf.mxu0
    %v452 = vadd.f32 0.0, %v451
    %v453 = vpop.f32.mrf.mxu0
    %v454 = vadd.f32 0.0, %v453
    %455 = vmatmul.bf16.gmra.mxu0 %v371
    %v456 = vpop.f32.mrf.mxu0
    %v457 = vadd.f32 0.0, %v456
    %v458 = vpop.f32.mrf.mxu0
    %v459 = vadd.f32 0.0, %v458
    %460 = vmatmul.bf16.gmra.mxu0 %v373
    %v461 = vpop.f32.mrf.mxu0
    %v462 = vadd.f32 0.0, %v461
    %v463 = vpop.f32.mrf.mxu0
    %v464 = vadd.f32 0.0, %v463
    %465 = vmatmul.bf16.gmra.mxu0 %v375
    %v466 = vpop.f32.mrf.mxu0
    %v467 = vadd.f32 0.0, %v466
    %v468 = vpop.f32.mrf.mxu0
    %v469 = vadd.f32 0.0, %v468
    %470 = vmatmul.bf16.gmra.mxu0 %v377
    %v471 = vpop.f32.mrf.mxu0
    %v472 = vadd.f32 0.0, %v471
    %v473 = vpop.f32.mrf.mxu0
    %v474 = vadd.f32 0.0, %v473
    %475 = vmatmul.bf16.gmra.mxu0 %v379
    %v476 = vpop.f32.mrf.mxu0
    %v477 = vadd.f32 0.0, %v476
    %v478 = vpop.f32.mrf.mxu0
    %v479 = vadd.f32 0.0, %v478
    %480 = vmatmul.bf16.gmra.mxu0 %v381
    %v481 = vpop.f32.mrf.mxu0
    %v482 = vadd.f32 0.0, %v481
    %v483 = vpop.f32.mrf.mxu0
    %v484 = vadd.f32 0.0, %v483
    %485 = vmatmul.bf16.gmra.mxu0 %v383
    %v486 = vpop.f32.mrf.mxu0
    %v487 = vadd.f32 0.0, %v486
    %v488 = vpop.f32.mrf.mxu0
    %v489 = vadd.f32 0.0, %v488
    %490 = vmatmul.bf16.gmra.mxu0 %v385
    %v491 = vpop.f32.mrf.mxu0
    %v492 = vadd.f32 0.0, %v491
    %v493 = vpop.f32.mrf.mxu0
    %v494 = vadd.f32 0.0, %v493
    %495 = vmatmul.bf16.gmra.mxu0 %v387
    %v496 = vpop.f32.mrf.mxu0
    %v497 = vadd.f32 0.0, %v496
    %v498 = vpop.f32.mrf.mxu0
    %v499 = vadd.f32 0.0, %v498
    %500 = vmatmul.bf16.gmra.mxu0 %v389
    %v501 = vpop.f32.mrf.mxu0
    %v502 = vadd.f32 0.0, %v501
    %v503 = vpop.f32.mrf.mxu0
    %v504 = vadd.f32 0.0, %v503
    %505 = vmatmul.bf16.gmra.mxu0 %v391
    %v506 = vpop.f32.mrf.mxu0
    %v507 = vadd.f32 0.0, %v506
    %v508 = vpop.f32.mrf.mxu0
    %v509 = vadd.f32 0.0, %v508
    %510 = vmatmul.bf16.gmra.mxu0 %v393
    %v511 = vpop.f32.mrf.mxu0
    %v512 = vadd.f32 0.0, %v511
    %v513 = vpop.f32.mrf.mxu0
    %v514 = vadd.f32 0.0, %v513
    %515 = vdwg.mxu0
    %516 = vmatpush.bf16.msra.mxu0 %v234
    %517 = vmatpush.bf16.msra.mxu0 %v233
    %518 = vmatpush.bf16.msra.mxu0 %v232
    %519 = vmatpush.bf16.msra.mxu0 %v231
    %520 = vmatpush.bf16.msra.mxu0 %v230
    %521 = vmatpush.bf16.msra.mxu0 %v229
    %522 = vmatpush.bf16.msra.mxu0 %v228
    %523 = vmatpush.bf16.msra.mxu0 %v227
    %524 = vmatmul.bf16.gmra.mxu0 %v364
    %v525 = vpop.f32.mrf.mxu0
    %v526 = vadd.f32 %v437, %v525
    %v527 = vpop.f32.mrf.mxu0
    %v528 = vadd.f32 %v439, %v527
    %529 = vmatmul.bf16.gmra.mxu0 %v366
    %v530 = vpop.f32.mrf.mxu0
    %v531 = vadd.f32 %v442, %v530
    %v532 = vpop.f32.mrf.mxu0
    %v533 = vadd.f32 %v444, %v532
    %534 = vmatmul.bf16.gmra.mxu0 %v368
    %v535 = vpop.f32.mrf.mxu0
    %v536 = vadd.f32 %v447, %v535
    %v537 = vpop.f32.mrf.mxu0
    %v538 = vadd.f32 %v449, %v537
    %539 = vmatmul.bf16.gmra.mxu0 %v370
    %v540 = vpop.f32.mrf.mxu0
    %v541 = vadd.f32 %v452, %v540
    %v542 = vpop.f32.mrf.mxu0
    %v543 = vadd.f32 %v454, %v542
    %544 = vmatmul.bf16.gmra.mxu0 %v372
    %v545 = vpop.f32.mrf.mxu0
    %v546 = vadd.f32 %v457, %v545
    %v547 = vpop.f32.mrf.mxu0
    %v548 = vadd.f32 %v459, %v547
    %549 = vmatmul.bf16.gmra.mxu0 %v374
    %v550 = vpop.f32.mrf.mxu0
    %v551 = vadd.f32 %v462, %v550
    %v552 = vpop.f32.mrf.mxu0
    %v553 = vadd.f32 %v464, %v552
    %554 = vmatmul.bf16.gmra.mxu0 %v376
    %v555 = vpop.f32.mrf.mxu0
    %v556 = vadd.f32 %v467, %v555
    %v557 = vpop.f32.mrf.mxu0
    %v558 = vadd.f32 %v469, %v557
    %559 = vmatmul.bf16.gmra.mxu0 %v378
    %v560 = vpop.f32.mrf.mxu0
    %v561 = vadd.f32 %v472, %v560
    %v562 = vpop.f32.mrf.mxu0
    %v563 = vadd.f32 %v474, %v562
    %564 = vmatmul.bf16.gmra.mxu0 %v380
    %v565 = vpop.f32.mrf.mxu0
    %v566 = vadd.f32 %v477, %v565
    %v567 = vpop.f32.mrf.mxu0
    %v568 = vadd.f32 %v479, %v567
    %569 = vmatmul.bf16.gmra.mxu0 %v382
    %v570 = vpop.f32.mrf.mxu0
    %v571 = vadd.f32 %v482, %v570
    %v572 = vpop.f32.mrf.mxu0
    %v573 = vadd.f32 %v484, %v572
    %574 = vmatmul.bf16.gmra.mxu0 %v384
    %v575 = vpop.f32.mrf.mxu0
    %v576 = vadd.f32 %v487, %v575
    %v577 = vpop.f32.mrf.mxu0
    %v578 = vadd.f32 %v489, %v577
    %579 = vmatmul.bf16.gmra.mxu0 %v386
    %v580 = vpop.f32.mrf.mxu0
    %v581 = vadd.f32 %v492, %v580
    %v582 = vpop.f32.mrf.mxu0
    %v583 = vadd.f32 %v494, %v582
    %584 = vmatmul.bf16.gmra.mxu0 %v388
    %v585 = vpop.f32.mrf.mxu0
    %v586 = vadd.f32 %v497, %v585
    %v587 = vpop.f32.mrf.mxu0
    %v588 = vadd.f32 %v499, %v587
    %589 = vmatmul.bf16.gmra.mxu0 %v390
    %v590 = vpop.f32.mrf.mxu0
    %v591 = vadd.f32 %v502, %v590
    %v592 = vpop.f32.mrf.mxu0
    %v593 = vadd.f32 %v504, %v592
    %594 = vmatmul.bf16.gmra.mxu0 %v392
    %v595 = vpop.f32.mrf.mxu0
    %v596 = vadd.f32 %v507, %v595
    %v597 = vpop.f32.mrf.mxu0
    %v598 = vadd.f32 %v509, %v597
    %599 = vmatmul.bf16.gmra.mxu0 %v394
    %v600 = vpop.f32.mrf.mxu0
    %v601 = vadd.f32 %v512, %v600
    %v602 = vpop.f32.mrf.mxu0
    %v603 = vadd.f32 %v514, %v602
    %604 = vdwg.mxu0
    %v605 = vadd.f32 %v235, %v526
    %v606 = vadd.f32 %v236, %v528
    %v607 = vadd.f32 %v237, %v531
    %v608 = vadd.f32 %v238, %v533
    %v609 = vadd.f32 %v239, %v536
    %v610 = vadd.f32 %v240, %v538
    %v611 = vadd.f32 %v241, %v541
    %v612 = vadd.f32 %v242, %v543
    %v613 = vadd.f32 %v243, %v546
    %v614 = vadd.f32 %v244, %v548
    %v615 = vadd.f32 %v245, %v551
    %v616 = vadd.f32 %v246, %v553
    %v617 = vadd.f32 %v247, %v556
    %v618 = vadd.f32 %v248, %v558
    %v619 = vadd.f32 %v249, %v561
    %v620 = vadd.f32 %v250, %v563
    %v621 = vadd.f32 %v251, %v566
    %v622 = vadd.f32 %v252, %v568
    %v623 = vadd.f32 %v253, %v571
    %v624 = vadd.f32 %v254, %v573
    %v625 = vadd.f32 %v255, %v576
    %v626 = vadd.f32 %v256, %v578
    %v627 = vadd.f32 %v257, %v581
    %v628 = vadd.f32 %v258, %v583
    %v629 = vadd.f32 %v259, %v586
    %v630 = vadd.f32 %v260, %v588
    %v631 = vadd.f32 %v261, %v591
    %v632 = vadd.f32 %v262, %v593
    %v633 = vadd.f32 %v263, %v596
    %v634 = vadd.f32 %v264, %v598
    %v635 = vadd.f32 %v265, %v601
    %v636 = vadd.f32 %v266, %v603
    %637 = vst [vmem:[#allocation2] sm:$0xff] %v605
    %638 = vst [vmem:[#allocation2 + $0x8] sm:$0xff] %v606
    %639 = vst [vmem:[#allocation2 + $0x10] sm:$0xff] %v607
    %640 = vst [vmem:[#allocation2 + $0x18] sm:$0xff] %v608
    %641 = vst [vmem:[#allocation2 + $0x20] sm:$0xff] %v609
    %642 = vst [vmem:[#allocation2 + $0x28] sm:$0xff] %v610
    %643 = vst [vmem:[#allocation2 + $0x30] sm:$0xff] %v611
    %644 = vst [vmem:[#allocation2 + $0x38] sm:$0xff] %v612
    %645 = vst [vmem:[#allocation2 + $0x40] sm:$0xff] %v613
    %646 = vst [vmem:[#allocation2 + $0x48] sm:$0xff] %v614
    %647 = vst [vmem:[#allocation2 + $0x50] sm:$0xff] %v615
    %648 = vst [vmem:[#allocation2 + $0x58] sm:$0xff] %v616
    %649 = vst [vmem:[#allocation2 + $0x60] sm:$0xff] %v617
    %650 = vst [vmem:[#allocation2 + $0x68] sm:$0xff] %v618
    %651 = vst [vmem:[#allocation2 + $0x70] sm:$0xff] %v619
    %652 = vst [vmem:[#allocation2 + $0x78] sm:$0xff] %v620
    %653 = vst [vmem:[#allocation2 + $0x80] sm:$0xff] %v621
    %654 = vst [vmem:[#allocation2 + $0x88] sm:$0xff] %v622
    %655 = vst [vmem:[#allocation2 + $0x90] sm:$0xff] %v623
    %656 = vst [vmem:[#allocation2 + $0x98] sm:$0xff] %v624
    %657 = vst [vmem:[#allocation2 + $0xa0] sm:$0xff] %v625
    %658 = vst [vmem:[#allocation2 + $0xa8] sm:$0xff] %v626
    %659 = vst [vmem:[#allocation2 + $0xb0] sm:$0xff] %v627
    %660 = vst [vmem:[#allocation2 + $0xb8] sm:$0xff] %v628
    %661 = vst [vmem:[#allocation2 + $0xc0] sm:$0xff] %v629
    %662 = vst [vmem:[#allocation2 + $0xc8] sm:$0xff] %v630
    %663 = vst [vmem:[#allocation2 + $0xd0] sm:$0xff] %v631
    %664 = vst [vmem:[#allocation2 + $0xd8] sm:$0xff] %v632
    %665 = vst [vmem:[#allocation2 + $0xe0] sm:$0xff] %v633
    %666 = vst [vmem:[#allocation2 + $0xe8] sm:$0xff] %v634
    %667 = vst [vmem:[#allocation2 + $0xf0] sm:$0xff] %v635
    %668 = vst [vmem:[#allocation2 + $0xf8] sm:$0xff] %v636
    // Predicated region
    $region58: #{tpu_custom_call.1} parent=1 // pred_check
      %p669 = pneg %p119
    $region59: #{tpu_custom_call.1} parent=1 // pred_check_branch
      %671 = sbr.rel (%p669) target = $region61
    $region60: #{tpu_custom_call.1} parent=1 // pred_region
      %v672 = vld [vmem:[#allocation6] sm:$0xff]
      %v673 = vld [vmem:[#allocation6 + $0x8] sm:$0xff]
      %v674 = vld [vmem:[#allocation6 + $0x10] sm:$0xff]
      %v675 = vld [vmem:[#allocation6 + $0x18] sm:$0xff]
      %v676 = vld [vmem:[#allocation6 + $0x20] sm:$0xff]
      %v677 = vld [vmem:[#allocation6 + $0x28] sm:$0xff]
      %v678 = vld [vmem:[#allocation6 + $0x30] sm:$0xff]
      %v679 = vld [vmem:[#allocation6 + $0x38] sm:$0xff]
      %v680 = vld [vmem:[#allocation6 + $0x40] sm:$0xff]
      %v681 = vld [vmem:[#allocation6 + $0x48] sm:$0xff]
      %v682 = vld [vmem:[#allocation6 + $0x50] sm:$0xff]
      %v683 = vld [vmem:[#allocation6 + $0x58] sm:$0xff]
      %v684 = vld [vmem:[#allocation6 + $0x60] sm:$0xff]
      %v685 = vld [vmem:[#allocation6 + $0x68] sm:$0xff]
      %v686 = vld [vmem:[#allocation6 + $0x70] sm:$0xff]
      %v687 = vld [vmem:[#allocation6 + $0x78] sm:$0xff]
      %v688 = vld [vmem:[#allocation6 + $0x80] sm:$0xff]
      %v689 = vld [vmem:[#allocation6 + $0x88] sm:$0xff]
      %v690 = vld [vmem:[#allocation6 + $0x90] sm:$0xff]
      %v691 = vld [vmem:[#allocation6 + $0x98] sm:$0xff]
      %v692 = vld [vmem:[#allocation6 + $0xa0] sm:$0xff]
      %v693 = vld [vmem:[#allocation6 + $0xa8] sm:$0xff]
      %v694 = vld [vmem:[#allocation6 + $0xb0] sm:$0xff]
      %v695 = vld [vmem:[#allocation6 + $0xb8] sm:$0xff]
      %v696 = vld [vmem:[#allocation6 + $0xc0] sm:$0xff]
      %v697 = vld [vmem:[#allocation6 + $0xc8] sm:$0xff]
      %v698 = vld [vmem:[#allocation6 + $0xd0] sm:$0xff]
      %v699 = vld [vmem:[#allocation6 + $0xd8] sm:$0xff]
      %v700 = vld [vmem:[#allocation6 + $0xe0] sm:$0xff]
      %v701 = vld [vmem:[#allocation6 + $0xe8] sm:$0xff]
      %v702 = vld [vmem:[#allocation6 + $0xf0] sm:$0xff]
      %v703 = vld [vmem:[#allocation6 + $0xf8] sm:$0xff]
      %v704 = vld [vmem:[#allocation2] sm:$0xff]
      %v705 = vld [vmem:[#allocation2 + $0x8] sm:$0xff]
      %v706 = vld [vmem:[#allocation2 + $0x10] sm:$0xff]
      %v707 = vld [vmem:[#allocation2 + $0x18] sm:$0xff]
      %v708 = vld [vmem:[#allocation2 + $0x20] sm:$0xff]
      %v709 = vld [vmem:[#allocation2 + $0x28] sm:$0xff]
      %v710 = vld [vmem:[#allocation2 + $0x30] sm:$0xff]
      %v711 = vld [vmem:[#allocation2 + $0x38] sm:$0xff]
      %v712 = vld [vmem:[#allocation2 + $0x40] sm:$0xff]
      %v713 = vld [vmem:[#allocation2 + $0x48] sm:$0xff]
      %v714 = vld [vmem:[#allocation2 + $0x50] sm:$0xff]
      %v715 = vld [vmem:[#allocation2 + $0x58] sm:$0xff]
      %v716 = vld [vmem:[#allocation2 + $0x60] sm:$0xff]
      %v717 = vld [vmem:[#allocation2 + $0x68] sm:$0xff]
      %v718 = vld [vmem:[#allocation2 + $0x70] sm:$0xff]
      %v719 = vld [vmem:[#allocation2 + $0x78] sm:$0xff]
      %v720 = vld [vmem:[#allocation2 + $0x80] sm:$0xff]
      %v721 = vld [vmem:[#allocation2 + $0x88] sm:$0xff]
      %v722 = vld [vmem:[#allocation2 + $0x90] sm:$0xff]
      %v723 = vld [vmem:[#allocation2 + $0x98] sm:$0xff]
      %v724 = vld [vmem:[#allocation2 + $0xa0] sm:$0xff]
      %v725 = vld [vmem:[#allocation2 + $0xa8] sm:$0xff]
      %v726 = vld [vmem:[#allocation2 + $0xb0] sm:$0xff]
      %v727 = vld [vmem:[#allocation2 + $0xb8] sm:$0xff]
      %v728 = vld [vmem:[#allocation2 + $0xc0] sm:$0xff]
      %v729 = vld [vmem:[#allocation2 + $0xc8] sm:$0xff]
      %v730 = vld [vmem:[#allocation2 + $0xd0] sm:$0xff]
      %v731 = vld [vmem:[#allocation2 + $0xd8] sm:$0xff]
      %v732 = vld [vmem:[#allocation2 + $0xe0] sm:$0xff]
      %v733 = vld [vmem:[#allocation2 + $0xe8] sm:$0xff]
      %v734 = vld [vmem:[#allocation2 + $0xf0] sm:$0xff]
      %v735 = vld [vmem:[#allocation2 + $0xf8] sm:$0xff]
      %v736 = vld [vmem:[#allocation9] sm:$0xff]
      %v737 = vld [vmem:[#allocation9 + $0x8] sm:$0xff]
      %v738 = vld [vmem:[#allocation9 + $0x10] sm:$0xff]
      %v739 = vld [vmem:[#allocation9 + $0x18] sm:$0xff]
      %v740 = vld [vmem:[#allocation9 + $0x20] sm:$0xff]
      %v741 = vld [vmem:[#allocation9 + $0x28] sm:$0xff]
      %v742 = vld [vmem:[#allocation9 + $0x30] sm:$0xff]
      %v743 = vld [vmem:[#allocation9 + $0x38] sm:$0xff]
      %v744 = vld [vmem:[#allocation9 + $0x40] sm:$0xff]
      %v745 = vld [vmem:[#allocation9 + $0x48] sm:$0xff]
      %v746 = vld [vmem:[#allocation9 + $0x50] sm:$0xff]
      %v747 = vld [vmem:[#allocation9 + $0x58] sm:$0xff]
      %v748 = vld [vmem:[#allocation9 + $0x60] sm:$0xff]
      %v749 = vld [vmem:[#allocation9 + $0x68] sm:$0xff]
      %v750 = vld [vmem:[#allocation9 + $0x70] sm:$0xff]
      %v751 = vld [vmem:[#allocation9 + $0x78] sm:$0xff]
      %v752 = vld [vmem:[#allocation9 + $0x80] sm:$0xff]
      %v753 = vld [vmem:[#allocation9 + $0x88] sm:$0xff]
      %v754 = vld [vmem:[#allocation9 + $0x90] sm:$0xff]
      %v755 = vld [vmem:[#allocation9 + $0x98] sm:$0xff]
      %v756 = vld [vmem:[#allocation9 + $0xa0] sm:$0xff]
      %v757 = vld [vmem:[#allocation9 + $0xa8] sm:$0xff]
      %v758 = vld [vmem:[#allocation9 + $0xb0] sm:$0xff]
      %v759 = vld [vmem:[#allocation9 + $0xb8] sm:$0xff]
      %v760 = vld [vmem:[#allocation9 + $0xc0] sm:$0xff]
      %v761 = vld [vmem:[#allocation9 + $0xc8] sm:$0xff]
      %v762 = vld [vmem:[#allocation9 + $0xd0] sm:$0xff]
      %v763 = vld [vmem:[#allocation9 + $0xd8] sm:$0xff]
      %v764 = vld [vmem:[#allocation9 + $0xe0] sm:$0xff]
      %v765 = vld [vmem:[#allocation9 + $0xe8] sm:$0xff]
      %v766 = vld [vmem:[#allocation9 + $0xf0] sm:$0xff]
      %v767 = vld [vmem:[#allocation9 + $0xf8] sm:$0xff]
      %v768 = vld [vmem:[#allocation9 + $0x100] sm:$0xff]
      %v769 = vld [vmem:[#allocation9 + $0x108] sm:$0xff]
      %v770 = vld [vmem:[#allocation9 + $0x110] sm:$0xff]
      %v771 = vld [vmem:[#allocation9 + $0x118] sm:$0xff]
      %v772 = vld [vmem:[#allocation9 + $0x120] sm:$0xff]
      %v773 = vld [vmem:[#allocation9 + $0x128] sm:$0xff]
      %v774 = vld [vmem:[#allocation9 + $0x130] sm:$0xff]
      %v775 = vld [vmem:[#allocation9 + $0x138] sm:$0xff]
      %v776 = vld [vmem:[#allocation9 + $0x140] sm:$0xff]
      %v777 = vld [vmem:[#allocation9 + $0x148] sm:$0xff]
      %v778 = vld [vmem:[#allocation9 + $0x150] sm:$0xff]
      %v779 = vld [vmem:[#allocation9 + $0x158] sm:$0xff]
      %v780 = vld [vmem:[#allocation9 + $0x160] sm:$0xff]
      %v781 = vld [vmem:[#allocation9 + $0x168] sm:$0xff]
      %v782 = vld [vmem:[#allocation9 + $0x170] sm:$0xff]
      %v783 = vld [vmem:[#allocation9 + $0x178] sm:$0xff]
      %v784 = vld [vmem:[%s5] sm:$0x7]
      %v786 = vperm.slane %v784, 0
      %v787 = vperm.slane %v784, 1
      %v788 = vperm.slane %v784, 2
      %792 = vmatpush.msra.mxu0 %v781
      %793 = vmatpush.msra.mxu0 %v778
      %794 = vmatpush.msra.mxu0 %v775
      %795 = vmatpush.msra.mxu0 %v772
      %796 = vmatpush.msra.mxu0 %v769
      %797 = vmatpush.msra.mxu0 %v766
      %798 = vmatpush.msra.mxu0 %v763
      %799 = vmatpush.msra.mxu0 %v760
      %800 = vmatpush.msra.mxu0 %v757
      %801 = vmatpush.msra.mxu0 %v754
      %802 = vmatpush.msra.mxu0 %v751
      %803 = vmatpush.msra.mxu0 %v748
      %804 = vmatpush.msra.mxu0 %v745
      %805 = vmatpush.msra.mxu0 %v742
      %806 = vmatpush.msra.mxu0 %v739
      %807 = vmatpush.msra.mxu0 %v736
      %808 = vmatmul.f32.gmra.mxu0 %v704
      %v809 = vpop.f32.mrf.mxu0
      %v810 = vadd.f32 %v786, %v809
      %811 = vmatmul.f32.gmra.mxu0 %v705
      %v812 = vpop.f32.mrf.mxu0
      %v813 = vadd.f32 %v786, %v812
      %814 = vmatmul.f32.gmra.mxu0 %v706
      %v815 = vpop.f32.mrf.mxu0
      %v816 = vadd.f32 %v786, %v815
      %817 = vmatmul.f32.gmra.mxu0 %v707
      %v818 = vpop.f32.mrf.mxu0
      %v819 = vadd.f32 %v786, %v818
      %820 = vmatmul.f32.gmra.mxu0 %v708
      %v821 = vpop.f32.mrf.mxu0
      %v822 = vadd.f32 %v786, %v821
      %823 = vmatmul.f32.gmra.mxu0 %v709
      %v824 = vpop.f32.mrf.mxu0
      %v825 = vadd.f32 %v786, %v824
      %826 = vmatmul.f32.gmra.mxu0 %v710
      %v827 = vpop.f32.mrf.mxu0
      %v828 = vadd.f32 %v786, %v827
      %829 = vmatmul.f32.gmra.mxu0 %v711
      %v830 = vpop.f32.mrf.mxu0
      %v831 = vadd.f32 %v786, %v830
      %832 = vmatmul.f32.gmra.mxu0 %v712
      %v833 = vpop.f32.mrf.mxu0
      %v834 = vadd.f32 %v786, %v833
      %835 = vmatmul.f32.gmra.mxu0 %v713
      %v836 = vpop.f32.mrf.mxu0
      %v837 = vadd.f32 %v786, %v836
      %838 = vmatmul.f32.gmra.mxu0 %v714
      %v839 = vpop.f32.mrf.mxu0
      %v840 = vadd.f32 %v786, %v839
      %841 = vmatmul.f32.gmra.mxu0 %v715
      %v842 = vpop.f32.mrf.mxu0
      %v843 = vadd.f32 %v786, %v842
      %844 = vmatmul.f32.gmra.mxu0 %v716
      %v845 = vpop.f32.mrf.mxu0
      %v846 = vadd.f32 %v786, %v845
      %847 = vmatmul.f32.gmra.mxu0 %v717
      %v848 = vpop.f32.mrf.mxu0
      %v849 = vadd.f32 %v786, %v848
      %850 = vmatmul.f32.gmra.mxu0 %v718
      %v851 = vpop.f32.mrf.mxu0
      %v852 = vadd.f32 %v786, %v851
      %853 = vmatmul.f32.gmra.mxu0 %v719
      %v854 = vpop.f32.mrf.mxu0
      %v855 = vadd.f32 %v786, %v854
      %856 = vmatmul.f32.gmra.mxu0 %v720
      %v857 = vpop.f32.mrf.mxu0
      %v858 = vadd.f32 %v786, %v857
      %859 = vmatmul.f32.gmra.mxu0 %v721
      %v860 = vpop.f32.mrf.mxu0
      %v861 = vadd.f32 %v786, %v860
      %862 = vmatmul.f32.gmra.mxu0 %v722
      %v863 = vpop.f32.mrf.mxu0
      %v864 = vadd.f32 %v786, %v863
      %865 = vmatmul.f32.gmra.mxu0 %v723
      %v866 = vpop.f32.mrf.mxu0
      %v867 = vadd.f32 %v786, %v866
      %868 = vmatmul.f32.gmra.mxu0 %v724
      %v869 = vpop.f32.mrf.mxu0
      %v870 = vadd.f32 %v786, %v869
      %871 = vmatmul.f32.gmra.mxu0 %v725
      %v872 = vpop.f32.mrf.mxu0
      %v873 = vadd.f32 %v786, %v872
      %874 = vmatmul.f32.gmra.mxu0 %v726
      %v875 = vpop.f32.mrf.mxu0
      %v876 = vadd.f32 %v786, %v875
      %877 = vmatmul.f32.gmra.mxu0 %v727
      %v878 = vpop.f32.mrf.mxu0
      %v879 = vadd.f32 %v786, %v878
      %880 = vmatmul.f32.gmra.mxu0 %v728
      %v881 = vpop.f32.mrf.mxu0
      %v882 = vadd.f32 %v786, %v881
      %883 = vmatmul.f32.gmra.mxu0 %v729
      %v884 = vpop.f32.mrf.mxu0
      %v885 = vadd.f32 %v786, %v884
      %886 = vmatmul.f32.gmra.mxu0 %v730
      %v887 = vpop.f32.mrf.mxu0
      %v888 = vadd.f32 %v786, %v887
      %889 = vmatmul.f32.gmra.mxu0 %v731
      %v890 = vpop.f32.mrf.mxu0
      %v891 = vadd.f32 %v786, %v890
      %892 = vmatmul.f32.gmra.mxu0 %v732
      %v893 = vpop.f32.mrf.mxu0
      %v894 = vadd.f32 %v786, %v893
      %895 = vmatmul.f32.gmra.mxu0 %v733
      %v896 = vpop.f32.mrf.mxu0
      %v897 = vadd.f32 %v786, %v896
      %898 = vmatmul.f32.gmra.mxu0 %v734
      %v899 = vpop.f32.mrf.mxu0
      %v900 = vadd.f32 %v786, %v899
      %901 = vmatmul.f32.gmra.mxu0 %v735
      %v902 = vpop.f32.mrf.mxu0
      %v903 = vadd.f32 %v786, %v902
      %904 = vdwg.mxu0
      %905 = vmatpush.msra.mxu0 %v782
      %906 = vmatpush.msra.mxu0 %v779
      %907 = vmatpush.msra.mxu0 %v776
      %908 = vmatpush.msra.mxu0 %v773
      %909 = vmatpush.msra.mxu0 %v770
      %910 = vmatpush.msra.mxu0 %v767
      %911 = vmatpush.msra.mxu0 %v764
      %912 = vmatpush.msra.mxu0 %v761
      %913 = vmatpush.msra.mxu0 %v758
      %914 = vmatpush.msra.mxu0 %v755
      %915 = vmatpush.msra.mxu0 %v752
      %916 = vmatpush.msra.mxu0 %v749
      %917 = vmatpush.msra.mxu0 %v746
      %918 = vmatpush.msra.mxu0 %v743
      %919 = vmatpush.msra.mxu0 %v740
      %920 = vmatpush.msra.mxu0 %v737
      %921 = vmatmul.f32.gmra.mxu0 %v704
      %v922 = vpop.f32.mrf.mxu0
      %v923 = vadd.f32 %v787, %v922
      %924 = vmatmul.f32.gmra.mxu0 %v705
      %v925 = vpop.f32.mrf.mxu0
      %v926 = vadd.f32 %v787, %v925
      %927 = vmatmul.f32.gmra.mxu0 %v706
      %v928 = vpop.f32.mrf.mxu0
      %v929 = vadd.f32 %v787, %v928
      %930 = vmatmul.f32.gmra.mxu0 %v707
      %v931 = vpop.f32.mrf.mxu0
      %v932 = vadd.f32 %v787, %v931
      %933 = vmatmul.f32.gmra.mxu0 %v708
      %v934 = vpop.f32.mrf.mxu0
      %v935 = vadd.f32 %v787, %v934
      %936 = vmatmul.f32.gmra.mxu0 %v709
      %v937 = vpop.f32.mrf.mxu0
      %v938 = vadd.f32 %v787, %v937
      %939 = vmatmul.f32.gmra.mxu0 %v710
      %v940 = vpop.f32.mrf.mxu0
      %v941 = vadd.f32 %v787, %v940
      %942 = vmatmul.f32.gmra.mxu0 %v711
      %v943 = vpop.f32.mrf.mxu0
      %v944 = vadd.f32 %v787, %v943
      %945 = vmatmul.f32.gmra.mxu0 %v712
      %v946 = vpop.f32.mrf.mxu0
      %v947 = vadd.f32 %v787, %v946
      %948 = vmatmul.f32.gmra.mxu0 %v713
      %v949 = vpop.f32.mrf.mxu0
      %v950 = vadd.f32 %v787, %v949
      %951 = vmatmul.f32.gmra.mxu0 %v714
      %v952 = vpop.f32.mrf.mxu0
      %v953 = vadd.f32 %v787, %v952
      %954 = vmatmul.f32.gmra.mxu0 %v715
      %v955 = vpop.f32.mrf.mxu0
      %v956 = vadd.f32 %v787, %v955
      %957 = vmatmul.f32.gmra.mxu0 %v716
      %v958 = vpop.f32.mrf.mxu0
      %v959 = vadd.f32 %v787, %v958
      %960 = vmatmul.f32.gmra.mxu0 %v717
      %v961 = vpop.f32.mrf.mxu0
      %v962 = vadd.f32 %v787, %v961
      %963 = vmatmul.f32.gmra.mxu0 %v718
      %v964 = vpop.f32.mrf.mxu0
      %v965 = vadd.f32 %v787, %v964
      %966 = vmatmul.f32.gmra.mxu0 %v719
      %v967 = vpop.f32.mrf.mxu0
      %v968 = vadd.f32 %v787, %v967
      %969 = vmatmul.f32.gmra.mxu0 %v720
      %v970 = vpop.f32.mrf.mxu0
      %v971 = vadd.f32 %v787, %v970
      %972 = vmatmul.f32.gmra.mxu0 %v721
      %v973 = vpop.f32.mrf.mxu0
      %v974 = vadd.f32 %v787, %v973
      %975 = vmatmul.f32.gmra.mxu0 %v722
      %v976 = vpop.f32.mrf.mxu0
      %v977 = vadd.f32 %v787, %v976
      %978 = vmatmul.f32.gmra.mxu0 %v723
      %v979 = vpop.f32.mrf.mxu0
      %v980 = vadd.f32 %v787, %v979
      %981 = vmatmul.f32.gmra.mxu0 %v724
      %v982 = vpop.f32.mrf.mxu0
      %v983 = vadd.f32 %v787, %v982
      %984 = vmatmul.f32.gmra.mxu0 %v725
      %v985 = vpop.f32.mrf.mxu0
      %v986 = vadd.f32 %v787, %v985
      %987 = vmatmul.f32.gmra.mxu0 %v726
      %v988 = vpop.f32.mrf.mxu0
      %v989 = vadd.f32 %v787, %v988
      %990 = vmatmul.f32.gmra.mxu0 %v727
      %v991 = vpop.f32.mrf.mxu0
      %v992 = vadd.f32 %v787, %v991
      %993 = vmatmul.f32.gmra.mxu0 %v728
      %v994 = vpop.f32.mrf.mxu0
      %v995 = vadd.f32 %v787, %v994
      %996 = vmatmul.f32.gmra.mxu0 %v729
      %v997 = vpop.f32.mrf.mxu0
      %v998 = vadd.f32 %v787, %v997
      %999 = vmatmul.f32.gmra.mxu0 %v730
      %v1000 = vpop.f32.mrf.mxu0
      %v1001 = vadd.f32 %v787, %v1000
      %1002 = vmatmul.f32.gmra.mxu0 %v731
      %v1003 = vpop.f32.mrf.mxu0
      %v1004 = vadd.f32 %v787, %v1003
      %1005 = vmatmul.f32.gmra.mxu0 %v732
      %v1006 = vpop.f32.mrf.mxu0
      %v1007 = vadd.f32 %v787, %v1006
      %1008 = vmatmul.f32.gmra.mxu0 %v733
      %v1009 = vpop.f32.mrf.mxu0
      %v1010 = vadd.f32 %v787, %v1009
      %1011 = vmatmul.f32.gmra.mxu0 %v734
      %v1012 = vpop.f32.mrf.mxu0
      %v1013 = vadd.f32 %v787, %v1012
      %1014 = vmatmul.f32.gmra.mxu0 %v735
      %v1015 = vpop.f32.mrf.mxu0
      %v1016 = vadd.f32 %v787, %v1015
      %1017 = vdwg.mxu0
      %1018 = vmatpush.msra.mxu0 %v783
      %1019 = vmatpush.msra.mxu0 %v780
      %1020 = vmatpush.msra.mxu0 %v777
      %1021 = vmatpush.msra.mxu0 %v774
      %1022 = vmatpush.msra.mxu0 %v771
      %1023 = vmatpush.msra.mxu0 %v768
      %1024 = vmatpush.msra.mxu0 %v765
      %1025 = vmatpush.msra.mxu0 %v762
      %1026 = vmatpush.msra.mxu0 %v759
      %1027 = vmatpush.msra.mxu0 %v756
      %1028 = vmatpush.msra.mxu0 %v753
      %1029 = vmatpush.msra.mxu0 %v750
      %1030 = vmatpush.msra.mxu0 %v747
      %1031 = vmatpush.msra.mxu0 %v744
      %1032 = vmatpush.msra.mxu0 %v741
      %1033 = vmatpush.msra.mxu0 %v738
      %1034 = vmatmul.f32.gmra.mxu0 %v704
      %v1035 = vpop.f32.mrf.mxu0
      %v1036 = vadd.f32 %v788, %v1035
      %1037 = vmatmul.f32.gmra.mxu0 %v705
      %v1038 = vpop.f32.mrf.mxu0
      %v1039 = vadd.f32 %v788, %v1038
      %1040 = vmatmul.f32.gmra.mxu0 %v706
      %v1041 = vpop.f32.mrf.mxu0
      %v1042 = vadd.f32 %v788, %v1041
      %1043 = vmatmul.f32.gmra.mxu0 %v707
      %v1044 = vpop.f32.mrf.mxu0
      %v1045 = vadd.f32 %v788, %v1044
      %1046 = vmatmul.f32.gmra.mxu0 %v708
      %v1047 = vpop.f32.mrf.mxu0
      %v1048 = vadd.f32 %v788, %v1047
      %1049 = vmatmul.f32.gmra.mxu0 %v709
      %v1050 = vpop.f32.mrf.mxu0
      %v1051 = vadd.f32 %v788, %v1050
      %1052 = vmatmul.f32.gmra.mxu0 %v710
      %v1053 = vpop.f32.mrf.mxu0
      %v1054 = vadd.f32 %v788, %v1053
      %1055 = vmatmul.f32.gmra.mxu0 %v711
      %v1056 = vpop.f32.mrf.mxu0
      %v1057 = vadd.f32 %v788, %v1056
      %1058 = vmatmul.f32.gmra.mxu0 %v712
      %v1059 = vpop.f32.mrf.mxu0
      %v1060 = vadd.f32 %v788, %v1059
      %1061 = vmatmul.f32.gmra.mxu0 %v713
      %v1062 = vpop.f32.mrf.mxu0
      %v1063 = vadd.f32 %v788, %v1062
      %1064 = vmatmul.f32.gmra.mxu0 %v714
      %v1065 = vpop.f32.mrf.mxu0
      %v1066 = vadd.f32 %v788, %v1065
      %1067 = vmatmul.f32.gmra.mxu0 %v715
      %v1068 = vpop.f32.mrf.mxu0
      %v1069 = vadd.f32 %v788, %v1068
      %1070 = vmatmul.f32.gmra.mxu0 %v716
      %v1071 = vpop.f32.mrf.mxu0
      %v1072 = vadd.f32 %v788, %v1071
      %1073 = vmatmul.f32.gmra.mxu0 %v717
      %v1074 = vpop.f32.mrf.mxu0
      %v1075 = vadd.f32 %v788, %v1074
      %1076 = vmatmul.f32.gmra.mxu0 %v718
      %v1077 = vpop.f32.mrf.mxu0
      %v1078 = vadd.f32 %v788, %v1077
      %1079 = vmatmul.f32.gmra.mxu0 %v719
      %v1080 = vpop.f32.mrf.mxu0
      %v1081 = vadd.f32 %v788, %v1080
      %1082 = vmatmul.f32.gmra.mxu0 %v720
      %v1083 = vpop.f32.mrf.mxu0
      %v1084 = vadd.f32 %v788, %v1083
      %1085 = vmatmul.f32.gmra.mxu0 %v721
      %v1086 = vpop.f32.mrf.mxu0
      %v1087 = vadd.f32 %v788, %v1086
      %1088 = vmatmul.f32.gmra.mxu0 %v722
      %v1089 = vpop.f32.mrf.mxu0
      %v1090 = vadd.f32 %v788, %v1089
      %1091 = vmatmul.f32.gmra.mxu0 %v723
      %v1092 = vpop.f32.mrf.mxu0
      %v1093 = vadd.f32 %v788, %v1092
      %1094 = vmatmul.f32.gmra.mxu0 %v724
      %v1095 = vpop.f32.mrf.mxu0
      %v1096 = vadd.f32 %v788, %v1095
      %1097 = vmatmul.f32.gmra.mxu0 %v725
      %v1098 = vpop.f32.mrf.mxu0
      %v1099 = vadd.f32 %v788, %v1098
      %1100 = vmatmul.f32.gmra.mxu0 %v726
      %v1101 = vpop.f32.mrf.mxu0
      %v1102 = vadd.f32 %v788, %v1101
      %1103 = vmatmul.f32.gmra.mxu0 %v727
      %v1104 = vpop.f32.mrf.mxu0
      %v1105 = vadd.f32 %v788, %v1104
      %1106 = vmatmul.f32.gmra.mxu0 %v728
      %v1107 = vpop.f32.mrf.mxu0
      %v1108 = vadd.f32 %v788, %v1107
      %1109 = vmatmul.f32.gmra.mxu0 %v729
      %v1110 = vpop.f32.mrf.mxu0
      %v1111 = vadd.f32 %v788, %v1110
      %1112 = vmatmul.f32.gmra.mxu0 %v730
      %v1113 = vpop.f32.mrf.mxu0
      %v1114 = vadd.f32 %v788, %v1113
      %1115 = vmatmul.f32.gmra.mxu0 %v731
      %v1116 = vpop.f32.mrf.mxu0
      %v1117 = vadd.f32 %v788, %v1116
      %1118 = vmatmul.f32.gmra.mxu0 %v732
      %v1119 = vpop.f32.mrf.mxu0
      %v1120 = vadd.f32 %v788, %v1119
      %1121 = vmatmul.f32.gmra.mxu0 %v733
      %v1122 = vpop.f32.mrf.mxu0
      %v1123 = vadd.f32 %v788, %v1122
      %1124 = vmatmul.f32.gmra.mxu0 %v734
      %v1125 = vpop.f32.mrf.mxu0
      %v1126 = vadd.f32 %v788, %v1125
      %1127 = vmatmul.f32.gmra.mxu0 %v735
      %v1128 = vpop.f32.mrf.mxu0
      %v1129 = vadd.f32 %v788, %v1128
      %1130 = vdwg.mxu0
      %v1131 = vld [vmem:[#allocation11] sm:$0xff]
      %v1132 = vld [vmem:[#allocation11 + $0x8] sm:$0xff]
      %v1133 = vld [vmem:[#allocation11 + $0x10] sm:$0xff]
      %v1134 = vld [vmem:[#allocation11 + $0x18] sm:$0xff]
      %v1135 = vld [vmem:[#allocation11 + $0x20] sm:$0xff]
      %v1136 = vld [vmem:[#allocation11 + $0x28] sm:$0xff]
      %v1137 = vld [vmem:[#allocation11 + $0x30] sm:$0xff]
      %v1138 = vld [vmem:[#allocation11 + $0x38] sm:$0xff]
      %v1139 = vld [vmem:[#allocation11 + $0x40] sm:$0xff]
      %v1140 = vld [vmem:[#allocation11 + $0x48] sm:$0xff]
      %v1141 = vld [vmem:[#allocation11 + $0x50] sm:$0xff]
      %v1142 = vld [vmem:[#allocation11 + $0x58] sm:$0xff]
      %v1143 = vld [vmem:[#allocation11 + $0x60] sm:$0xff]
      %v1144 = vld [vmem:[#allocation11 + $0x68] sm:$0xff]
      %v1145 = vld [vmem:[#allocation11 + $0x70] sm:$0xff]
      %v1146 = vld [vmem:[#allocation11 + $0x78] sm:$0xff]
      %v1147 = vld [vmem:[#allocation11 + $0x80] sm:$0xff]
      %v1148 = vld [vmem:[#allocation11 + $0x88] sm:$0xff]
      %v1149 = vld [vmem:[#allocation11 + $0x90] sm:$0xff]
      %v1150 = vld [vmem:[#allocation11 + $0x98] sm:$0xff]
      %v1151 = vld [vmem:[#allocation11 + $0xa0] sm:$0xff]
      %v1152 = vld [vmem:[#allocation11 + $0xa8] sm:$0xff]
      %v1153 = vld [vmem:[#allocation11 + $0xb0] sm:$0xff]
      %v1154 = vld [vmem:[#allocation11 + $0xb8] sm:$0xff]
      %v1155 = vld [vmem:[#allocation11 + $0xc0] sm:$0xff]
      %v1156 = vld [vmem:[#allocation11 + $0xc8] sm:$0xff]
      %v1157 = vld [vmem:[#allocation11 + $0xd0] sm:$0xff]
      %v1158 = vld [vmem:[#allocation11 + $0xd8] sm:$0xff]
      %v1159 = vld [vmem:[#allocation11 + $0xe0] sm:$0xff]
      %v1160 = vld [vmem:[#allocation11 + $0xe8] sm:$0xff]
      %v1161 = vld [vmem:[#allocation11 + $0xf0] sm:$0xff]
      %v1162 = vld [vmem:[#allocation11 + $0xf8] sm:$0xff]
      %v1163 = vld [vmem:[#allocation11 + $0x100] sm:$0xff]
      %v1164 = vld [vmem:[#allocation11 + $0x108] sm:$0xff]
      %v1165 = vld [vmem:[#allocation11 + $0x110] sm:$0xff]
      %v1166 = vld [vmem:[#allocation11 + $0x118] sm:$0xff]
      %v1167 = vld [vmem:[#allocation11 + $0x120] sm:$0xff]
      %v1168 = vld [vmem:[#allocation11 + $0x128] sm:$0xff]
      %v1169 = vld [vmem:[#allocation11 + $0x130] sm:$0xff]
      %v1170 = vld [vmem:[#allocation11 + $0x138] sm:$0xff]
      %v1171 = vld [vmem:[#allocation11 + $0x140] sm:$0xff]
      %v1172 = vld [vmem:[#allocation11 + $0x148] sm:$0xff]
      %v1173 = vld [vmem:[#allocation11 + $0x150] sm:$0xff]
      %v1174 = vld [vmem:[#allocation11 + $0x158] sm:$0xff]
      %v1175 = vld [vmem:[#allocation11 + $0x160] sm:$0xff]
      %v1176 = vld [vmem:[#allocation11 + $0x168] sm:$0xff]
      %v1177 = vld [vmem:[#allocation11 + $0x170] sm:$0xff]
      %v1178 = vld [vmem:[#allocation11 + $0x178] sm:$0xff]
      %v1179 = vld [vmem:[#allocation12] sm:$0x7]
      %v1181 = vperm.slane %v1179, 0
      %v1182 = vperm.slane %v1179, 1
      %v1183 = vperm.slane %v1179, 2
      %1187 = vmatpush.msra.mxu0 %v1176
      %1188 = vmatpush.msra.mxu0 %v1173
      %1189 = vmatpush.msra.mxu0 %v1170
      %1190 = vmatpush.msra.mxu0 %v1167
      %1191 = vmatpush.msra.mxu0 %v1164
      %1192 = vmatpush.msra.mxu0 %v1161
      %1193 = vmatpush.msra.mxu0 %v1158
      %1194 = vmatpush.msra.mxu0 %v1155
      %1195 = vmatpush.msra.mxu0 %v1152
      %1196 = vmatpush.msra.mxu0 %v1149
      %1197 = vmatpush.msra.mxu0 %v1146
      %1198 = vmatpush.msra.mxu0 %v1143
      %1199 = vmatpush.msra.mxu0 %v1140
      %1200 = vmatpush.msra.mxu0 %v1137
      %1201 = vmatpush.msra.mxu0 %v1134
      %1202 = vmatpush.msra.mxu0 %v1131
      %1203 = vmatmul.f32.gmra.mxu0 %v672
      %v1204 = vpop.f32.mrf.mxu0
      %v1205 = vadd.f32 %v1181, %v1204
      %1206 = vmatmul.f32.gmra.mxu0 %v673
      %v1207 = vpop.f32.mrf.mxu0
      %v1208 = vadd.f32 %v1181, %v1207
      %1209 = vmatmul.f32.gmra.mxu0 %v674
      %v1210 = vpop.f32.mrf.mxu0
      %v1211 = vadd.f32 %v1181, %v1210
      %1212 = vmatmul.f32.gmra.mxu0 %v675
      %v1213 = vpop.f32.mrf.mxu0
      %v1214 = vadd.f32 %v1181, %v1213
      %1215 = vmatmul.f32.gmra.mxu0 %v676
      %v1216 = vpop.f32.mrf.mxu0
      %v1217 = vadd.f32 %v1181, %v1216
      %1218 = vmatmul.f32.gmra.mxu0 %v677
      %v1219 = vpop.f32.mrf.mxu0
      %v1220 = vadd.f32 %v1181, %v1219
      %1221 = vmatmul.f32.gmra.mxu0 %v678
      %v1222 = vpop.f32.mrf.mxu0
      %v1223 = vadd.f32 %v1181, %v1222
      %1224 = vmatmul.f32.gmra.mxu0 %v679
      %v1225 = vpop.f32.mrf.mxu0
      %v1226 = vadd.f32 %v1181, %v1225
      %1227 = vmatmul.f32.gmra.mxu0 %v680
      %v1228 = vpop.f32.mrf.mxu0
      %v1229 = vadd.f32 %v1181, %v1228
      %1230 = vmatmul.f32.gmra.mxu0 %v681
      %v1231 = vpop.f32.mrf.mxu0
      %v1232 = vadd.f32 %v1181, %v1231
      %1233 = vmatmul.f32.gmra.mxu0 %v682
      %v1234 = vpop.f32.mrf.mxu0
      %v1235 = vadd.f32 %v1181, %v1234
      %1236 = vmatmul.f32.gmra.mxu0 %v683
      %v1237 = vpop.f32.mrf.mxu0
      %v1238 = vadd.f32 %v1181, %v1237
      %1239 = vmatmul.f32.gmra.mxu0 %v684
      %v1240 = vpop.f32.mrf.mxu0
      %v1241 = vadd.f32 %v1181, %v1240
      %1242 = vmatmul.f32.gmra.mxu0 %v685
      %v1243 = vpop.f32.mrf.mxu0
      %v1244 = vadd.f32 %v1181, %v1243
      %1245 = vmatmul.f32.gmra.mxu0 %v686
      %v1246 = vpop.f32.mrf.mxu0
      %v1247 = vadd.f32 %v1181, %v1246
      %1248 = vmatmul.f32.gmra.mxu0 %v687
      %v1249 = vpop.f32.mrf.mxu0
      %v1250 = vadd.f32 %v1181, %v1249
      %1251 = vmatmul.f32.gmra.mxu0 %v688
      %v1252 = vpop.f32.mrf.mxu0
      %v1253 = vadd.f32 %v1181, %v1252
      %1254 = vmatmul.f32.gmra.mxu0 %v689
      %v1255 = vpop.f32.mrf.mxu0
      %v1256 = vadd.f32 %v1181, %v1255
      %1257 = vmatmul.f32.gmra.mxu0 %v690
      %v1258 = vpop.f32.mrf.mxu0
      %v1259 = vadd.f32 %v1181, %v1258
      %1260 = vmatmul.f32.gmra.mxu0 %v691
      %v1261 = vpop.f32.mrf.mxu0
      %v1262 = vadd.f32 %v1181, %v1261
      %1263 = vmatmul.f32.gmra.mxu0 %v692
      %v1264 = vpop.f32.mrf.mxu0
      %v1265 = vadd.f32 %v1181, %v1264
      %1266 = vmatmul.f32.gmra.mxu0 %v693
      %v1267 = vpop.f32.mrf.mxu0
      %v1268 = vadd.f32 %v1181, %v1267
      %1269 = vmatmul.f32.gmra.mxu0 %v694
      %v1270 = vpop.f32.mrf.mxu0
      %v1271 = vadd.f32 %v1181, %v1270
      %1272 = vmatmul.f32.gmra.mxu0 %v695
      %v1273 = vpop.f32.mrf.mxu0
      %v1274 = vadd.f32 %v1181, %v1273
      %1275 = vmatmul.f32.gmra.mxu0 %v696
      %v1276 = vpop.f32.mrf.mxu0
      %v1277 = vadd.f32 %v1181, %v1276
      %1278 = vmatmul.f32.gmra.mxu0 %v697
      %v1279 = vpop.f32.mrf.mxu0
      %v1280 = vadd.f32 %v1181, %v1279
      %1281 = vmatmul.f32.gmra.mxu0 %v698
      %v1282 = vpop.f32.mrf.mxu0
      %v1283 = vadd.f32 %v1181, %v1282
      %1284 = vmatmul.f32.gmra.mxu0 %v699
      %v1285 = vpop.f32.mrf.mxu0
      %v1286 = vadd.f32 %v1181, %v1285
      %1287 = vmatmul.f32.gmra.mxu0 %v700
      %v1288 = vpop.f32.mrf.mxu0
      %v1289 = vadd.f32 %v1181, %v1288
      %1290 = vmatmul.f32.gmra.mxu0 %v701
      %v1291 = vpop.f32.mrf.mxu0
      %v1292 = vadd.f32 %v1181, %v1291
      %1293 = vmatmul.f32.gmra.mxu0 %v702
      %v1294 = vpop.f32.mrf.mxu0
      %v1295 = vadd.f32 %v1181, %v1294
      %1296 = vmatmul.f32.gmra.mxu0 %v703
      %v1297 = vpop.f32.mrf.mxu0
      %v1298 = vadd.f32 %v1181, %v1297
      %1299 = vdwg.mxu0
      %1300 = vmatpush.msra.mxu0 %v1177
      %1301 = vmatpush.msra.mxu0 %v1174
      %1302 = vmatpush.msra.mxu0 %v1171
      %1303 = vmatpush.msra.mxu0 %v1168
      %1304 = vmatpush.msra.mxu0 %v1165
      %1305 = vmatpush.msra.mxu0 %v1162
      %1306 = vmatpush.msra.mxu0 %v1159
      %1307 = vmatpush.msra.mxu0 %v1156
      %1308 = vmatpush.msra.mxu0 %v1153
      %1309 = vmatpush.msra.mxu0 %v1150
      %1310 = vmatpush.msra.mxu0 %v1147
      %1311 = vmatpush.msra.mxu0 %v1144
      %1312 = vmatpush.msra.mxu0 %v1141
      %1313 = vmatpush.msra.mxu0 %v1138
      %1314 = vmatpush.msra.mxu0 %v1135
      %1315 = vmatpush.msra.mxu0 %v1132
      %1316 = vmatmul.f32.gmra.mxu0 %v672
      %v1317 = vpop.f32.mrf.mxu0
      %v1318 = vadd.f32 %v1182, %v1317
      %1319 = vmatmul.f32.gmra.mxu0 %v673
      %v1320 = vpop.f32.mrf.mxu0
      %v1321 = vadd.f32 %v1182, %v1320
      %1322 = vmatmul.f32.gmra.mxu0 %v674
      %v1323 = vpop.f32.mrf.mxu0
      %v1324 = vadd.f32 %v1182, %v1323
      %1325 = vmatmul.f32.gmra.mxu0 %v675
      %v1326 = vpop.f32.mrf.mxu0
      %v1327 = vadd.f32 %v1182, %v1326
      %1328 = vmatmul.f32.gmra.mxu0 %v676
      %v1329 = vpop.f32.mrf.mxu0
      %v1330 = vadd.f32 %v1182, %v1329
      %1331 = vmatmul.f32.gmra.mxu0 %v677
      %v1332 = vpop.f32.mrf.mxu0
      %v1333 = vadd.f32 %v1182, %v1332
      %1334 = vmatmul.f32.gmra.mxu0 %v678
      %v1335 = vpop.f32.mrf.mxu0
      %v1336 = vadd.f32 %v1182, %v1335
      %1337 = vmatmul.f32.gmra.mxu0 %v679
      %v1338 = vpop.f32.mrf.mxu0
      %v1339 = vadd.f32 %v1182, %v1338
      %1340 = vmatmul.f32.gmra.mxu0 %v680
      %v1341 = vpop.f32.mrf.mxu0
      %v1342 = vadd.f32 %v1182, %v1341
      %1343 = vmatmul.f32.gmra.mxu0 %v681
      %v1344 = vpop.f32.mrf.mxu0
      %v1345 = vadd.f32 %v1182, %v1344
      %1346 = vmatmul.f32.gmra.mxu0 %v682
      %v1347 = vpop.f32.mrf.mxu0
      %v1348 = vadd.f32 %v1182, %v1347
      %1349 = vmatmul.f32.gmra.mxu0 %v683
      %v1350 = vpop.f32.mrf.mxu0
      %v1351 = vadd.f32 %v1182, %v1350
      %1352 = vmatmul.f32.gmra.mxu0 %v684
      %v1353 = vpop.f32.mrf.mxu0
      %v1354 = vadd.f32 %v1182, %v1353
      %1355 = vmatmul.f32.gmra.mxu0 %v685
      %v1356 = vpop.f32.mrf.mxu0
      %v1357 = vadd.f32 %v1182, %v1356
      %1358 = vmatmul.f32.gmra.mxu0 %v686
      %v1359 = vpop.f32.mrf.mxu0
      %v1360 = vadd.f32 %v1182, %v1359
      %1361 = vmatmul.f32.gmra.mxu0 %v687
      %v1362 = vpop.f32.mrf.mxu0
      %v1363 = vadd.f32 %v1182, %v1362
      %1364 = vmatmul.f32.gmra.mxu0 %v688
      %v1365 = vpop.f32.mrf.mxu0
      %v1366 = vadd.f32 %v1182, %v1365
      %1367 = vmatmul.f32.gmra.mxu0 %v689
      %v1368 = vpop.f32.mrf.mxu0
      %v1369 = vadd.f32 %v1182, %v1368
      %1370 = vmatmul.f32.gmra.mxu0 %v690
      %v1371 = vpop.f32.mrf.mxu0
      %v1372 = vadd.f32 %v1182, %v1371
      %1373 = vmatmul.f32.gmra.mxu0 %v691
      %v1374 = vpop.f32.mrf.mxu0
      %v1375 = vadd.f32 %v1182, %v1374
      %1376 = vmatmul.f32.gmra.mxu0 %v692
      %v1377 = vpop.f32.mrf.mxu0
      %v1378 = vadd.f32 %v1182, %v1377
      %1379 = vmatmul.f32.gmra.mxu0 %v693
      %v1380 = vpop.f32.mrf.mxu0
      %v1381 = vadd.f32 %v1182, %v1380
      %1382 = vmatmul.f32.gmra.mxu0 %v694
      %v1383 = vpop.f32.mrf.mxu0
      %v1384 = vadd.f32 %v1182, %v1383
      %1385 = vmatmul.f32.gmra.mxu0 %v695
      %v1386 = vpop.f32.mrf.mxu0
      %v1387 = vadd.f32 %v1182, %v1386
      %1388 = vmatmul.f32.gmra.mxu0 %v696
      %v1389 = vpop.f32.mrf.mxu0
      %v1390 = vadd.f32 %v1182, %v1389
      %1391 = vmatmul.f32.gmra.mxu0 %v697
      %v1392 = vpop.f32.mrf.mxu0
      %v1393 = vadd.f32 %v1182, %v1392
      %1394 = vmatmul.f32.gmra.mxu0 %v698
      %v1395 = vpop.f32.mrf.mxu0
      %v1396 = vadd.f32 %v1182, %v1395
      %1397 = vmatmul.f32.gmra.mxu0 %v699
      %v1398 = vpop.f32.mrf.mxu0
      %v1399 = vadd.f32 %v1182, %v1398
      %1400 = vmatmul.f32.gmra.mxu0 %v700
      %v1401 = vpop.f32.mrf.mxu0
      %v1402 = vadd.f32 %v1182, %v1401
      %1403 = vmatmul.f32.gmra.mxu0 %v701
      %v1404 = vpop.f32.mrf.mxu0
      %v1405 = vadd.f32 %v1182, %v1404
      %1406 = vmatmul.f32.gmra.mxu0 %v702
      %v1407 = vpop.f32.mrf.mxu0
      %v1408 = vadd.f32 %v1182, %v1407
      %1409 = vmatmul.f32.gmra.mxu0 %v703
      %v1410 = vpop.f32.mrf.mxu0
      %v1411 = vadd.f32 %v1182, %v1410
      %1412 = vdwg.mxu0
      %1413 = vmatpush.msra.mxu0 %v1178
      %1414 = vmatpush.msra.mxu0 %v1175
      %1415 = vmatpush.msra.mxu0 %v1172
      %1416 = vmatpush.msra.mxu0 %v1169
      %1417 = vmatpush.msra.mxu0 %v1166
      %1418 = vmatpush.msra.mxu0 %v1163
      %1419 = vmatpush.msra.mxu0 %v1160
      %1420 = vmatpush.msra.mxu0 %v1157
      %1421 = vmatpush.msra.mxu0 %v1154
      %1422 = vmatpush.msra.mxu0 %v1151
      %1423 = vmatpush.msra.mxu0 %v1148
      %1424 = vmatpush.msra.mxu0 %v1145
      %1425 = vmatpush.msra.mxu0 %v1142
      %1426 = vmatpush.msra.mxu0 %v1139
      %1427 = vmatpush.msra.mxu0 %v1136
      %1428 = vmatpush.msra.mxu0 %v1133
      %1429 = vmatmul.f32.gmra.mxu0 %v672
      %v1430 = vpop.f32.mrf.mxu0
      %v1431 = vadd.f32 %v1183, %v1430
      %1432 = vmatmul.f32.gmra.mxu0 %v673
      %v1433 = vpop.f32.mrf.mxu0
      %v1434 = vadd.f32 %v1183, %v1433
      %1435 = vmatmul.f32.gmra.mxu0 %v674
      %v1436 = vpop.f32.mrf.mxu0
      %v1437 = vadd.f32 %v1183, %v1436
      %1438 = vmatmul.f32.gmra.mxu0 %v675
      %v1439 = vpop.f32.mrf.mxu0
      %v1440 = vadd.f32 %v1183, %v1439
      %1441 = vmatmul.f32.gmra.mxu0 %v676
      %v1442 = vpop.f32.mrf.mxu0
      %v1443 = vadd.f32 %v1183, %v1442
      %1444 = vmatmul.f32.gmra.mxu0 %v677
      %v1445 = vpop.f32.mrf.mxu0
      %v1446 = vadd.f32 %v1183, %v1445
      %1447 = vmatmul.f32.gmra.mxu0 %v678
      %v1448 = vpop.f32.mrf.mxu0
      %v1449 = vadd.f32 %v1183, %v1448
      %1450 = vmatmul.f32.gmra.mxu0 %v679
      %v1451 = vpop.f32.mrf.mxu0
      %v1452 = vadd.f32 %v1183, %v1451
      %1453 = vmatmul.f32.gmra.mxu0 %v680
      %v1454 = vpop.f32.mrf.mxu0
      %v1455 = vadd.f32 %v1183, %v1454
      %1456 = vmatmul.f32.gmra.mxu0 %v681
      %v1457 = vpop.f32.mrf.mxu0
      %v1458 = vadd.f32 %v1183, %v1457
      %1459 = vmatmul.f32.gmra.mxu0 %v682
      %v1460 = vpop.f32.mrf.mxu0
      %v1461 = vadd.f32 %v1183, %v1460
      %1462 = vmatmul.f32.gmra.mxu0 %v683
      %v1463 = vpop.f32.mrf.mxu0
      %v1464 = vadd.f32 %v1183, %v1463
      %1465 = vmatmul.f32.gmra.mxu0 %v684
      %v1466 = vpop.f32.mrf.mxu0
      %v1467 = vadd.f32 %v1183, %v1466
      %1468 = vmatmul.f32.gmra.mxu0 %v685
      %v1469 = vpop.f32.mrf.mxu0
      %v1470 = vadd.f32 %v1183, %v1469
      %1471 = vmatmul.f32.gmra.mxu0 %v686
      %v1472 = vpop.f32.mrf.mxu0
      %v1473 = vadd.f32 %v1183, %v1472
      %1474 = vmatmul.f32.gmra.mxu0 %v687
      %v1475 = vpop.f32.mrf.mxu0
      %v1476 = vadd.f32 %v1183, %v1475
      %1477 = vmatmul.f32.gmra.mxu0 %v688
      %v1478 = vpop.f32.mrf.mxu0
      %v1479 = vadd.f32 %v1183, %v1478
      %1480 = vmatmul.f32.gmra.mxu0 %v689
      %v1481 = vpop.f32.mrf.mxu0
      %v1482 = vadd.f32 %v1183, %v1481
      %1483 = vmatmul.f32.gmra.mxu0 %v690
      %v1484 = vpop.f32.mrf.mxu0
      %v1485 = vadd.f32 %v1183, %v1484
      %1486 = vmatmul.f32.gmra.mxu0 %v691
      %v1487 = vpop.f32.mrf.mxu0
      %v1488 = vadd.f32 %v1183, %v1487
      %1489 = vmatmul.f32.gmra.mxu0 %v692
      %v1490 = vpop.f32.mrf.mxu0
      %v1491 = vadd.f32 %v1183, %v1490
      %1492 = vmatmul.f32.gmra.mxu0 %v693
      %v1493 = vpop.f32.mrf.mxu0
      %v1494 = vadd.f32 %v1183, %v1493
      %1495 = vmatmul.f32.gmra.mxu0 %v694
      %v1496 = vpop.f32.mrf.mxu0
      %v1497 = vadd.f32 %v1183, %v1496
      %1498 = vmatmul.f32.gmra.mxu0 %v695
      %v1499 = vpop.f32.mrf.mxu0
      %v1500 = vadd.f32 %v1183, %v1499
      %1501 = vmatmul.f32.gmra.mxu0 %v696
      %v1502 = vpop.f32.mrf.mxu0
      %v1503 = vadd.f32 %v1183, %v1502
      %1504 = vmatmul.f32.gmra.mxu0 %v697
      %v1505 = vpop.f32.mrf.mxu0
      %v1506 = vadd.f32 %v1183, %v1505
      %1507 = vmatmul.f32.gmra.mxu0 %v698
      %v1508 = vpop.f32.mrf.mxu0
      %v1509 = vadd.f32 %v1183, %v1508
      %1510 = vmatmul.f32.gmra.mxu0 %v699
      %v1511 = vpop.f32.mrf.mxu0
      %v1512 = vadd.f32 %v1183, %v1511
      %1513 = vmatmul.f32.gmra.mxu0 %v700
      %v1514 = vpop.f32.mrf.mxu0
      %v1515 = vadd.f32 %v1183, %v1514
      %1516 = vmatmul.f32.gmra.mxu0 %v701
      %v1517 = vpop.f32.mrf.mxu0
      %v1518 = vadd.f32 %v1183, %v1517
      %1519 = vmatmul.f32.gmra.mxu0 %v702
      %v1520 = vpop.f32.mrf.mxu0
      %v1521 = vadd.f32 %v1183, %v1520
      %1522 = vmatmul.f32.gmra.mxu0 %v703
      %v1523 = vpop.f32.mrf.mxu0
      %v1524 = vadd.f32 %v1183, %v1523
      %1525 = vdwg.mxu0
      %v1526 = vadd.f32 %v810, %v1205
      %v1527 = vadd.f32 %v813, %v1208
      %v1528 = vadd.f32 %v816, %v1211
      %v1529 = vadd.f32 %v819, %v1214
      %v1530 = vadd.f32 %v822, %v1217
      %v1531 = vadd.f32 %v825, %v1220
      %v1532 = vadd.f32 %v828, %v1223
      %v1533 = vadd.f32 %v831, %v1226
      %v1534 = vadd.f32 %v834, %v1229
      %v1535 = vadd.f32 %v837, %v1232
      %v1536 = vadd.f32 %v840, %v1235
      %v1537 = vadd.f32 %v843, %v1238
      %v1538 = vadd.f32 %v846, %v1241
      %v1539 = vadd.f32 %v849, %v1244
      %v1540 = vadd.f32 %v852, %v1247
      %v1541 = vadd.f32 %v855, %v1250
      %v1542 = vadd.f32 %v858, %v1253
      %v1543 = vadd.f32 %v861, %v1256
      %v1544 = vadd.f32 %v864, %v1259
      %v1545 = vadd.f32 %v867, %v1262
      %v1546 = vadd.f32 %v870, %v1265
      %v1547 = vadd.f32 %v873, %v1268
      %v1548 = vadd.f32 %v876, %v1271
      %v1549 = vadd.f32 %v879, %v1274
      %v1550 = vadd.f32 %v882, %v1277
      %v1551 = vadd.f32 %v885, %v1280
      %v1552 = vadd.f32 %v888, %v1283
      %v1553 = vadd.f32 %v891, %v1286
      %v1554 = vadd.f32 %v894, %v1289
      %v1555 = vadd.f32 %v897, %v1292
      %v1556 = vadd.f32 %v900, %v1295
      %v1557 = vadd.f32 %v903, %v1298
      %v1558 = vxor.u32 %v1526, 2147483648
      %v1559 = vxor.u32 %v1527, 2147483648
      %v1560 = vxor.u32 %v1528, 2147483648
      %v1561 = vxor.u32 %v1529, 2147483648
      %v1562 = vxor.u32 %v1530, 2147483648
      %v1563 = vxor.u32 %v1531, 2147483648
      %v1564 = vxor.u32 %v1532, 2147483648
      %v1565 = vxor.u32 %v1533, 2147483648
      %v1566 = vxor.u32 %v1534, 2147483648
      %v1567 = vxor.u32 %v1535, 2147483648
      %v1568 = vxor.u32 %v1536, 2147483648
      %v1569 = vxor.u32 %v1537, 2147483648
      %v1570 = vxor.u32 %v1538, 2147483648
      %v1571 = vxor.u32 %v1539, 2147483648
      %v1572 = vxor.u32 %v1540, 2147483648
      %v1573 = vxor.u32 %v1541, 2147483648
      %v1574 = vxor.u32 %v1542, 2147483648
      %v1575 = vxor.u32 %v1543, 2147483648
      %v1576 = vxor.u32 %v1544, 2147483648
      %v1577 = vxor.u32 %v1545, 2147483648
      %v1578 = vxor.u32 %v1546, 2147483648
      %v1579 = vxor.u32 %v1547, 2147483648
      %v1580 = vxor.u32 %v1548, 2147483648
      %v1581 = vxor.u32 %v1549, 2147483648
      %v1582 = vxor.u32 %v1550, 2147483648
      %v1583 = vxor.u32 %v1551, 2147483648
      %v1584 = vxor.u32 %v1552, 2147483648
      %v1585 = vxor.u32 %v1553, 2147483648
      %v1586 = vxor.u32 %v1554, 2147483648
      %v1587 = vxor.u32 %v1555, 2147483648
      %v1588 = vxor.u32 %v1556, 2147483648
      %v1589 = vxor.u32 %v1557, 2147483648
      %v1590 = vmul.f32 %v1558, 1.442695
      %v1591 = vpow.pop %v1590
      %v1592 = vmul.f32 %v1559, 1.442695
      %v1593 = vpow.pop %v1592
      %v1594 = vmul.f32 %v1560, 1.442695
      %v1595 = vpow.pop %v1594
      %v1596 = vmul.f32 %v1561, 1.442695
      %v1597 = vpow.pop %v1596
      %v1598 = vmul.f32 %v1562, 1.442695
      %v1599 = vpow.pop %v1598
      %v1600 = vmul.f32 %v1563, 1.442695
      %v1601 = vpow.pop %v1600
      %v1602 = vmul.f32 %v1564, 1.442695
      %v1603 = vpow.pop %v1602
      %v1604 = vmul.f32 %v1565, 1.442695
      %v1605 = vpow.pop %v1604
      %v1606 = vmul.f32 %v1566, 1.442695
      %v1607 = vpow.pop %v1606
      %v1608 = vmul.f32 %v1567, 1.442695
      %v1609 = vpow.pop %v1608
      %v1610 = vmul.f32 %v1568, 1.442695
      %v1611 = vpow.pop %v1610
      %v1612 = vmul.f32 %v1569, 1.442695
      %v1613 = vpow.pop %v1612
      %v1614 = vmul.f32 %v1570, 1.442695
      %v1615 = vpow.pop %v1614
      %v1616 = vmul.f32 %v1571, 1.442695
      %v1617 = vpow.pop %v1616
      %v1618 = vmul.f32 %v1572, 1.442695
      %v1619 = vpow.pop %v1618
      %v1620 = vmul.f32 %v1573, 1.442695
      %v1621 = vpow.pop %v1620
      %v1622 = vmul.f32 %v1574, 1.442695
      %v1623 = vpow.pop %v1622
      %v1624 = vmul.f32 %v1575, 1.442695
      %v1625 = vpow.pop %v1624
      %v1626 = vmul.f32 %v1576, 1.442695
      %v1627 = vpow.pop %v1626
      %v1628 = vmul.f32 %v1577, 1.442695
      %v1629 = vpow.pop %v1628
      %v1630 = vmul.f32 %v1578, 1.442695
      %v1631 = vpow.pop %v1630
      %v1632 = vmul.f32 %v1579, 1.442695
      %v1633 = vpow.pop %v1632
      %v1634 = vmul.f32 %v1580, 1.442695
      %v1635 = vpow.pop %v1634
      %v1636 = vmul.f32 %v1581, 1.442695
      %v1637 = vpow.pop %v1636
      %v1638 = vmul.f32 %v1582, 1.442695
      %v1639 = vpow.pop %v1638
      %v1640 = vmul.f32 %v1583, 1.442695
      %v1641 = vpow.pop %v1640
      %v1642 = vmul.f32 %v1584, 1.442695
      %v1643 = vpow.pop %v1642
      %v1644 = vmul.f32 %v1585, 1.442695
      %v1645 = vpow.pop %v1644
      %v1646 = vmul.f32 %v1586, 1.442695
      %v1647 = vpow.pop %v1646
      %v1648 = vmul.f32 %v1587, 1.442695
      %v1649 = vpow.pop %v1648
      %v1650 = vmul.f32 %v1588, 1.442695
      %v1651 = vpow.pop %v1650
      %v1652 = vmul.f32 %v1589, 1.442695
      %v1653 = vpow.pop %v1652
      %v1654 = vadd.f32 %v1591, 1.0
      %v1655 = vadd.f32 %v1593, 1.0
      %v1656 = vadd.f32 %v1595, 1.0
      %v1657 = vadd.f32 %v1597, 1.0
      %v1658 = vadd.f32 %v1599, 1.0
      %v1659 = vadd.f32 %v1601, 1.0
      %v1660 = vadd.f32 %v1603, 1.0
      %v1661 = vadd.f32 %v1605, 1.0
      %v1662 = vadd.f32 %v1607, 1.0
      %v1663 = vadd.f32 %v1609, 1.0
      %v1664 = vadd.f32 %v1611, 1.0
      %v1665 = vadd.f32 %v1613, 1.0
      %v1666 = vadd.f32 %v1615, 1.0
      %v1667 = vadd.f32 %v1617, 1.0
      %v1668 = vadd.f32 %v1619, 1.0
      %v1669 = vadd.f32 %v1621, 1.0
      %v1670 = vadd.f32 %v1623, 1.0
      %v1671 = vadd.f32 %v1625, 1.0
      %v1672 = vadd.f32 %v1627, 1.0
      %v1673 = vadd.f32 %v1629, 1.0
      %v1674 = vadd.f32 %v1631, 1.0
      %v1675 = vadd.f32 %v1633, 1.0
      %v1676 = vadd.f32 %v1635, 1.0
      %v1677 = vadd.f32 %v1637, 1.0
      %v1678 = vadd.f32 %v1639, 1.0
      %v1679 = vadd.f32 %v1641, 1.0
      %v1680 = vadd.f32 %v1643, 1.0
      %v1681 = vadd.f32 %v1645, 1.0
      %v1682 = vadd.f32 %v1647, 1.0
      %v1683 = vadd.f32 %v1649, 1.0
      %v1684 = vadd.f32 %v1651, 1.0
      %v1685 = vadd.f32 %v1653, 1.0
      %v1686 = vrcp.pop %v1654
      %v1687 = vmul.f32 %v1654, %v1686
      %v1688 = vsub.f32 1.0, %v1687
      %v1689 = vmul.f32 %v1686, %v1688
      %v1690 = vadd.f32 %v1686, %v1689
      %vm1691 = vweird.f32 %v1654
      %vm1692 = vweird.f32 %v1686
      %vm1693 = vmor %vm1691, %vm1692
      %v1694 = vsel %vm1693, %v1686, %v1690
      %v1695 = vand.u32 2147483647, %v1654
      %vm1696 = vcmp.eq.f32.partialorder %v1695, 8.507059e+37
      %v1697 = vand.u32 %v1654, 2147483648
      %v1698 = vor.u32 1.1754944e-38, %v1697
      %v1699 = vsel %vm1696, %v1698, %v1694
      %v1700 = vmul.f32 1.0, %v1699
      %v1701 = vrcp.pop %v1655
      %v1702 = vmul.f32 %v1655, %v1701
      %v1703 = vsub.f32 1.0, %v1702
      %v1704 = vmul.f32 %v1701, %v1703
      %v1705 = vadd.f32 %v1701, %v1704
      %vm1706 = vweird.f32 %v1655
      %vm1707 = vweird.f32 %v1701
      %vm1708 = vmor %vm1706, %vm1707
      %v1709 = vsel %vm1708, %v1701, %v1705
      %v1710 = vand.u32 2147483647, %v1655
      %vm1711 = vcmp.eq.f32.partialorder %v1710, 8.507059e+37
      %v1712 = vand.u32 %v1655, 2147483648
      %v1713 = vor.u32 1.1754944e-38, %v1712
      %v1714 = vsel %vm1711, %v1713, %v1709
      %v1715 = vmul.f32 1.0, %v1714
      %v1716 = vrcp.pop %v1656
      %v1717 = vmul.f32 %v1656, %v1716
      %v1718 = vsub.f32 1.0, %v1717
      %v1719 = vmul.f32 %v1716, %v1718
      %v1720 = vadd.f32 %v1716, %v1719
      %vm1721 = vweird.f32 %v1656
      %vm1722 = vweird.f32 %v1716
      %vm1723 = vmor %vm1721, %vm1722
      %v1724 = vsel %vm1723, %v1716, %v1720
      %v1725 = vand.u32 2147483647, %v1656
      %vm1726 = vcmp.eq.f32.partialorder %v1725, 8.507059e+37
      %v1727 = vand.u32 %v1656, 2147483648
      %v1728 = vor.u32 1.1754944e-38, %v1727
      %v1729 = vsel %vm1726, %v1728, %v1724
      %v1730 = vmul.f32 1.0, %v1729
      %v1731 = vrcp.pop %v1657
      %v1732 = vmul.f32 %v1657, %v1731
      %v1733 = vsub.f32 1.0, %v1732
      %v1734 = vmul.f32 %v1731, %v1733
      %v1735 = vadd.f32 %v1731, %v1734
      %vm1736 = vweird.f32 %v1657
      %vm1737 = vweird.f32 %v1731
      %vm1738 = vmor %vm1736, %vm1737
      %v1739 = vsel %vm1738, %v1731, %v1735
      %v1740 = vand.u32 2147483647, %v1657
      %vm1741 = vcmp.eq.f32.partialorder %v1740, 8.507059e+37
      %v1742 = vand.u32 %v1657, 2147483648
      %v1743 = vor.u32 1.1754944e-38, %v1742
      %v1744 = vsel %vm1741, %v1743, %v1739
      %v1745 = vmul.f32 1.0, %v1744
      %v1746 = vrcp.pop %v1658
      %v1747 = vmul.f32 %v1658, %v1746
      %v1748 = vsub.f32 1.0, %v1747
      %v1749 = vmul.f32 %v1746, %v1748
      %v1750 = vadd.f32 %v1746, %v1749
      %vm1751 = vweird.f32 %v1658
      %vm1752 = vweird.f32 %v1746
      %vm1753 = vmor %vm1751, %vm1752
      %v1754 = vsel %vm1753, %v1746, %v1750
      %v1755 = vand.u32 2147483647, %v1658
      %vm1756 = vcmp.eq.f32.partialorder %v1755, 8.507059e+37
      %v1757 = vand.u32 %v1658, 2147483648
      %v1758 = vor.u32 1.1754944e-38, %v1757
      %v1759 = vsel %vm1756, %v1758, %v1754
      %v1760 = vmul.f32 1.0, %v1759
      %v1761 = vrcp.pop %v1659
      %v1762 = vmul.f32 %v1659, %v1761
      %v1763 = vsub.f32 1.0, %v1762
      %v1764 = vmul.f32 %v1761, %v1763
      %v1765 = vadd.f32 %v1761, %v1764
      %vm1766 = vweird.f32 %v1659
      %vm1767 = vweird.f32 %v1761
      %vm1768 = vmor %vm1766, %vm1767
      %v1769 = vsel %vm1768, %v1761, %v1765
      %v1770 = vand.u32 2147483647, %v1659
      %vm1771 = vcmp.eq.f32.partialorder %v1770, 8.507059e+37
      %v1772 = vand.u32 %v1659, 2147483648
      %v1773 = vor.u32 1.1754944e-38, %v1772
      %v1774 = vsel %vm1771, %v1773, %v1769
      %v1775 = vmul.f32 1.0, %v1774
      %v1776 = vrcp.pop %v1660
      %v1777 = vmul.f32 %v1660, %v1776
      %v1778 = vsub.f32 1.0, %v1777
      %v1779 = vmul.f32 %v1776, %v1778
      %v1780 = vadd.f32 %v1776, %v1779
      %vm1781 = vweird.f32 %v1660
      %vm1782 = vweird.f32 %v1776
      %vm1783 = vmor %vm1781, %vm1782
      %v1784 = vsel %vm1783, %v1776, %v1780
      %v1785 = vand.u32 2147483647, %v1660
      %vm1786 = vcmp.eq.f32.partialorder %v1785, 8.507059e+37
      %v1787 = vand.u32 %v1660, 2147483648
      %v1788 = vor.u32 1.1754944e-38, %v1787
      %v1789 = vsel %vm1786, %v1788, %v1784
      %v1790 = vmul.f32 1.0, %v1789
      %v1791 = vrcp.pop %v1661
      %v1792 = vmul.f32 %v1661, %v1791
      %v1793 = vsub.f32 1.0, %v1792
      %v1794 = vmul.f32 %v1791, %v1793
      %v1795 = vadd.f32 %v1791, %v1794
      %vm1796 = vweird.f32 %v1661
      %vm1797 = vweird.f32 %v1791
      %vm1798 = vmor %vm1796, %vm1797
      %v1799 = vsel %vm1798, %v1791, %v1795
      %v1800 = vand.u32 2147483647, %v1661
      %vm1801 = vcmp.eq.f32.partialorder %v1800, 8.507059e+37
      %v1802 = vand.u32 %v1661, 2147483648
      %v1803 = vor.u32 1.1754944e-38, %v1802
      %v1804 = vsel %vm1801, %v1803, %v1799
      %v1805 = vmul.f32 1.0, %v1804
      %v1806 = vrcp.pop %v1662
      %v1807 = vmul.f32 %v1662, %v1806
      %v1808 = vsub.f32 1.0, %v1807
      %v1809 = vmul.f32 %v1806, %v1808
      %v1810 = vadd.f32 %v1806, %v1809
      %vm1811 = vweird.f32 %v1662
      %vm1812 = vweird.f32 %v1806
      %vm1813 = vmor %vm1811, %vm1812
      %v1814 = vsel %vm1813, %v1806, %v1810
      %v1815 = vand.u32 2147483647, %v1662
      %vm1816 = vcmp.eq.f32.partialorder %v1815, 8.507059e+37
      %v1817 = vand.u32 %v1662, 2147483648
      %v1818 = vor.u32 1.1754944e-38, %v1817
      %v1819 = vsel %vm1816, %v1818, %v1814
      %v1820 = vmul.f32 1.0, %v1819
      %v1821 = vrcp.pop %v1663
      %v1822 = vmul.f32 %v1663, %v1821
      %v1823 = vsub.f32 1.0, %v1822
      %v1824 = vmul.f32 %v1821, %v1823
      %v1825 = vadd.f32 %v1821, %v1824
      %vm1826 = vweird.f32 %v1663
      %vm1827 = vweird.f32 %v1821
      %vm1828 = vmor %vm1826, %vm1827
      %v1829 = vsel %vm1828, %v1821, %v1825
      %v1830 = vand.u32 2147483647, %v1663
      %vm1831 = vcmp.eq.f32.partialorder %v1830, 8.507059e+37
      %v1832 = vand.u32 %v1663, 2147483648
      %v1833 = vor.u32 1.1754944e-38, %v1832
      %v1834 = vsel %vm1831, %v1833, %v1829
      %v1835 = vmul.f32 1.0, %v1834
      %v1836 = vrcp.pop %v1664
      %v1837 = vmul.f32 %v1664, %v1836
      %v1838 = vsub.f32 1.0, %v1837
      %v1839 = vmul.f32 %v1836, %v1838
      %v1840 = vadd.f32 %v1836, %v1839
      %vm1841 = vweird.f32 %v1664
      %vm1842 = vweird.f32 %v1836
      %vm1843 = vmor %vm1841, %vm1842
      %v1844 = vsel %vm1843, %v1836, %v1840
      %v1845 = vand.u32 2147483647, %v1664
      %vm1846 = vcmp.eq.f32.partialorder %v1845, 8.507059e+37
      %v1847 = vand.u32 %v1664, 2147483648
      %v1848 = vor.u32 1.1754944e-38, %v1847
      %v1849 = vsel %vm1846, %v1848, %v1844
      %v1850 = vmul.f32 1.0, %v1849
      %v1851 = vrcp.pop %v1665
      %v1852 = vmul.f32 %v1665, %v1851
      %v1853 = vsub.f32 1.0, %v1852
      %v1854 = vmul.f32 %v1851, %v1853
      %v1855 = vadd.f32 %v1851, %v1854
      %vm1856 = vweird.f32 %v1665
      %vm1857 = vweird.f32 %v1851
      %vm1858 = vmor %vm1856, %vm1857
      %v1859 = vsel %vm1858, %v1851, %v1855
      %v1860 = vand.u32 2147483647, %v1665
      %vm1861 = vcmp.eq.f32.partialorder %v1860, 8.507059e+37
      %v1862 = vand.u32 %v1665, 2147483648
      %v1863 = vor.u32 1.1754944e-38, %v1862
      %v1864 = vsel %vm1861, %v1863, %v1859
      %v1865 = vmul.f32 1.0, %v1864
      %v1866 = vrcp.pop %v1666
      %v1867 = vmul.f32 %v1666, %v1866
      %v1868 = vsub.f32 1.0, %v1867
      %v1869 = vmul.f32 %v1866, %v1868
      %v1870 = vadd.f32 %v1866, %v1869
      %vm1871 = vweird.f32 %v1666
      %vm1872 = vweird.f32 %v1866
      %vm1873 = vmor %vm1871, %vm1872
      %v1874 = vsel %vm1873, %v1866, %v1870
      %v1875 = vand.u32 2147483647, %v1666
      %vm1876 = vcmp.eq.f32.partialorder %v1875, 8.507059e+37
      %v1877 = vand.u32 %v1666, 2147483648
      %v1878 = vor.u32 1.1754944e-38, %v1877
      %v1879 = vsel %vm1876, %v1878, %v1874
      %v1880 = vmul.f32 1.0, %v1879
      %v1881 = vrcp.pop %v1667
      %v1882 = vmul.f32 %v1667, %v1881
      %v1883 = vsub.f32 1.0, %v1882
      %v1884 = vmul.f32 %v1881, %v1883
      %v1885 = vadd.f32 %v1881, %v1884
      %vm1886 = vweird.f32 %v1667
      %vm1887 = vweird.f32 %v1881
      %vm1888 = vmor %vm1886, %vm1887
      %v1889 = vsel %vm1888, %v1881, %v1885
      %v1890 = vand.u32 2147483647, %v1667
      %vm1891 = vcmp.eq.f32.partialorder %v1890, 8.507059e+37
      %v1892 = vand.u32 %v1667, 2147483648
      %v1893 = vor.u32 1.1754944e-38, %v1892
      %v1894 = vsel %vm1891, %v1893, %v1889
      %v1895 = vmul.f32 1.0, %v1894
      %v1896 = vrcp.pop %v1668
      %v1897 = vmul.f32 %v1668, %v1896
      %v1898 = vsub.f32 1.0, %v1897
      %v1899 = vmul.f32 %v1896, %v1898
      %v1900 = vadd.f32 %v1896, %v1899
      %vm1901 = vweird.f32 %v1668
      %vm1902 = vweird.f32 %v1896
      %vm1903 = vmor %vm1901, %vm1902
      %v1904 = vsel %vm1903, %v1896, %v1900
      %v1905 = vand.u32 2147483647, %v1668
      %vm1906 = vcmp.eq.f32.partialorder %v1905, 8.507059e+37
      %v1907 = vand.u32 %v1668, 2147483648
      %v1908 = vor.u32 1.1754944e-38, %v1907
      %v1909 = vsel %vm1906, %v1908, %v1904
      %v1910 = vmul.f32 1.0, %v1909
      %v1911 = vrcp.pop %v1669
      %v1912 = vmul.f32 %v1669, %v1911
      %v1913 = vsub.f32 1.0, %v1912
      %v1914 = vmul.f32 %v1911, %v1913
      %v1915 = vadd.f32 %v1911, %v1914
      %vm1916 = vweird.f32 %v1669
      %vm1917 = vweird.f32 %v1911
      %vm1918 = vmor %vm1916, %vm1917
      %v1919 = vsel %vm1918, %v1911, %v1915
      %v1920 = vand.u32 2147483647, %v1669
      %vm1921 = vcmp.eq.f32.partialorder %v1920, 8.507059e+37
      %v1922 = vand.u32 %v1669, 2147483648
      %v1923 = vor.u32 1.1754944e-38, %v1922
      %v1924 = vsel %vm1921, %v1923, %v1919
      %v1925 = vmul.f32 1.0, %v1924
      %v1926 = vrcp.pop %v1670
      %v1927 = vmul.f32 %v1670, %v1926
      %v1928 = vsub.f32 1.0, %v1927
      %v1929 = vmul.f32 %v1926, %v1928
      %v1930 = vadd.f32 %v1926, %v1929
      %vm1931 = vweird.f32 %v1670
      %vm1932 = vweird.f32 %v1926
      %vm1933 = vmor %vm1931, %vm1932
      %v1934 = vsel %vm1933, %v1926, %v1930
      %v1935 = vand.u32 2147483647, %v1670
      %vm1936 = vcmp.eq.f32.partialorder %v1935, 8.507059e+37
      %v1937 = vand.u32 %v1670, 2147483648
      %v1938 = vor.u32 1.1754944e-38, %v1937
      %v1939 = vsel %vm1936, %v1938, %v1934
      %v1940 = vmul.f32 1.0, %v1939
      %v1941 = vrcp.pop %v1671
      %v1942 = vmul.f32 %v1671, %v1941
      %v1943 = vsub.f32 1.0, %v1942
      %v1944 = vmul.f32 %v1941, %v1943
      %v1945 = vadd.f32 %v1941, %v1944
      %vm1946 = vweird.f32 %v1671
      %vm1947 = vweird.f32 %v1941
      %vm1948 = vmor %vm1946, %vm1947
      %v1949 = vsel %vm1948, %v1941, %v1945
      %v1950 = vand.u32 2147483647, %v1671
      %vm1951 = vcmp.eq.f32.partialorder %v1950, 8.507059e+37
      %v1952 = vand.u32 %v1671, 2147483648
      %v1953 = vor.u32 1.1754944e-38, %v1952
      %v1954 = vsel %vm1951, %v1953, %v1949
      %v1955 = vmul.f32 1.0, %v1954
      %v1956 = vrcp.pop %v1672
      %v1957 = vmul.f32 %v1672, %v1956
      %v1958 = vsub.f32 1.0, %v1957
      %v1959 = vmul.f32 %v1956, %v1958
      %v1960 = vadd.f32 %v1956, %v1959
      %vm1961 = vweird.f32 %v1672
      %vm1962 = vweird.f32 %v1956
      %vm1963 = vmor %vm1961, %vm1962
      %v1964 = vsel %vm1963, %v1956, %v1960
      %v1965 = vand.u32 2147483647, %v1672
      %vm1966 = vcmp.eq.f32.partialorder %v1965, 8.507059e+37
      %v1967 = vand.u32 %v1672, 2147483648
      %v1968 = vor.u32 1.1754944e-38, %v1967
      %v1969 = vsel %vm1966, %v1968, %v1964
      %v1970 = vmul.f32 1.0, %v1969
      %v1971 = vrcp.pop %v1673
      %v1972 = vmul.f32 %v1673, %v1971
      %v1973 = vsub.f32 1.0, %v1972
      %v1974 = vmul.f32 %v1971, %v1973
      %v1975 = vadd.f32 %v1971, %v1974
      %vm1976 = vweird.f32 %v1673
      %vm1977 = vweird.f32 %v1971
      %vm1978 = vmor %vm1976, %vm1977
      %v1979 = vsel %vm1978, %v1971, %v1975
      %v1980 = vand.u32 2147483647, %v1673
      %vm1981 = vcmp.eq.f32.partialorder %v1980, 8.507059e+37
      %v1982 = vand.u32 %v1673, 2147483648
      %v1983 = vor.u32 1.1754944e-38, %v1982
      %v1984 = vsel %vm1981, %v1983, %v1979
      %v1985 = vmul.f32 1.0, %v1984
      %v1986 = vrcp.pop %v1674
      %v1987 = vmul.f32 %v1674, %v1986
      %v1988 = vsub.f32 1.0, %v1987
      %v1989 = vmul.f32 %v1986, %v1988
      %v1990 = vadd.f32 %v1986, %v1989
      %vm1991 = vweird.f32 %v1674
      %vm1992 = vweird.f32 %v1986
      %vm1993 = vmor %vm1991, %vm1992
      %v1994 = vsel %vm1993, %v1986, %v1990
      %v1995 = vand.u32 2147483647, %v1674
      %vm1996 = vcmp.eq.f32.partialorder %v1995, 8.507059e+37
      %v1997 = vand.u32 %v1674, 2147483648
      %v1998 = vor.u32 1.1754944e-38, %v1997
      %v1999 = vsel %vm1996, %v1998, %v1994
      %v2000 = vmul.f32 1.0, %v1999
      %v2001 = vrcp.pop %v1675
      %v2002 = vmul.f32 %v1675, %v2001
      %v2003 = vsub.f32 1.0, %v2002
      %v2004 = vmul.f32 %v2001, %v2003
      %v2005 = vadd.f32 %v2001, %v2004
      %vm2006 = vweird.f32 %v1675
      %vm2007 = vweird.f32 %v2001
      %vm2008 = vmor %vm2006, %vm2007
      %v2009 = vsel %vm2008, %v2001, %v2005
      %v2010 = vand.u32 2147483647, %v1675
      %vm2011 = vcmp.eq.f32.partialorder %v2010, 8.507059e+37
      %v2012 = vand.u32 %v1675, 2147483648
      %v2013 = vor.u32 1.1754944e-38, %v2012
      %v2014 = vsel %vm2011, %v2013, %v2009
      %v2015 = vmul.f32 1.0, %v2014
      %v2016 = vrcp.pop %v1676
      %v2017 = vmul.f32 %v1676, %v2016
      %v2018 = vsub.f32 1.0, %v2017
      %v2019 = vmul.f32 %v2016, %v2018
      %v2020 = vadd.f32 %v2016, %v2019
      %vm2021 = vweird.f32 %v1676
      %vm2022 = vweird.f32 %v2016
      %vm2023 = vmor %vm2021, %vm2022
      %v2024 = vsel %vm2023, %v2016, %v2020
      %v2025 = vand.u32 2147483647, %v1676
      %vm2026 = vcmp.eq.f32.partialorder %v2025, 8.507059e+37
      %v2027 = vand.u32 %v1676, 2147483648
      %v2028 = vor.u32 1.1754944e-38, %v2027
      %v2029 = vsel %vm2026, %v2028, %v2024
      %v2030 = vmul.f32 1.0, %v2029
      %v2031 = vrcp.pop %v1677
      %v2032 = vmul.f32 %v1677, %v2031
      %v2033 = vsub.f32 1.0, %v2032
      %v2034 = vmul.f32 %v2031, %v2033
      %v2035 = vadd.f32 %v2031, %v2034
      %vm2036 = vweird.f32 %v1677
      %vm2037 = vweird.f32 %v2031
      %vm2038 = vmor %vm2036, %vm2037
      %v2039 = vsel %vm2038, %v2031, %v2035
      %v2040 = vand.u32 2147483647, %v1677
      %vm2041 = vcmp.eq.f32.partialorder %v2040, 8.507059e+37
      %v2042 = vand.u32 %v1677, 2147483648
      %v2043 = vor.u32 1.1754944e-38, %v2042
      %v2044 = vsel %vm2041, %v2043, %v2039
      %v2045 = vmul.f32 1.0, %v2044
      %v2046 = vrcp.pop %v1678
      %v2047 = vmul.f32 %v1678, %v2046
      %v2048 = vsub.f32 1.0, %v2047
      %v2049 = vmul.f32 %v2046, %v2048
      %v2050 = vadd.f32 %v2046, %v2049
      %vm2051 = vweird.f32 %v1678
      %vm2052 = vweird.f32 %v2046
      %vm2053 = vmor %vm2051, %vm2052
      %v2054 = vsel %vm2053, %v2046, %v2050
      %v2055 = vand.u32 2147483647, %v1678
      %vm2056 = vcmp.eq.f32.partialorder %v2055, 8.507059e+37
      %v2057 = vand.u32 %v1678, 2147483648
      %v2058 = vor.u32 1.1754944e-38, %v2057
      %v2059 = vsel %vm2056, %v2058, %v2054
      %v2060 = vmul.f32 1.0, %v2059
      %v2061 = vrcp.pop %v1679
      %v2062 = vmul.f32 %v1679, %v2061
      %v2063 = vsub.f32 1.0, %v2062
      %v2064 = vmul.f32 %v2061, %v2063
      %v2065 = vadd.f32 %v2061, %v2064
      %vm2066 = vweird.f32 %v1679
      %vm2067 = vweird.f32 %v2061
      %vm2068 = vmor %vm2066, %vm2067
      %v2069 = vsel %vm2068, %v2061, %v2065
      %v2070 = vand.u32 2147483647, %v1679
      %vm2071 = vcmp.eq.f32.partialorder %v2070, 8.507059e+37
      %v2072 = vand.u32 %v1679, 2147483648
      %v2073 = vor.u32 1.1754944e-38, %v2072
      %v2074 = vsel %vm2071, %v2073, %v2069
      %v2075 = vmul.f32 1.0, %v2074
      %v2076 = vrcp.pop %v1680
      %v2077 = vmul.f32 %v1680, %v2076
      %v2078 = vsub.f32 1.0, %v2077
      %v2079 = vmul.f32 %v2076, %v2078
      %v2080 = vadd.f32 %v2076, %v2079
      %vm2081 = vweird.f32 %v1680
      %vm2082 = vweird.f32 %v2076
      %vm2083 = vmor %vm2081, %vm2082
      %v2084 = vsel %vm2083, %v2076, %v2080
      %v2085 = vand.u32 2147483647, %v1680
      %vm2086 = vcmp.eq.f32.partialorder %v2085, 8.507059e+37
      %v2087 = vand.u32 %v1680, 2147483648
      %v2088 = vor.u32 1.1754944e-38, %v2087
      %v2089 = vsel %vm2086, %v2088, %v2084
      %v2090 = vmul.f32 1.0, %v2089
      %v2091 = vrcp.pop %v1681
      %v2092 = vmul.f32 %v1681, %v2091
      %v2093 = vsub.f32 1.0, %v2092
      %v2094 = vmul.f32 %v2091, %v2093
      %v2095 = vadd.f32 %v2091, %v2094
      %vm2096 = vweird.f32 %v1681
      %vm2097 = vweird.f32 %v2091
      %vm2098 = vmor %vm2096, %vm2097
      %v2099 = vsel %vm2098, %v2091, %v2095
      %v2100 = vand.u32 2147483647, %v1681
      %vm2101 = vcmp.eq.f32.partialorder %v2100, 8.507059e+37
      %v2102 = vand.u32 %v1681, 2147483648
      %v2103 = vor.u32 1.1754944e-38, %v2102
      %v2104 = vsel %vm2101, %v2103, %v2099
      %v2105 = vmul.f32 1.0, %v2104
      %v2106 = vrcp.pop %v1682
      %v2107 = vmul.f32 %v1682, %v2106
      %v2108 = vsub.f32 1.0, %v2107
      %v2109 = vmul.f32 %v2106, %v2108
      %v2110 = vadd.f32 %v2106, %v2109
      %vm2111 = vweird.f32 %v1682
      %vm2112 = vweird.f32 %v2106
      %vm2113 = vmor %vm2111, %vm2112
      %v2114 = vsel %vm2113, %v2106, %v2110
      %v2115 = vand.u32 2147483647, %v1682
      %vm2116 = vcmp.eq.f32.partialorder %v2115, 8.507059e+37
      %v2117 = vand.u32 %v1682, 2147483648
      %v2118 = vor.u32 1.1754944e-38, %v2117
      %v2119 = vsel %vm2116, %v2118, %v2114
      %v2120 = vmul.f32 1.0, %v2119
      %v2121 = vrcp.pop %v1683
      %v2122 = vmul.f32 %v1683, %v2121
      %v2123 = vsub.f32 1.0, %v2122
      %v2124 = vmul.f32 %v2121, %v2123
      %v2125 = vadd.f32 %v2121, %v2124
      %vm2126 = vweird.f32 %v1683
      %vm2127 = vweird.f32 %v2121
      %vm2128 = vmor %vm2126, %vm2127
      %v2129 = vsel %vm2128, %v2121, %v2125
      %v2130 = vand.u32 2147483647, %v1683
      %vm2131 = vcmp.eq.f32.partialorder %v2130, 8.507059e+37
      %v2132 = vand.u32 %v1683, 2147483648
      %v2133 = vor.u32 1.1754944e-38, %v2132
      %v2134 = vsel %vm2131, %v2133, %v2129
      %v2135 = vmul.f32 1.0, %v2134
      %v2136 = vrcp.pop %v1684
      %v2137 = vmul.f32 %v1684, %v2136
      %v2138 = vsub.f32 1.0, %v2137
      %v2139 = vmul.f32 %v2136, %v2138
      %v2140 = vadd.f32 %v2136, %v2139
      %vm2141 = vweird.f32 %v1684
      %vm2142 = vweird.f32 %v2136
      %vm2143 = vmor %vm2141, %vm2142
      %v2144 = vsel %vm2143, %v2136, %v2140
      %v2145 = vand.u32 2147483647, %v1684
      %vm2146 = vcmp.eq.f32.partialorder %v2145, 8.507059e+37
      %v2147 = vand.u32 %v1684, 2147483648
      %v2148 = vor.u32 1.1754944e-38, %v2147
      %v2149 = vsel %vm2146, %v2148, %v2144
      %v2150 = vmul.f32 1.0, %v2149
      %v2151 = vrcp.pop %v1685
      %v2152 = vmul.f32 %v1685, %v2151
      %v2153 = vsub.f32 1.0, %v2152
      %v2154 = vmul.f32 %v2151, %v2153
      %v2155 = vadd.f32 %v2151, %v2154
      %vm2156 = vweird.f32 %v1685
      %vm2157 = vweird.f32 %v2151
      %vm2158 = vmor %vm2156, %vm2157
      %v2159 = vsel %vm2158, %v2151, %v2155
      %v2160 = vand.u32 2147483647, %v1685
      %vm2161 = vcmp.eq.f32.partialorder %v2160, 8.507059e+37
      %v2162 = vand.u32 %v1685, 2147483648
      %v2163 = vor.u32 1.1754944e-38, %v2162
      %v2164 = vsel %vm2161, %v2163, %v2159
      %v2165 = vmul.f32 1.0, %v2164
      %v2166 = vadd.f32 %v923, %v1318
      %v2167 = vadd.f32 %v926, %v1321
      %v2168 = vadd.f32 %v929, %v1324
      %v2169 = vadd.f32 %v932, %v1327
      %v2170 = vadd.f32 %v935, %v1330
      %v2171 = vadd.f32 %v938, %v1333
      %v2172 = vadd.f32 %v941, %v1336
      %v2173 = vadd.f32 %v944, %v1339
      %v2174 = vadd.f32 %v947, %v1342
      %v2175 = vadd.f32 %v950, %v1345
      %v2176 = vadd.f32 %v953, %v1348
      %v2177 = vadd.f32 %v956, %v1351
      %v2178 = vadd.f32 %v959, %v1354
      %v2179 = vadd.f32 %v962, %v1357
      %v2180 = vadd.f32 %v965, %v1360
      %v2181 = vadd.f32 %v968, %v1363
      %v2182 = vadd.f32 %v971, %v1366
      %v2183 = vadd.f32 %v974, %v1369
      %v2184 = vadd.f32 %v977, %v1372
      %v2185 = vadd.f32 %v980, %v1375
      %v2186 = vadd.f32 %v983, %v1378
      %v2187 = vadd.f32 %v986, %v1381
      %v2188 = vadd.f32 %v989, %v1384
      %v2189 = vadd.f32 %v992, %v1387
      %v2190 = vadd.f32 %v995, %v1390
      %v2191 = vadd.f32 %v998, %v1393
      %v2192 = vadd.f32 %v1001, %v1396
      %v2193 = vadd.f32 %v1004, %v1399
      %v2194 = vadd.f32 %v1007, %v1402
      %v2195 = vadd.f32 %v1010, %v1405
      %v2196 = vadd.f32 %v1013, %v1408
      %v2197 = vadd.f32 %v1016, %v1411
      %v2198 = vxor.u32 %v2166, 2147483648
      %v2199 = vxor.u32 %v2167, 2147483648
      %v2200 = vxor.u32 %v2168, 2147483648
      %v2201 = vxor.u32 %v2169, 2147483648
      %v2202 = vxor.u32 %v2170, 2147483648
      %v2203 = vxor.u32 %v2171, 2147483648
      %v2204 = vxor.u32 %v2172, 2147483648
      %v2205 = vxor.u32 %v2173, 2147483648
      %v2206 = vxor.u32 %v2174, 2147483648
      %v2207 = vxor.u32 %v2175, 2147483648
      %v2208 = vxor.u32 %v2176, 2147483648
      %v2209 = vxor.u32 %v2177, 2147483648
      %v2210 = vxor.u32 %v2178, 2147483648
      %v2211 = vxor.u32 %v2179, 2147483648
      %v2212 = vxor.u32 %v2180, 2147483648
      %v2213 = vxor.u32 %v2181, 2147483648
      %v2214 = vxor.u32 %v2182, 2147483648
      %v2215 = vxor.u32 %v2183, 2147483648
      %v2216 = vxor.u32 %v2184, 2147483648
      %v2217 = vxor.u32 %v2185, 2147483648
      %v2218 = vxor.u32 %v2186, 2147483648
      %v2219 = vxor.u32 %v2187, 2147483648
      %v2220 = vxor.u32 %v2188, 2147483648
      %v2221 = vxor.u32 %v2189, 2147483648
      %v2222 = vxor.u32 %v2190, 2147483648
      %v2223 = vxor.u32 %v2191, 2147483648
      %v2224 = vxor.u32 %v2192, 2147483648
      %v2225 = vxor.u32 %v2193, 2147483648
      %v2226 = vxor.u32 %v2194, 2147483648
      %v2227 = vxor.u32 %v2195, 2147483648
      %v2228 = vxor.u32 %v2196, 2147483648
      %v2229 = vxor.u32 %v2197, 2147483648
      %v2230 = vmul.f32 %v2198, 1.442695
      %v2231 = vpow.pop %v2230
      %v2232 = vmul.f32 %v2199, 1.442695
      %v2233 = vpow.pop %v2232
      %v2234 = vmul.f32 %v2200, 1.442695
      %v2235 = vpow.pop %v2234
      %v2236 = vmul.f32 %v2201, 1.442695
      %v2237 = vpow.pop %v2236
      %v2238 = vmul.f32 %v2202, 1.442695
      %v2239 = vpow.pop %v2238
      %v2240 = vmul.f32 %v2203, 1.442695
      %v2241 = vpow.pop %v2240
      %v2242 = vmul.f32 %v2204, 1.442695
      %v2243 = vpow.pop %v2242
      %v2244 = vmul.f32 %v2205, 1.442695
      %v2245 = vpow.pop %v2244
      %v2246 = vmul.f32 %v2206, 1.442695
      %v2247 = vpow.pop %v2246
      %v2248 = vmul.f32 %v2207, 1.442695
      %v2249 = vpow.pop %v2248
      %v2250 = vmul.f32 %v2208, 1.442695
      %v2251 = vpow.pop %v2250
      %v2252 = vmul.f32 %v2209, 1.442695
      %v2253 = vpow.pop %v2252
      %v2254 = vmul.f32 %v2210, 1.442695
      %v2255 = vpow.pop %v2254
      %v2256 = vmul.f32 %v2211, 1.442695
      %v2257 = vpow.pop %v2256
      %v2258 = vmul.f32 %v2212, 1.442695
      %v2259 = vpow.pop %v2258
      %v2260 = vmul.f32 %v2213, 1.442695
      %v2261 = vpow.pop %v2260
      %v2262 = vmul.f32 %v2214, 1.442695
      %v2263 = vpow.pop %v2262
      %v2264 = vmul.f32 %v2215, 1.442695
      %v2265 = vpow.pop %v2264
      %v2266 = vmul.f32 %v2216, 1.442695
      %v2267 = vpow.pop %v2266
      %v2268 = vmul.f32 %v2217, 1.442695
      %v2269 = vpow.pop %v2268
      %v2270 = vmul.f32 %v2218, 1.442695
      %v2271 = vpow.pop %v2270
      %v2272 = vmul.f32 %v2219, 1.442695
      %v2273 = vpow.pop %v2272
      %v2274 = vmul.f32 %v2220, 1.442695
      %v2275 = vpow.pop %v2274
      %v2276 = vmul.f32 %v2221, 1.442695
      %v2277 = vpow.pop %v2276
      %v2278 = vmul.f32 %v2222, 1.442695
      %v2279 = vpow.pop %v2278
      %v2280 = vmul.f32 %v2223, 1.442695
      %v2281 = vpow.pop %v2280
      %v2282 = vmul.f32 %v2224, 1.442695
      %v2283 = vpow.pop %v2282
      %v2284 = vmul.f32 %v2225, 1.442695
      %v2285 = vpow.pop %v2284
      %v2286 = vmul.f32 %v2226, 1.442695
      %v2287 = vpow.pop %v2286
      %v2288 = vmul.f32 %v2227, 1.442695
      %v2289 = vpow.pop %v2288
      %v2290 = vmul.f32 %v2228, 1.442695
      %v2291 = vpow.pop %v2290
      %v2292 = vmul.f32 %v2229, 1.442695
      %v2293 = vpow.pop %v2292
      %v2294 = vadd.f32 %v2231, 1.0
      %v2295 = vadd.f32 %v2233, 1.0
      %v2296 = vadd.f32 %v2235, 1.0
      %v2297 = vadd.f32 %v2237, 1.0
      %v2298 = vadd.f32 %v2239, 1.0
      %v2299 = vadd.f32 %v2241, 1.0
      %v2300 = vadd.f32 %v2243, 1.0
      %v2301 = vadd.f32 %v2245, 1.0
      %v2302 = vadd.f32 %v2247, 1.0
      %v2303 = vadd.f32 %v2249, 1.0
      %v2304 = vadd.f32 %v2251, 1.0
      %v2305 = vadd.f32 %v2253, 1.0
      %v2306 = vadd.f32 %v2255, 1.0
      %v2307 = vadd.f32 %v2257, 1.0
      %v2308 = vadd.f32 %v2259, 1.0
      %v2309 = vadd.f32 %v2261, 1.0
      %v2310 = vadd.f32 %v2263, 1.0
      %v2311 = vadd.f32 %v2265, 1.0
      %v2312 = vadd.f32 %v2267, 1.0
      %v2313 = vadd.f32 %v2269, 1.0
      %v2314 = vadd.f32 %v2271, 1.0
      %v2315 = vadd.f32 %v2273, 1.0
      %v2316 = vadd.f32 %v2275, 1.0
      %v2317 = vadd.f32 %v2277, 1.0
      %v2318 = vadd.f32 %v2279, 1.0
      %v2319 = vadd.f32 %v2281, 1.0
      %v2320 = vadd.f32 %v2283, 1.0
      %v2321 = vadd.f32 %v2285, 1.0
      %v2322 = vadd.f32 %v2287, 1.0
      %v2323 = vadd.f32 %v2289, 1.0
      %v2324 = vadd.f32 %v2291, 1.0
      %v2325 = vadd.f32 %v2293, 1.0
      %v2326 = vrcp.pop %v2294
      %v2327 = vmul.f32 %v2294, %v2326
      %v2328 = vsub.f32 1.0, %v2327
      %v2329 = vmul.f32 %v2326, %v2328
      %v2330 = vadd.f32 %v2326, %v2329
      %vm2331 = vweird.f32 %v2294
      %vm2332 = vweird.f32 %v2326
      %vm2333 = vmor %vm2331, %vm2332
      %v2334 = vsel %vm2333, %v2326, %v2330
      %v2335 = vand.u32 2147483647, %v2294
      %vm2336 = vcmp.eq.f32.partialorder %v2335, 8.507059e+37
      %v2337 = vand.u32 %v2294, 2147483648
      %v2338 = vor.u32 1.1754944e-38, %v2337
      %v2339 = vsel %vm2336, %v2338, %v2334
      %v2340 = vmul.f32 1.0, %v2339
      %v2341 = vrcp.pop %v2295
      %v2342 = vmul.f32 %v2295, %v2341
      %v2343 = vsub.f32 1.0, %v2342
      %v2344 = vmul.f32 %v2341, %v2343
      %v2345 = vadd.f32 %v2341, %v2344
      %vm2346 = vweird.f32 %v2295
      %vm2347 = vweird.f32 %v2341
      %vm2348 = vmor %vm2346, %vm2347
      %v2349 = vsel %vm2348, %v2341, %v2345
      %v2350 = vand.u32 2147483647, %v2295
      %vm2351 = vcmp.eq.f32.partialorder %v2350, 8.507059e+37
      %v2352 = vand.u32 %v2295, 2147483648
      %v2353 = vor.u32 1.1754944e-38, %v2352
      %v2354 = vsel %vm2351, %v2353, %v2349
      %v2355 = vmul.f32 1.0, %v2354
      %v2356 = vrcp.pop %v2296
      %v2357 = vmul.f32 %v2296, %v2356
      %v2358 = vsub.f32 1.0, %v2357
      %v2359 = vmul.f32 %v2356, %v2358
      %v2360 = vadd.f32 %v2356, %v2359
      %vm2361 = vweird.f32 %v2296
      %vm2362 = vweird.f32 %v2356
      %vm2363 = vmor %vm2361, %vm2362
      %v2364 = vsel %vm2363, %v2356, %v2360
      %v2365 = vand.u32 2147483647, %v2296
      %vm2366 = vcmp.eq.f32.partialorder %v2365, 8.507059e+37
      %v2367 = vand.u32 %v2296, 2147483648
      %v2368 = vor.u32 1.1754944e-38, %v2367
      %v2369 = vsel %vm2366, %v2368, %v2364
      %v2370 = vmul.f32 1.0, %v2369
      %v2371 = vrcp.pop %v2297
      %v2372 = vmul.f32 %v2297, %v2371
      %v2373 = vsub.f32 1.0, %v2372
      %v2374 = vmul.f32 %v2371, %v2373
      %v2375 = vadd.f32 %v2371, %v2374
      %vm2376 = vweird.f32 %v2297
      %vm2377 = vweird.f32 %v2371
      %vm2378 = vmor %vm2376, %vm2377
      %v2379 = vsel %vm2378, %v2371, %v2375
      %v2380 = vand.u32 2147483647, %v2297
      %vm2381 = vcmp.eq.f32.partialorder %v2380, 8.507059e+37
      %v2382 = vand.u32 %v2297, 2147483648
      %v2383 = vor.u32 1.1754944e-38, %v2382
      %v2384 = vsel %vm2381, %v2383, %v2379
      %v2385 = vmul.f32 1.0, %v2384
      %v2386 = vrcp.pop %v2298
      %v2387 = vmul.f32 %v2298, %v2386
      %v2388 = vsub.f32 1.0, %v2387
      %v2389 = vmul.f32 %v2386, %v2388
      %v2390 = vadd.f32 %v2386, %v2389
      %vm2391 = vweird.f32 %v2298
      %vm2392 = vweird.f32 %v2386
      %vm2393 = vmor %vm2391, %vm2392
      %v2394 = vsel %vm2393, %v2386, %v2390
      %v2395 = vand.u32 2147483647, %v2298
      %vm2396 = vcmp.eq.f32.partialorder %v2395, 8.507059e+37
      %v2397 = vand.u32 %v2298, 2147483648
      %v2398 = vor.u32 1.1754944e-38, %v2397
      %v2399 = vsel %vm2396, %v2398, %v2394
      %v2400 = vmul.f32 1.0, %v2399
      %v2401 = vrcp.pop %v2299
      %v2402 = vmul.f32 %v2299, %v2401
      %v2403 = vsub.f32 1.0, %v2402
      %v2404 = vmul.f32 %v2401, %v2403
      %v2405 = vadd.f32 %v2401, %v2404
      %vm2406 = vweird.f32 %v2299
      %vm2407 = vweird.f32 %v2401
      %vm2408 = vmor %vm2406, %vm2407
      %v2409 = vsel %vm2408, %v2401, %v2405
      %v2410 = vand.u32 2147483647, %v2299
      %vm2411 = vcmp.eq.f32.partialorder %v2410, 8.507059e+37
      %v2412 = vand.u32 %v2299, 2147483648
      %v2413 = vor.u32 1.1754944e-38, %v2412
      %v2414 = vsel %vm2411, %v2413, %v2409
      %v2415 = vmul.f32 1.0, %v2414
      %v2416 = vrcp.pop %v2300
      %v2417 = vmul.f32 %v2300, %v2416
      %v2418 = vsub.f32 1.0, %v2417
      %v2419 = vmul.f32 %v2416, %v2418
      %v2420 = vadd.f32 %v2416, %v2419
      %vm2421 = vweird.f32 %v2300
      %vm2422 = vweird.f32 %v2416
      %vm2423 = vmor %vm2421, %vm2422
      %v2424 = vsel %vm2423, %v2416, %v2420
      %v2425 = vand.u32 2147483647, %v2300
      %vm2426 = vcmp.eq.f32.partialorder %v2425, 8.507059e+37
      %v2427 = vand.u32 %v2300, 2147483648
      %v2428 = vor.u32 1.1754944e-38, %v2427
      %v2429 = vsel %vm2426, %v2428, %v2424
      %v2430 = vmul.f32 1.0, %v2429
      %v2431 = vrcp.pop %v2301
      %v2432 = vmul.f32 %v2301, %v2431
      %v2433 = vsub.f32 1.0, %v2432
      %v2434 = vmul.f32 %v2431, %v2433
      %v2435 = vadd.f32 %v2431, %v2434
      %vm2436 = vweird.f32 %v2301
      %vm2437 = vweird.f32 %v2431
      %vm2438 = vmor %vm2436, %vm2437
      %v2439 = vsel %vm2438, %v2431, %v2435
      %v2440 = vand.u32 2147483647, %v2301
      %vm2441 = vcmp.eq.f32.partialorder %v2440, 8.507059e+37
      %v2442 = vand.u32 %v2301, 2147483648
      %v2443 = vor.u32 1.1754944e-38, %v2442
      %v2444 = vsel %vm2441, %v2443, %v2439
      %v2445 = vmul.f32 1.0, %v2444
      %v2446 = vrcp.pop %v2302
      %v2447 = vmul.f32 %v2302, %v2446
      %v2448 = vsub.f32 1.0, %v2447
      %v2449 = vmul.f32 %v2446, %v2448
      %v2450 = vadd.f32 %v2446, %v2449
      %vm2451 = vweird.f32 %v2302
      %vm2452 = vweird.f32 %v2446
      %vm2453 = vmor %vm2451, %vm2452
      %v2454 = vsel %vm2453, %v2446, %v2450
      %v2455 = vand.u32 2147483647, %v2302
      %vm2456 = vcmp.eq.f32.partialorder %v2455, 8.507059e+37
      %v2457 = vand.u32 %v2302, 2147483648
      %v2458 = vor.u32 1.1754944e-38, %v2457
      %v2459 = vsel %vm2456, %v2458, %v2454
      %v2460 = vmul.f32 1.0, %v2459
      %v2461 = vrcp.pop %v2303
      %v2462 = vmul.f32 %v2303, %v2461
      %v2463 = vsub.f32 1.0, %v2462
      %v2464 = vmul.f32 %v2461, %v2463
      %v2465 = vadd.f32 %v2461, %v2464
      %vm2466 = vweird.f32 %v2303
      %vm2467 = vweird.f32 %v2461
      %vm2468 = vmor %vm2466, %vm2467
      %v2469 = vsel %vm2468, %v2461, %v2465
      %v2470 = vand.u32 2147483647, %v2303
      %vm2471 = vcmp.eq.f32.partialorder %v2470, 8.507059e+37
      %v2472 = vand.u32 %v2303, 2147483648
      %v2473 = vor.u32 1.1754944e-38, %v2472
      %v2474 = vsel %vm2471, %v2473, %v2469
      %v2475 = vmul.f32 1.0, %v2474
      %v2476 = vrcp.pop %v2304
      %v2477 = vmul.f32 %v2304, %v2476
      %v2478 = vsub.f32 1.0, %v2477
      %v2479 = vmul.f32 %v2476, %v2478
      %v2480 = vadd.f32 %v2476, %v2479
      %vm2481 = vweird.f32 %v2304
      %vm2482 = vweird.f32 %v2476
      %vm2483 = vmor %vm2481, %vm2482
      %v2484 = vsel %vm2483, %v2476, %v2480
      %v2485 = vand.u32 2147483647, %v2304
      %vm2486 = vcmp.eq.f32.partialorder %v2485, 8.507059e+37
      %v2487 = vand.u32 %v2304, 2147483648
      %v2488 = vor.u32 1.1754944e-38, %v2487
      %v2489 = vsel %vm2486, %v2488, %v2484
      %v2490 = vmul.f32 1.0, %v2489
      %v2491 = vrcp.pop %v2305
      %v2492 = vmul.f32 %v2305, %v2491
      %v2493 = vsub.f32 1.0, %v2492
      %v2494 = vmul.f32 %v2491, %v2493
      %v2495 = vadd.f32 %v2491, %v2494
      %vm2496 = vweird.f32 %v2305
      %vm2497 = vweird.f32 %v2491
      %vm2498 = vmor %vm2496, %vm2497
      %v2499 = vsel %vm2498, %v2491, %v2495
      %v2500 = vand.u32 2147483647, %v2305
      %vm2501 = vcmp.eq.f32.partialorder %v2500, 8.507059e+37
      %v2502 = vand.u32 %v2305, 2147483648
      %v2503 = vor.u32 1.1754944e-38, %v2502
      %v2504 = vsel %vm2501, %v2503, %v2499
      %v2505 = vmul.f32 1.0, %v2504
      %v2506 = vrcp.pop %v2306
      %v2507 = vmul.f32 %v2306, %v2506
      %v2508 = vsub.f32 1.0, %v2507
      %v2509 = vmul.f32 %v2506, %v2508
      %v2510 = vadd.f32 %v2506, %v2509
      %vm2511 = vweird.f32 %v2306
      %vm2512 = vweird.f32 %v2506
      %vm2513 = vmor %vm2511, %vm2512
      %v2514 = vsel %vm2513, %v2506, %v2510
      %v2515 = vand.u32 2147483647, %v2306
      %vm2516 = vcmp.eq.f32.partialorder %v2515, 8.507059e+37
      %v2517 = vand.u32 %v2306, 2147483648
      %v2518 = vor.u32 1.1754944e-38, %v2517
      %v2519 = vsel %vm2516, %v2518, %v2514
      %v2520 = vmul.f32 1.0, %v2519
      %v2521 = vrcp.pop %v2307
      %v2522 = vmul.f32 %v2307, %v2521
      %v2523 = vsub.f32 1.0, %v2522
      %v2524 = vmul.f32 %v2521, %v2523
      %v2525 = vadd.f32 %v2521, %v2524
      %vm2526 = vweird.f32 %v2307
      %vm2527 = vweird.f32 %v2521
      %vm2528 = vmor %vm2526, %vm2527
      %v2529 = vsel %vm2528, %v2521, %v2525
      %v2530 = vand.u32 2147483647, %v2307
      %vm2531 = vcmp.eq.f32.partialorder %v2530, 8.507059e+37
      %v2532 = vand.u32 %v2307, 2147483648
      %v2533 = vor.u32 1.1754944e-38, %v2532
      %v2534 = vsel %vm2531, %v2533, %v2529
      %v2535 = vmul.f32 1.0, %v2534
      %v2536 = vrcp.pop %v2308
      %v2537 = vmul.f32 %v2308, %v2536
      %v2538 = vsub.f32 1.0, %v2537
      %v2539 = vmul.f32 %v2536, %v2538
      %v2540 = vadd.f32 %v2536, %v2539
      %vm2541 = vweird.f32 %v2308
      %vm2542 = vweird.f32 %v2536
      %vm2543 = vmor %vm2541, %vm2542
      %v2544 = vsel %vm2543, %v2536, %v2540
      %v2545 = vand.u32 2147483647, %v2308
      %vm2546 = vcmp.eq.f32.partialorder %v2545, 8.507059e+37
      %v2547 = vand.u32 %v2308, 2147483648
      %v2548 = vor.u32 1.1754944e-38, %v2547
      %v2549 = vsel %vm2546, %v2548, %v2544
      %v2550 = vmul.f32 1.0, %v2549
      %v2551 = vrcp.pop %v2309
      %v2552 = vmul.f32 %v2309, %v2551
      %v2553 = vsub.f32 1.0, %v2552
      %v2554 = vmul.f32 %v2551, %v2553
      %v2555 = vadd.f32 %v2551, %v2554
      %vm2556 = vweird.f32 %v2309
      %vm2557 = vweird.f32 %v2551
      %vm2558 = vmor %vm2556, %vm2557
      %v2559 = vsel %vm2558, %v2551, %v2555
      %v2560 = vand.u32 2147483647, %v2309
      %vm2561 = vcmp.eq.f32.partialorder %v2560, 8.507059e+37
      %v2562 = vand.u32 %v2309, 2147483648
      %v2563 = vor.u32 1.1754944e-38, %v2562
      %v2564 = vsel %vm2561, %v2563, %v2559
      %v2565 = vmul.f32 1.0, %v2564
      %v2566 = vrcp.pop %v2310
      %v2567 = vmul.f32 %v2310, %v2566
      %v2568 = vsub.f32 1.0, %v2567
      %v2569 = vmul.f32 %v2566, %v2568
      %v2570 = vadd.f32 %v2566, %v2569
      %vm2571 = vweird.f32 %v2310
      %vm2572 = vweird.f32 %v2566
      %vm2573 = vmor %vm2571, %vm2572
      %v2574 = vsel %vm2573, %v2566, %v2570
      %v2575 = vand.u32 2147483647, %v2310
      %vm2576 = vcmp.eq.f32.partialorder %v2575, 8.507059e+37
      %v2577 = vand.u32 %v2310, 2147483648
      %v2578 = vor.u32 1.1754944e-38, %v2577
      %v2579 = vsel %vm2576, %v2578, %v2574
      %v2580 = vmul.f32 1.0, %v2579
      %v2581 = vrcp.pop %v2311
      %v2582 = vmul.f32 %v2311, %v2581
      %v2583 = vsub.f32 1.0, %v2582
      %v2584 = vmul.f32 %v2581, %v2583
      %v2585 = vadd.f32 %v2581, %v2584
      %vm2586 = vweird.f32 %v2311
      %vm2587 = vweird.f32 %v2581
      %vm2588 = vmor %vm2586, %vm2587
      %v2589 = vsel %vm2588, %v2581, %v2585
      %v2590 = vand.u32 2147483647, %v2311
      %vm2591 = vcmp.eq.f32.partialorder %v2590, 8.507059e+37
      %v2592 = vand.u32 %v2311, 2147483648
      %v2593 = vor.u32 1.1754944e-38, %v2592
      %v2594 = vsel %vm2591, %v2593, %v2589
      %v2595 = vmul.f32 1.0, %v2594
      %v2596 = vrcp.pop %v2312
      %v2597 = vmul.f32 %v2312, %v2596
      %v2598 = vsub.f32 1.0, %v2597
      %v2599 = vmul.f32 %v2596, %v2598
      %v2600 = vadd.f32 %v2596, %v2599
      %vm2601 = vweird.f32 %v2312
      %vm2602 = vweird.f32 %v2596
      %vm2603 = vmor %vm2601, %vm2602
      %v2604 = vsel %vm2603, %v2596, %v2600
      %v2605 = vand.u32 2147483647, %v2312
      %vm2606 = vcmp.eq.f32.partialorder %v2605, 8.507059e+37
      %v2607 = vand.u32 %v2312, 2147483648
      %v2608 = vor.u32 1.1754944e-38, %v2607
      %v2609 = vsel %vm2606, %v2608, %v2604
      %v2610 = vmul.f32 1.0, %v2609
      %v2611 = vrcp.pop %v2313
      %v2612 = vmul.f32 %v2313, %v2611
      %v2613 = vsub.f32 1.0, %v2612
      %v2614 = vmul.f32 %v2611, %v2613
      %v2615 = vadd.f32 %v2611, %v2614
      %vm2616 = vweird.f32 %v2313
      %vm2617 = vweird.f32 %v2611
      %vm2618 = vmor %vm2616, %vm2617
      %v2619 = vsel %vm2618, %v2611, %v2615
      %v2620 = vand.u32 2147483647, %v2313
      %vm2621 = vcmp.eq.f32.partialorder %v2620, 8.507059e+37
      %v2622 = vand.u32 %v2313, 2147483648
      %v2623 = vor.u32 1.1754944e-38, %v2622
      %v2624 = vsel %vm2621, %v2623, %v2619
      %v2625 = vmul.f32 1.0, %v2624
      %v2626 = vrcp.pop %v2314
      %v2627 = vmul.f32 %v2314, %v2626
      %v2628 = vsub.f32 1.0, %v2627
      %v2629 = vmul.f32 %v2626, %v2628
      %v2630 = vadd.f32 %v2626, %v2629
      %vm2631 = vweird.f32 %v2314
      %vm2632 = vweird.f32 %v2626
      %vm2633 = vmor %vm2631, %vm2632
      %v2634 = vsel %vm2633, %v2626, %v2630
      %v2635 = vand.u32 2147483647, %v2314
      %vm2636 = vcmp.eq.f32.partialorder %v2635, 8.507059e+37
      %v2637 = vand.u32 %v2314, 2147483648
      %v2638 = vor.u32 1.1754944e-38, %v2637
      %v2639 = vsel %vm2636, %v2638, %v2634
      %v2640 = vmul.f32 1.0, %v2639
      %v2641 = vrcp.pop %v2315
      %v2642 = vmul.f32 %v2315, %v2641
      %v2643 = vsub.f32 1.0, %v2642
      %v2644 = vmul.f32 %v2641, %v2643
      %v2645 = vadd.f32 %v2641, %v2644
      %vm2646 = vweird.f32 %v2315
      %vm2647 = vweird.f32 %v2641
      %vm2648 = vmor %vm2646, %vm2647
      %v2649 = vsel %vm2648, %v2641, %v2645
      %v2650 = vand.u32 2147483647, %v2315
      %vm2651 = vcmp.eq.f32.partialorder %v2650, 8.507059e+37
      %v2652 = vand.u32 %v2315, 2147483648
      %v2653 = vor.u32 1.1754944e-38, %v2652
      %v2654 = vsel %vm2651, %v2653, %v2649
      %v2655 = vmul.f32 1.0, %v2654
      %v2656 = vrcp.pop %v2316
      %v2657 = vmul.f32 %v2316, %v2656
      %v2658 = vsub.f32 1.0, %v2657
      %v2659 = vmul.f32 %v2656, %v2658
      %v2660 = vadd.f32 %v2656, %v2659
      %vm2661 = vweird.f32 %v2316
      %vm2662 = vweird.f32 %v2656
      %vm2663 = vmor %vm2661, %vm2662
      %v2664 = vsel %vm2663, %v2656, %v2660
      %v2665 = vand.u32 2147483647, %v2316
      %vm2666 = vcmp.eq.f32.partialorder %v2665, 8.507059e+37
      %v2667 = vand.u32 %v2316, 2147483648
      %v2668 = vor.u32 1.1754944e-38, %v2667
      %v2669 = vsel %vm2666, %v2668, %v2664
      %v2670 = vmul.f32 1.0, %v2669
      %v2671 = vrcp.pop %v2317
      %v2672 = vmul.f32 %v2317, %v2671
      %v2673 = vsub.f32 1.0, %v2672
      %v2674 = vmul.f32 %v2671, %v2673
      %v2675 = vadd.f32 %v2671, %v2674
      %vm2676 = vweird.f32 %v2317
      %vm2677 = vweird.f32 %v2671
      %vm2678 = vmor %vm2676, %vm2677
      %v2679 = vsel %vm2678, %v2671, %v2675
      %v2680 = vand.u32 2147483647, %v2317
      %vm2681 = vcmp.eq.f32.partialorder %v2680, 8.507059e+37
      %v2682 = vand.u32 %v2317, 2147483648
      %v2683 = vor.u32 1.1754944e-38, %v2682
      %v2684 = vsel %vm2681, %v2683, %v2679
      %v2685 = vmul.f32 1.0, %v2684
      %v2686 = vrcp.pop %v2318
      %v2687 = vmul.f32 %v2318, %v2686
      %v2688 = vsub.f32 1.0, %v2687
      %v2689 = vmul.f32 %v2686, %v2688
      %v2690 = vadd.f32 %v2686, %v2689
      %vm2691 = vweird.f32 %v2318
      %vm2692 = vweird.f32 %v2686
      %vm2693 = vmor %vm2691, %vm2692
      %v2694 = vsel %vm2693, %v2686, %v2690
      %v2695 = vand.u32 2147483647, %v2318
      %vm2696 = vcmp.eq.f32.partialorder %v2695, 8.507059e+37
      %v2697 = vand.u32 %v2318, 2147483648
      %v2698 = vor.u32 1.1754944e-38, %v2697
      %v2699 = vsel %vm2696, %v2698, %v2694
      %v2700 = vmul.f32 1.0, %v2699
      %v2701 = vrcp.pop %v2319
      %v2702 = vmul.f32 %v2319, %v2701
      %v2703 = vsub.f32 1.0, %v2702
      %v2704 = vmul.f32 %v2701, %v2703
      %v2705 = vadd.f32 %v2701, %v2704
      %vm2706 = vweird.f32 %v2319
      %vm2707 = vweird.f32 %v2701
      %vm2708 = vmor %vm2706, %vm2707
      %v2709 = vsel %vm2708, %v2701, %v2705
      %v2710 = vand.u32 2147483647, %v2319
      %vm2711 = vcmp.eq.f32.partialorder %v2710, 8.507059e+37
      %v2712 = vand.u32 %v2319, 2147483648
      %v2713 = vor.u32 1.1754944e-38, %v2712
      %v2714 = vsel %vm2711, %v2713, %v2709
      %v2715 = vmul.f32 1.0, %v2714
      %v2716 = vrcp.pop %v2320
      %v2717 = vmul.f32 %v2320, %v2716
      %v2718 = vsub.f32 1.0, %v2717
      %v2719 = vmul.f32 %v2716, %v2718
      %v2720 = vadd.f32 %v2716, %v2719
      %vm2721 = vweird.f32 %v2320
      %vm2722 = vweird.f32 %v2716
      %vm2723 = vmor %vm2721, %vm2722
      %v2724 = vsel %vm2723, %v2716, %v2720
      %v2725 = vand.u32 2147483647, %v2320
      %vm2726 = vcmp.eq.f32.partialorder %v2725, 8.507059e+37
      %v2727 = vand.u32 %v2320, 2147483648
      %v2728 = vor.u32 1.1754944e-38, %v2727
      %v2729 = vsel %vm2726, %v2728, %v2724
      %v2730 = vmul.f32 1.0, %v2729
      %v2731 = vrcp.pop %v2321
      %v2732 = vmul.f32 %v2321, %v2731
      %v2733 = vsub.f32 1.0, %v2732
      %v2734 = vmul.f32 %v2731, %v2733
      %v2735 = vadd.f32 %v2731, %v2734
      %vm2736 = vweird.f32 %v2321
      %vm2737 = vweird.f32 %v2731
      %vm2738 = vmor %vm2736, %vm2737
      %v2739 = vsel %vm2738, %v2731, %v2735
      %v2740 = vand.u32 2147483647, %v2321
      %vm2741 = vcmp.eq.f32.partialorder %v2740, 8.507059e+37
      %v2742 = vand.u32 %v2321, 2147483648
      %v2743 = vor.u32 1.1754944e-38, %v2742
      %v2744 = vsel %vm2741, %v2743, %v2739
      %v2745 = vmul.f32 1.0, %v2744
      %v2746 = vrcp.pop %v2322
      %v2747 = vmul.f32 %v2322, %v2746
      %v2748 = vsub.f32 1.0, %v2747
      %v2749 = vmul.f32 %v2746, %v2748
      %v2750 = vadd.f32 %v2746, %v2749
      %vm2751 = vweird.f32 %v2322
      %vm2752 = vweird.f32 %v2746
      %vm2753 = vmor %vm2751, %vm2752
      %v2754 = vsel %vm2753, %v2746, %v2750
      %v2755 = vand.u32 2147483647, %v2322
      %vm2756 = vcmp.eq.f32.partialorder %v2755, 8.507059e+37
      %v2757 = vand.u32 %v2322, 2147483648
      %v2758 = vor.u32 1.1754944e-38, %v2757
      %v2759 = vsel %vm2756, %v2758, %v2754
      %v2760 = vmul.f32 1.0, %v2759
      %v2761 = vrcp.pop %v2323
      %v2762 = vmul.f32 %v2323, %v2761
      %v2763 = vsub.f32 1.0, %v2762
      %v2764 = vmul.f32 %v2761, %v2763
      %v2765 = vadd.f32 %v2761, %v2764
      %vm2766 = vweird.f32 %v2323
      %vm2767 = vweird.f32 %v2761
      %vm2768 = vmor %vm2766, %vm2767
      %v2769 = vsel %vm2768, %v2761, %v2765
      %v2770 = vand.u32 2147483647, %v2323
      %vm2771 = vcmp.eq.f32.partialorder %v2770, 8.507059e+37
      %v2772 = vand.u32 %v2323, 2147483648
      %v2773 = vor.u32 1.1754944e-38, %v2772
      %v2774 = vsel %vm2771, %v2773, %v2769
      %v2775 = vmul.f32 1.0, %v2774
      %v2776 = vrcp.pop %v2324
      %v2777 = vmul.f32 %v2324, %v2776
      %v2778 = vsub.f32 1.0, %v2777
      %v2779 = vmul.f32 %v2776, %v2778
      %v2780 = vadd.f32 %v2776, %v2779
      %vm2781 = vweird.f32 %v2324
      %vm2782 = vweird.f32 %v2776
      %vm2783 = vmor %vm2781, %vm2782
      %v2784 = vsel %vm2783, %v2776, %v2780
      %v2785 = vand.u32 2147483647, %v2324
      %vm2786 = vcmp.eq.f32.partialorder %v2785, 8.507059e+37
      %v2787 = vand.u32 %v2324, 2147483648
      %v2788 = vor.u32 1.1754944e-38, %v2787
      %v2789 = vsel %vm2786, %v2788, %v2784
      %v2790 = vmul.f32 1.0, %v2789
      %v2791 = vrcp.pop %v2325
      %v2792 = vmul.f32 %v2325, %v2791
      %v2793 = vsub.f32 1.0, %v2792
      %v2794 = vmul.f32 %v2791, %v2793
      %v2795 = vadd.f32 %v2791, %v2794
      %vm2796 = vweird.f32 %v2325
      %vm2797 = vweird.f32 %v2791
      %vm2798 = vmor %vm2796, %vm2797
      %v2799 = vsel %vm2798, %v2791, %v2795
      %v2800 = vand.u32 2147483647, %v2325
      %vm2801 = vcmp.eq.f32.partialorder %v2800, 8.507059e+37
      %v2802 = vand.u32 %v2325, 2147483648
      %v2803 = vor.u32 1.1754944e-38, %v2802
      %v2804 = vsel %vm2801, %v2803, %v2799
      %v2805 = vmul.f32 1.0, %v2804
      %v2806 = vmul.f32 %v1700, %v1431
      %v2807 = vmul.f32 %v1715, %v1434
      %v2808 = vmul.f32 %v1730, %v1437
      %v2809 = vmul.f32 %v1745, %v1440
      %v2810 = vmul.f32 %v1760, %v1443
      %v2811 = vmul.f32 %v1775, %v1446
      %v2812 = vmul.f32 %v1790, %v1449
      %v2813 = vmul.f32 %v1805, %v1452
      %v2814 = vmul.f32 %v1820, %v1455
      %v2815 = vmul.f32 %v1835, %v1458
      %v2816 = vmul.f32 %v1850, %v1461
      %v2817 = vmul.f32 %v1865, %v1464
      %v2818 = vmul.f32 %v1880, %v1467
      %v2819 = vmul.f32 %v1895, %v1470
      %v2820 = vmul.f32 %v1910, %v1473
      %v2821 = vmul.f32 %v1925, %v1476
      %v2822 = vmul.f32 %v1940, %v1479
      %v2823 = vmul.f32 %v1955, %v1482
      %v2824 = vmul.f32 %v1970, %v1485
      %v2825 = vmul.f32 %v1985, %v1488
      %v2826 = vmul.f32 %v2000, %v1491
      %v2827 = vmul.f32 %v2015, %v1494
      %v2828 = vmul.f32 %v2030, %v1497
      %v2829 = vmul.f32 %v2045, %v1500
      %v2830 = vmul.f32 %v2060, %v1503
      %v2831 = vmul.f32 %v2075, %v1506
      %v2832 = vmul.f32 %v2090, %v1509
      %v2833 = vmul.f32 %v2105, %v1512
      %v2834 = vmul.f32 %v2120, %v1515
      %v2835 = vmul.f32 %v2135, %v1518
      %v2836 = vmul.f32 %v2150, %v1521
      %v2837 = vmul.f32 %v2165, %v1524
      %v2838 = vadd.f32 %v1036, %v2806
      %v2839 = vadd.f32 %v1039, %v2807
      %v2840 = vadd.f32 %v1042, %v2808
      %v2841 = vadd.f32 %v1045, %v2809
      %v2842 = vadd.f32 %v1048, %v2810
      %v2843 = vadd.f32 %v1051, %v2811
      %v2844 = vadd.f32 %v1054, %v2812
      %v2845 = vadd.f32 %v1057, %v2813
      %v2846 = vadd.f32 %v1060, %v2814
      %v2847 = vadd.f32 %v1063, %v2815
      %v2848 = vadd.f32 %v1066, %v2816
      %v2849 = vadd.f32 %v1069, %v2817
      %v2850 = vadd.f32 %v1072, %v2818
      %v2851 = vadd.f32 %v1075, %v2819
      %v2852 = vadd.f32 %v1078, %v2820
      %v2853 = vadd.f32 %v1081, %v2821
      %v2854 = vadd.f32 %v1084, %v2822
      %v2855 = vadd.f32 %v1087, %v2823
      %v2856 = vadd.f32 %v1090, %v2824
      %v2857 = vadd.f32 %v1093, %v2825
      %v2858 = vadd.f32 %v1096, %v2826
      %v2859 = vadd.f32 %v1099, %v2827
      %v2860 = vadd.f32 %v1102, %v2828
      %v2861 = vadd.f32 %v1105, %v2829
      %v2862 = vadd.f32 %v1108, %v2830
      %v2863 = vadd.f32 %v1111, %v2831
      %v2864 = vadd.f32 %v1114, %v2832
      %v2865 = vadd.f32 %v1117, %v2833
      %v2866 = vadd.f32 %v1120, %v2834
      %v2867 = vadd.f32 %v1123, %v2835
      %v2868 = vadd.f32 %v1126, %v2836
      %v2869 = vadd.f32 %v1129, %v2837
      %v2870 = vtanh.pop %v2838
      %v2871 = vtanh.pop %v2839
      %v2872 = vtanh.pop %v2840
      %v2873 = vtanh.pop %v2841
      %v2874 = vtanh.pop %v2842
      %v2875 = vtanh.pop %v2843
      %v2876 = vtanh.pop %v2844
      %v2877 = vtanh.pop %v2845
      %v2878 = vtanh.pop %v2846
      %v2879 = vtanh.pop %v2847
      %v2880 = vtanh.pop %v2848
      %v2881 = vtanh.pop %v2849
      %v2882 = vtanh.pop %v2850
      %v2883 = vtanh.pop %v2851
      %v2884 = vtanh.pop %v2852
      %v2885 = vtanh.pop %v2853
      %v2886 = vtanh.pop %v2854
      %v2887 = vtanh.pop %v2855
      %v2888 = vtanh.pop %v2856
      %v2889 = vtanh.pop %v2857
      %v2890 = vtanh.pop %v2858
      %v2891 = vtanh.pop %v2859
      %v2892 = vtanh.pop %v2860
      %v2893 = vtanh.pop %v2861
      %v2894 = vtanh.pop %v2862
      %v2895 = vtanh.pop %v2863
      %v2896 = vtanh.pop %v2864
      %v2897 = vtanh.pop %v2865
      %v2898 = vtanh.pop %v2866
      %v2899 = vtanh.pop %v2867
      %v2900 = vtanh.pop %v2868
      %v2901 = vtanh.pop %v2869
      %v2902 = vsub.f32 1.0, %v2340
      %v2903 = vsub.f32 1.0, %v2355
      %v2904 = vsub.f32 1.0, %v2370
      %v2905 = vsub.f32 1.0, %v2385
      %v2906 = vsub.f32 1.0, %v2400
      %v2907 = vsub.f32 1.0, %v2415
      %v2908 = vsub.f32 1.0, %v2430
      %v2909 = vsub.f32 1.0, %v2445
      %v2910 = vsub.f32 1.0, %v2460
      %v2911 = vsub.f32 1.0, %v2475
      %v2912 = vsub.f32 1.0, %v2490
      %v2913 = vsub.f32 1.0, %v2505
      %v2914 = vsub.f32 1.0, %v2520
      %v2915 = vsub.f32 1.0, %v2535
      %v2916 = vsub.f32 1.0, %v2550
      %v2917 = vsub.f32 1.0, %v2565
      %v2918 = vsub.f32 1.0, %v2580
      %v2919 = vsub.f32 1.0, %v2595
      %v2920 = vsub.f32 1.0, %v2610
      %v2921 = vsub.f32 1.0, %v2625
      %v2922 = vsub.f32 1.0, %v2640
      %v2923 = vsub.f32 1.0, %v2655
      %v2924 = vsub.f32 1.0, %v2670
      %v2925 = vsub.f32 1.0, %v2685
      %v2926 = vsub.f32 1.0, %v2700
      %v2927 = vsub.f32 1.0, %v2715
      %v2928 = vsub.f32 1.0, %v2730
      %v2929 = vsub.f32 1.0, %v2745
      %v2930 = vsub.f32 1.0, %v2760
      %v2931 = vsub.f32 1.0, %v2775
      %v2932 = vsub.f32 1.0, %v2790
      %v2933 = vsub.f32 1.0, %v2805
      %v2934 = vmul.f32 %v2902, %v2870
      %v2935 = vmul.f32 %v2903, %v2871
      %v2936 = vmul.f32 %v2904, %v2872
      %v2937 = vmul.f32 %v2905, %v2873
      %v2938 = vmul.f32 %v2906, %v2874
      %v2939 = vmul.f32 %v2907, %v2875
      %v2940 = vmul.f32 %v2908, %v2876
      %v2941 = vmul.f32 %v2909, %v2877
      %v2942 = vmul.f32 %v2910, %v2878
      %v2943 = vmul.f32 %v2911, %v2879
      %v2944 = vmul.f32 %v2912, %v2880
      %v2945 = vmul.f32 %v2913, %v2881
      %v2946 = vmul.f32 %v2914, %v2882
      %v2947 = vmul.f32 %v2915, %v2883
      %v2948 = vmul.f32 %v2916, %v2884
      %v2949 = vmul.f32 %v2917, %v2885
      %v2950 = vmul.f32 %v2918, %v2886
      %v2951 = vmul.f32 %v2919, %v2887
      %v2952 = vmul.f32 %v2920, %v2888
      %v2953 = vmul.f32 %v2921, %v2889
      %v2954 = vmul.f32 %v2922, %v2890
      %v2955 = vmul.f32 %v2923, %v2891
      %v2956 = vmul.f32 %v2924, %v2892
      %v2957 = vmul.f32 %v2925, %v2893
      %v2958 = vmul.f32 %v2926, %v2894
      %v2959 = vmul.f32 %v2927, %v2895
      %v2960 = vmul.f32 %v2928, %v2896
      %v2961 = vmul.f32 %v2929, %v2897
      %v2962 = vmul.f32 %v2930, %v2898
      %v2963 = vmul.f32 %v2931, %v2899
      %v2964 = vmul.f32 %v2932, %v2900
      %v2965 = vmul.f32 %v2933, %v2901
      %v2966 = vmul.f32 %v2340, %v672
      %v2967 = vmul.f32 %v2355, %v673
      %v2968 = vmul.f32 %v2370, %v674
      %v2969 = vmul.f32 %v2385, %v675
      %v2970 = vmul.f32 %v2400, %v676
      %v2971 = vmul.f32 %v2415, %v677
      %v2972 = vmul.f32 %v2430, %v678
      %v2973 = vmul.f32 %v2445, %v679
      %v2974 = vmul.f32 %v2460, %v680
      %v2975 = vmul.f32 %v2475, %v681
      %v2976 = vmul.f32 %v2490, %v682
      %v2977 = vmul.f32 %v2505, %v683
      %v2978 = vmul.f32 %v2520, %v684
      %v2979 = vmul.f32 %v2535, %v685
      %v2980 = vmul.f32 %v2550, %v686
      %v2981 = vmul.f32 %v2565, %v687
      %v2982 = vmul.f32 %v2580, %v688
      %v2983 = vmul.f32 %v2595, %v689
      %v2984 = vmul.f32 %v2610, %v690
      %v2985 = vmul.f32 %v2625, %v691
      %v2986 = vmul.f32 %v2640, %v692
      %v2987 = vmul.f32 %v2655, %v693
      %v2988 = vmul.f32 %v2670, %v694
      %v2989 = vmul.f32 %v2685, %v695
      %v2990 = vmul.f32 %v2700, %v696
      %v2991 = vmul.f32 %v2715, %v697
      %v2992 = vmul.f32 %v2730, %v698
      %v2993 = vmul.f32 %v2745, %v699
      %v2994 = vmul.f32 %v2760, %v700
      %v2995 = vmul.f32 %v2775, %v701
      %v2996 = vmul.f32 %v2790, %v702
      %v2997 = vmul.f32 %v2805, %v703
      %v2998 = vadd.f32 %v2934, %v2966
      %v2999 = vadd.f32 %v2935, %v2967
      %v3000 = vadd.f32 %v2936, %v2968
      %v3001 = vadd.f32 %v2937, %v2969
      %v3002 = vadd.f32 %v2938, %v2970
      %v3003 = vadd.f32 %v2939, %v2971
      %v3004 = vadd.f32 %v2940, %v2972
      %v3005 = vadd.f32 %v2941, %v2973
      %v3006 = vadd.f32 %v2942, %v2974
      %v3007 = vadd.f32 %v2943, %v2975
      %v3008 = vadd.f32 %v2944, %v2976
      %v3009 = vadd.f32 %v2945, %v2977
      %v3010 = vadd.f32 %v2946, %v2978
      %v3011 = vadd.f32 %v2947, %v2979
      %v3012 = vadd.f32 %v2948, %v2980
      %v3013 = vadd.f32 %v2949, %v2981
      %v3014 = vadd.f32 %v2950, %v2982
      %v3015 = vadd.f32 %v2951, %v2983
      %v3016 = vadd.f32 %v2952, %v2984
      %v3017 = vadd.f32 %v2953, %v2985
      %v3018 = vadd.f32 %v2954, %v2986
      %v3019 = vadd.f32 %v2955, %v2987
      %v3020 = vadd.f32 %v2956, %v2988
      %v3021 = vadd.f32 %v2957, %v2989
      %v3022 = vadd.f32 %v2958, %v2990
      %v3023 = vadd.f32 %v2959, %v2991
      %v3024 = vadd.f32 %v2960, %v2992
      %v3025 = vadd.f32 %v2961, %v2993
      %v3026 = vadd.f32 %v2962, %v2994
      %v3027 = vadd.f32 %v2963, %v2995
      %v3028 = vadd.f32 %v2964, %v2996
      %v3029 = vadd.f32 %v2965, %v2997
      %v3030 = vmax.f32 %v2998, 0.0
      %v3031 = vmax.f32 %v2999, 0.0
      %v3032 = vmax.f32 %v3000, 0.0
      %v3033 = vmax.f32 %v3001, 0.0
      %v3034 = vmax.f32 %v3002, 0.0
      %v3035 = vmax.f32 %v3003, 0.0
      %v3036 = vmax.f32 %v3004, 0.0
      %v3037 = vmax.f32 %v3005, 0.0
      %v3038 = vmax.f32 %v3006, 0.0
      %v3039 = vmax.f32 %v3007, 0.0
      %v3040 = vmax.f32 %v3008, 0.0
      %v3041 = vmax.f32 %v3009, 0.0
      %v3042 = vmax.f32 %v3010, 0.0
      %v3043 = vmax.f32 %v3011, 0.0
      %v3044 = vmax.f32 %v3012, 0.0
      %v3045 = vmax.f32 %v3013, 0.0
      %v3046 = vmax.f32 %v3014, 0.0
      %v3047 = vmax.f32 %v3015, 0.0
      %v3048 = vmax.f32 %v3016, 0.0
      %v3049 = vmax.f32 %v3017, 0.0
      %v3050 = vmax.f32 %v3018, 0.0
      %v3051 = vmax.f32 %v3019, 0.0
      %v3052 = vmax.f32 %v3020, 0.0
      %v3053 = vmax.f32 %v3021, 0.0
      %v3054 = vmax.f32 %v3022, 0.0
      %v3055 = vmax.f32 %v3023, 0.0
      %v3056 = vmax.f32 %v3024, 0.0
      %v3057 = vmax.f32 %v3025, 0.0
      %v3058 = vmax.f32 %v3026, 0.0
      %v3059 = vmax.f32 %v3027, 0.0
      %v3060 = vmax.f32 %v3028, 0.0
      %v3061 = vmax.f32 %v3029, 0.0
      %3062 = vst [vmem:[#allocation14] sm:$0xff] %v3030
      %3063 = vst [vmem:[#allocation14 + $0x8] sm:$0xff] %v3031
      %3064 = vst [vmem:[#allocation14 + $0x10] sm:$0xff] %v3032
      %3065 = vst [vmem:[#allocation14 + $0x18] sm:$0xff] %v3033
      %3066 = vst [vmem:[#allocation14 + $0x20] sm:$0xff] %v3034
      %3067 = vst [vmem:[#allocation14 + $0x28] sm:$0xff] %v3035
      %3068 = vst [vmem:[#allocation14 + $0x30] sm:$0xff] %v3036
      %3069 = vst [vmem:[#allocation14 + $0x38] sm:$0xff] %v3037
      %3070 = vst [vmem:[#allocation14 + $0x40] sm:$0xff] %v3038
      %3071 = vst [vmem:[#allocation14 + $0x48] sm:$0xff] %v3039
      %3072 = vst [vmem:[#allocation14 + $0x50] sm:$0xff] %v3040
      %3073 = vst [vmem:[#allocation14 + $0x58] sm:$0xff] %v3041
      %3074 = vst [vmem:[#allocation14 + $0x60] sm:$0xff] %v3042
      %3075 = vst [vmem:[#allocation14 + $0x68] sm:$0xff] %v3043
      %3076 = vst [vmem:[#allocation14 + $0x70] sm:$0xff] %v3044
      %3077 = vst [vmem:[#allocation14 + $0x78] sm:$0xff] %v3045
      %3078 = vst [vmem:[#allocation14 + $0x80] sm:$0xff] %v3046
      %3079 = vst [vmem:[#allocation14 + $0x88] sm:$0xff] %v3047
      %3080 = vst [vmem:[#allocation14 + $0x90] sm:$0xff] %v3048
      %3081 = vst [vmem:[#allocation14 + $0x98] sm:$0xff] %v3049
      %3082 = vst [vmem:[#allocation14 + $0xa0] sm:$0xff] %v3050
      %3083 = vst [vmem:[#allocation14 + $0xa8] sm:$0xff] %v3051
      %3084 = vst [vmem:[#allocation14 + $0xb0] sm:$0xff] %v3052
      %3085 = vst [vmem:[#allocation14 + $0xb8] sm:$0xff] %v3053
      %3086 = vst [vmem:[#allocation14 + $0xc0] sm:$0xff] %v3054
      %3087 = vst [vmem:[#allocation14 + $0xc8] sm:$0xff] %v3055
      %3088 = vst [vmem:[#allocation14 + $0xd0] sm:$0xff] %v3056
      %3089 = vst [vmem:[#allocation14 + $0xd8] sm:$0xff] %v3057
      %3090 = vst [vmem:[#allocation14 + $0xe0] sm:$0xff] %v3058
      %3091 = vst [vmem:[#allocation14 + $0xe8] sm:$0xff] %v3059
      %3092 = vst [vmem:[#allocation14 + $0xf0] sm:$0xff] %v3060
      %3093 = vst [vmem:[#allocation14 + $0xf8] sm:$0xff] %v3061
    $region61: #{tpu_custom_call.1} parent=1 // pred_fallthru
      _
    // Predicated region
    $region62: #{tpu_custom_call.1} parent=1 // pred_check
      _
    $region63: #{tpu_custom_call.1} parent=1 // pred_check_branch
      %3095 = sbr.rel (0) target = $region65
    $region64: #{tpu_custom_call.1} parent=1 // pred_region
      %3097 = vsyncadd [#allocation5], 0
      %s3098 = sshll.u32 [#allocation14], 4
      %s3099 = int_to_ptr.vmem [resolvable:$true] %s3098
      %s3100 = sshll.u32 %s7, 4
      %s3101 = int_to_ptr.hbm [resolvable:$true] %s3100
      %3106 = dma.vmem_to_hbm [thread:$0]  %s3099, 4096, %s3101, [#allocation5], 128, 128, 8
    $region65: #{tpu_custom_call.1} parent=1 // pred_fallthru
      _
    // Predicated region
    $region66: #{tpu_custom_call.1} parent=1 // pred_check
      _
    $region67: #{tpu_custom_call.1} parent=1 // pred_check_branch
      %3108 = sbr.rel (0) target = $region69
    $region68: #{tpu_custom_call.1} parent=1 // pred_region
      %3110 = dma.done [#allocation5], 4096
    $region69: #{tpu_custom_call.1} parent=1 // pred_fallthru
      _
    %3111 = vsyncpa [#allocation4], 1
    %3112 = vsyncpa [#allocation7], 1
    %3113 = vsyncpa [#allocation10], 1
    %3114 = vsyncpa [#allocation13], 1
    %3115 = vsyncpa [#allocation5], 1

</llo_original>
